<compile_context>
chip_gen: v7x
topology: tpu7x:2x2x1
jax: 0.10.0
libtpu: 0.0.40
codegen_flags: <defaults>
</compile_context>

<pallas_src>
import functools

import numpy as np
import jax
import jax.numpy as jnp
from jax.experimental import pallas as pl
from jax.experimental.pallas import tpu as pltpu

PAD = 8                      # zero rows above/below each image block (>= images per block)
MAX_BLOCK_IMAGES = 8         # images handled per grid step (<= PAD)

ENC_TAPS = ((-1, -1), (-1, 0), (0, -1), (0, 0))   # encoder 2x2 taps (read up/left)
DEC_TAPS = ((0, 0), (0, 1), (1, 0), (1, 1))       # decoder 2x2 taps (read down/right)
ENC_SHIFTS = (-1, 0)                              # row (h) shifts, sorted
DEC_SHIFTS = (0, 1)

# packed-bias lane offsets inside the single (1, 3328) bias row
_B1 = (0, 512)
_B2 = (512, 768)
_B3 = (768, 832)
_B4 = (896, 2688)
_B5 = (2688, 3200)
_B6 = (3200, 3328)
_BIAS_LEN = 3328


# ----------------------------- fused Pallas kernel ----------------------------- #

def _autoencoder_kernel(x_ref, w1_ref, w2_ref, w3_ref, w4_ref, w5_ref, w6_ref, b_ref,
                        o_ref, a1_ref, a2_ref, a4_ref, a5_ref, *, nb):
    nrows = 7 * nb                       # valid rows per block (h-major, image-minor)
    hbuf_b = a1_ref.shape[0]
    pad_bot = hbuf_b - PAD - nrows

    # Keep the zero-pad rows of every activation scratch zero: the top pad is read by
    # the encoder's dh=-1 row shift, the bottom pad by the decoder's dh=+1 row shift.
    for ref in (a1_ref, a2_ref, a4_ref, a5_ref):
        ref[pl.ds(0, PAD), :] = jnp.zeros((PAD, ref.shape[1]), jnp.bfloat16)
        ref[pl.ds(PAD + nrows, pad_bot), :] = jnp.zeros((pad_bot, ref.shape[1]),
                                                        jnp.bfloat16)

    def conv_band(src_ref, w_ref, bias, shifts):
        # One MXU GEMM per layer: the two h-shifts are stacked along K, the w-shift of
        # every tap lives inside the block-banded weight matrix.
        lhs = jnp.concatenate(
            [src_ref[pl.ds(PAD + d * nb, nrows), :] for d in shifts], axis=1)
        return jnp.dot(lhs, w_ref[...], preferred_element_type=jnp.float32) + bias

    # ------------------------------- encoder ---------------------------------- #
    # L1: Conv2d(1,16,3,s=2,p=1) + ReLU   (s2d-by-4 input -> s2d-by-2 output, 64ch)
    h1 = jnp.maximum(conv_band(x_ref, w1_ref, b_ref[:, _B1[0]:_B1[1]], ENC_SHIFTS), 0.0)
    a1_ref[pl.ds(PAD, nrows), :] = h1.astype(jnp.bfloat16)

    # L2: Conv2d(16,32,3,s=2,p=1) + ReLU  (-> 7x7x32)
    h2 = jnp.maximum(conv_band(a1_ref, w2_ref, b_ref[:, _B2[0]:_B2[1]], ENC_SHIFTS), 0.0)
    a2_ref[pl.ds(PAD, nrows), :] = h2.astype(jnp.bfloat16)

    # L3: Conv2d(32,64,7) -> latent; single GEMM (nb, 7*8*32) x (1792, 64)
    lhs3 = jnp.concatenate(
        [a2_ref[pl.ds(PAD + h * nb, nb), :] for h in range(7)], axis=1)
    z = jnp.dot(lhs3, w3_ref[...],
                preferred_element_type=jnp.float32) + b_ref[:, _B3[0]:_B3[1]]

    # ------------------------------- decoder ---------------------------------- #
    # L4: ConvTranspose2d(64,32,7) + ReLU; single GEMM (nb, 64) x (64, 1792)
    u = jnp.dot(z.astype(jnp.bfloat16), w4_ref[...],
                preferred_element_type=jnp.float32) + b_ref[:, _B4[0]:_B4[1]]
    u = jnp.maximum(u, 0.0)
    for h in range(7):
        a4_ref[pl.ds(PAD + h * nb, nb), :] = u[:, h * 256:(h + 1) * 256].astype(jnp.bfloat16)

    # L5: ConvTranspose2d(32,16,3,s=2,p=1,op=1) + ReLU  (output s2d-by-2, 64ch)
    h5 = jnp.maximum(conv_band(a4_ref, w5_ref, b_ref[:, _B5[0]:_B5[1]], DEC_SHIFTS), 0.0)
    a5_ref[pl.ds(PAD, nrows), :] = h5.astype(jnp.bfloat16)

    # L6: ConvTranspose2d(16,1,3,s=2,p=1,op=1) + Sigmoid  (output s2d-by-4, 16ch packed)
    h6 = conv_band(a5_ref, w6_ref, b_ref[:, _B6[0]:_B6[1]], DEC_SHIFTS)
    o_ref[pl.ds(0, nrows), :] = jax.nn.sigmoid(h6)


def _run_fused_kernel(kp, xbuf, n_blocks, nb, row_block):
    assert nb <= PAD
    hbuf_b = 2 * PAD + row_block
    kernel = functools.partial(_autoencoder_kernel, nb=nb)
    return pl.pallas_call(
        kernel,
        out_shape=jax.ShapeDtypeStruct((n_blocks * row_block, 128), jnp.float32),
        grid=(n_blocks,),
        in_specs=[
            pl.BlockSpec((hbuf_b, 128), lambda i: (i, 0)),    # packed input block
            pl.BlockSpec((256, 512), lambda i: (0, 0)),       # w1
            pl.BlockSpec((1024, 256), lambda i: (0, 0)),      # w2
            pl.BlockSpec((1792, 64), lambda i: (0, 0)),       # w3
            pl.BlockSpec((64, 1792), lambda i: (0, 0)),       # w4
            pl.BlockSpec((512, 512), lambda i: (0, 0)),       # w5
            pl.BlockSpec((1024, 128), lambda i: (0, 0)),      # w6
            pl.BlockSpec((1, _BIAS_LEN), lambda i: (0, 0)),   # packed biases
        ],
        out_specs=pl.BlockSpec((row_block, 128), lambda i: (i, 0)),
        scratch_shapes=[
            pltpu.VMEM((hbuf_b, 512), jnp.bfloat16),   # relu(e1)  (s2d-by-2, 64ch * 8w)
            pltpu.VMEM((hbuf_b, 256), jnp.bfloat16),   # relu(e2)  (32ch * 8w)
            pltpu.VMEM((hbuf_b, 256), jnp.bfloat16),   # relu(d1)  (32ch * 8w)
            pltpu.VMEM((hbuf_b, 512), jnp.bfloat16),   # relu(d2)  (s2d-by-2, 64ch * 8w)
        ],
        compiler_params=pltpu.CompilerParams(dimension_semantics=("parallel",)),
    )(xbuf, kp["w1"], kp["w2"], kp["w3"], kp["w4"], kp["w5"], kp["w6"], kp["bias"])


# --------------------------- one-time weight repacking -------------------------- #

def _gather_pack(w, idx, msk):
    flat = np.asarray(w, np.float32).reshape(-1)
    return flat[idx.reshape(-1)].reshape(idx.shape) * msk       # (4, cin, cout) f32


def _build_m1():
    # e1 W: (16,1,3,3).  Output channel (2a+b)*16+co, input channel 4A+B.
    idx = np.zeros((4, 16, 64), np.int32)
    msk = np.zeros((4, 16, 64), np.float32)
    tap = {t: i for i, t in enumerate(ENC_TAPS)}
    for a in range(2):
        for kh in range(3):
            dh, A = divmod(2 * a + kh - 1, 4)
            for b in range(2):
                for kw in range(3):
                    dw, B = divmod(2 * b + kw - 1, 4)
                    t = tap[(dh, dw)]
                    for co in range(16):
                        idx[t, 4 * A + B, (2 * a + b) * 16 + co] = (co * 3 + kh) * 3 + kw
                        msk[t, 4 * A + B, (2 * a + b) * 16 + co] = 1.0
    return idx, msk


def _build_m2():
    # e2 W: (32,16,3,3).  Input channel (2a+b)*16+ci, output channel co.
    idx = np.zeros((4, 64, 32), np.int32)
    msk = np.zeros((4, 64, 32), np.float32)
    tap = {t: i for i, t in enumerate(ENC_TAPS)}
    for kh in range(3):
        dh, a = divmod(kh - 1, 2)
        for kw in range(3):
            dw, b = divmod(kw - 1, 2)
            t = tap[(dh, dw)]
            for ci in range(16):
                for co in range(32):
                    idx[t, (2 * a + b) * 16 + ci, co] = ((co * 16 + ci) * 3 + kh) * 3 + kw
                    msk[t, (2 * a + b) * 16 + ci, co] = 1.0
    return idx, msk


_KH_OF = {(0, 0): 1, (1, 0): 2, (1, 1): 0}   # (output parity, input offset) -> k index


def _build_m5():
    # d2 W: (32,16,3,3) (ci, co, kh, kw).  Output channel (2a+b)*16+co.
    idx = np.zeros((4, 32, 64), np.int32)
    msk = np.zeros((4, 32, 64), np.float32)
    tap = {t: i for i, t in enumerate(DEC_TAPS)}
    for a in range(2):
        for dh in range(2):
            if (a, dh) not in _KH_OF:
                continue
            kh = _KH_OF[(a, dh)]
            for b in range(2):
                for dw in range(2):
                    if (b, dw) not in _KH_OF:
                        continue
                    kw = _KH_OF[(b, dw)]
                    t = tap[(dh, dw)]
                    for ci in range(32):
                        for co in range(16):
                            idx[t, ci, (2 * a + b) * 16 + co] = ((ci * 16 + co) * 3 + kh) * 3 + kw
                            msk[t, ci, (2 * a + b) * 16 + co] = 1.0
    return idx, msk


def _build_m6():
    # d3 W: (16,1,3,3) (ci, 0, kh, kw).  Input chan (2a'+b')*16+ci, output chan 4A+B.
    idx = np.zeros((4, 64, 16), np.int32)
    msk = np.zeros((4, 64, 16), np.float32)
    tap = {t: i for i, t in enumerate(DEC_TAPS)}
    for Ah in range(2):
        for Al in range(2):
            for dh in range(2):
                if (Al, dh) not in _KH_OF:
                    continue
                kh = _KH_OF[(Al, dh)]
                dI, ap = divmod(Ah + dh, 2)
                for Bh in range(2):
                    for Bl in range(2):
                        for dw in range(2):
                            if (Bl, dw) not in _KH_OF:
                                continue
                            kw = _KH_OF[(Bl, dw)]
                            dJ, bp = divmod(Bh + dw, 2)
                            t = tap[(dI, dJ)]
                            oc = 4 * (2 * Ah + Al) + (2 * Bh + Bl)
                            for ci in range(16):
                                idx[t, (2 * ap + bp) * 16 + ci, oc] = (ci * 3 + kh) * 3 + kw
                                msk[t, (2 * ap + bp) * 16 + ci, oc] = 1.0
    return idx, msk


def _band_stack(m_taps, taps, cin, cout):
    """(4, cin, cout) per-tap matrices -> block-banded (2*8*cin, 8*cout) weight.

    Row index: shift_index*8*cin + w_in*cin + ci ; column: w_out*cout + co.
    The w=7 output column block stays zero (spatial zero-padding)."""
    dh_vals = sorted({dh for dh, _ in taps})
    W = np.zeros((len(dh_vals), 8 * cin, 8 * cout), np.float32)
    for t, (dh, dw) in enumerate(taps):
        k = dh_vals.index(dh)
        for wo in range(7):
            wi = wo + dw
            if 0 <= wi < 7:
                W[k, wi * cin:(wi + 1) * cin, wo * cout:(wo + 1) * cout] = m_taps[t]
    return W.reshape(len(dh_vals) * 8 * cin, 8 * cout)


def _band_bias(b_block):
    # repeat over the 7 valid w columns, zero at the w=7 pad column
    return np.concatenate([np.tile(b_block, 7), np.zeros_like(b_block)])


def prepare_params(params):
    """One-time repack of PyTorch-layout weights into kernel layouts (bf16)."""
    m1 = _gather_pack(params["e1_w"], *_build_m1())   # (4, 16, 64)
    m2 = _gather_pack(params["e2_w"], *_build_m2())   # (4, 64, 32)
    m5 = _gather_pack(params["d2_w"], *_build_m5())   # (4, 32, 64)
    m6 = _gather_pack(params["d3_w"], *_build_m6())   # (4, 64, 16)

    w1 = _band_stack(m1, ENC_TAPS, 16, 64)            # (256, 512)
    w2 = _band_stack(m2, ENC_TAPS, 64, 32)            # (1024, 256)
    w5 = _band_stack(m5, DEC_TAPS, 32, 64)            # (512, 512)
    w6 = _band_stack(m6, DEC_TAPS, 64, 16)            # (1024, 128)

    # L3: flat (h*8*32 + w*32 + ci, co); L4: flat (ci, h*256 + w*32 + co); w=7 zero
    e3 = np.asarray(params["e3_w"], np.float32).transpose(2, 3, 1, 0)   # (h, w, ci, co)
    w3 = np.pad(e3, ((0, 0), (0, 1), (0, 0), (0, 0))).reshape(7 * 8 * 32, 64)
    d1 = np.asarray(params["d1_w"], np.float32).transpose(0, 2, 3, 1)   # (ci, h, w, co)
    w4 = np.pad(d1, ((0, 0), (0, 0), (0, 1), (0, 0))).reshape(64, 7 * 8 * 32)

    e1_b = np.asarray(params["e1_b"], np.float32)
    e2_b = np.asarray(params["e2_b"], np.float32)
    e3_b = np.asarray(params["e3_b"], np.float32)
    d1_b = np.asarray(params["d1_b"], np.float32)
    d2_b = np.asarray(params["d2_b"], np.float32)
    d3_b = np.asarray(params["d3_b"], np.float32)

    bias = np.concatenate([
        _band_bias(np.tile(e1_b, 4)),                       # [0, 512)
        _band_bias(e2_b),                                   # [512, 768)
        np.concatenate([e3_b, np.zeros(64, np.float32)]),   # [768, 896)
        np.tile(_band_bias(d1_b), 7),                       # [896, 2688)
        _band_bias(np.tile(d2_b, 4)),                       # [2688, 3200)
        _band_bias(np.tile(d3_b, 16)),                      # [3200, 3328)
    ]).reshape(1, _BIAS_LEN)

    return {
        "w1": jnp.asarray(w1, jnp.bfloat16),
        "w2": jnp.asarray(w2, jnp.bfloat16),
        "w3": jnp.asarray(w3, jnp.bfloat16),
        "w4": jnp.asarray(w4, jnp.bfloat16),
        "w5": jnp.asarray(w5, jnp.bfloat16),
        "w6": jnp.asarray(w6, jnp.bfloat16),
        "bias": jnp.asarray(bias, jnp.float32),
    }


# ---------------------------------- forward ------------------------------------ #

def _round_up(x, m):
    return ((x + m - 1) // m) * m


@jax.jit
def autoencoder_forward(kparams, x_nchw):
    n = x_nchw.shape[0]
    nb = min(n, MAX_BLOCK_IMAGES)
    n_blocks = -(-n // nb)
    n_pad = n_blocks * nb
    nrows = 7 * nb
    row_block = _round_up(nrows, 8)
    hbuf_b = 2 * PAD + row_block

    # space-to-depth(4): (N,1,28,28) -> (N,7,7,16), channel = 4*A + B
    xs = x_nchw.reshape(n, 7, 4, 7, 4).transpose(0, 1, 3, 2, 4).reshape(n, 7, 7, 16)
    if n_pad != n:
        xs = jnp.concatenate([xs, jnp.zeros((n_pad - n, 7, 7, 16), xs.dtype)], axis=0)
    # per-block layout: row = h*nb + image, lane = w*16 + c  (w padded 7 -> 8)
    xt = xs.reshape(n_blocks, nb, 7, 7, 16).transpose(0, 2, 1, 3, 4)
    xt = jnp.pad(xt, ((0, 0), (0, 0), (0, 0), (0, 1), (0, 0)))
    xt = xt.reshape(n_blocks, nrows, 128).astype(jnp.bfloat16)
    xbuf = jnp.zeros((n_blocks, hbuf_b, 128), jnp.bfloat16)
    xbuf = xbuf.at[:, PAD:PAD + nrows, :].set(xt).reshape(n_blocks * hbuf_b, 128)

    out = _run_fused_kernel(kparams, xbuf, n_blocks, nb, row_block)  # (G*row_block,128)

    g = out.reshape(n_blocks, row_block, 128)[:, :nrows, :]
    g = g.reshape(n_blocks, 7, nb, 8, 16)[:, :, :, :7, :]            # (G, h, img, w, 16)
    g = g.transpose(0, 2, 1, 3, 4).reshape(n_pad, 7, 7, 4, 4)        # (N', h, w, A, B)
    img = g.transpose(0, 1, 3, 2, 4).reshape(n_pad, 28, 28)[:n]
    return img[:, None, :, :]


# --------------------------------- parameters ----------------------------------- #

def init_params(key):
    def w_init(k, shape, fan_in):
        return jax.random.normal(k, shape, jnp.float32) / jnp.sqrt(float(fan_in))

    keys = jax.random.split(key, 12)
    p = {}
    p["e1_w"] = w_init(keys[0], (16, 1, 3, 3), 1 * 9)     # Conv2d(1,16,3,s=2,p=1)
    p["e1_b"] = 0.01 * jax.random.normal(keys[1], (16,), jnp.float32)
    p["e2_w"] = w_init(keys[2], (32, 16, 3, 3), 16 * 9)   # Conv2d(16,32,3,s=2,p=1)
    p["e2_b"] = 0.01 * jax.random.normal(keys[3], (32,), jnp.float32)
    p["e3_w"] = w_init(keys[4], (64, 32, 7, 7), 32 * 49)  # Conv2d(32,64,7)
    p["e3_b"] = 0.01 * jax.random.normal(keys[5], (64,), jnp.float32)
    p["d1_w"] = w_init(keys[6], (64, 32, 7, 7), 64 * 49)  # ConvT(64,32,7)
    p["d1_b"] = 0.01 * jax.random.normal(keys[7], (32,), jnp.float32)
    p["d2_w"] = w_init(keys[8], (32, 16, 3, 3), 32 * 9)   # ConvT(32,16,3,s=2,p=1,op=1)
    p["d2_b"] = 0.01 * jax.random.normal(keys[9], (16,), jnp.float32)
    p["d3_w"] = w_init(keys[10], (16, 1, 3, 3), 16 * 9)   # ConvT(16,1,3,s=2,p=1,op=1)
    p["d3_b"] = 0.01 * jax.random.normal(keys[11], (1,), jnp.float32)
    return p


# ----------------------- plain-JAX reference (self-check) ----------------------- #

@jax.jit
def _reference_forward(params, x):
    def conv(x, w, b, stride, pad):
        y = jax.lax.conv_general_dilated(
            x, w, window_strides=(stride, stride),
            padding=((pad, pad), (pad, pad)),
            dimension_numbers=("NCHW", "OIHW", "NCHW"))
        return y + b.reshape(1, -1, 1, 1)

    def convT(x, w, b, stride, pad, out_pad):
        k = w.shape[2]
        w_conv = jnp.transpose(jnp.flip(w, axis=(2, 3)), (1, 0, 2, 3))
        lo = k - 1 - pad
        hi = k - 1 - pad + out_pad
        y = jax.lax.conv_general_dilated(
            x, w_conv, window_strides=(1, 1),
            padding=((lo, hi), (lo, hi)),
            lhs_dilation=(stride, stride),
            dimension_numbers=("NCHW", "OIHW", "NCHW"))
        return y + b.reshape(1, -1, 1, 1)

    h = jax.nn.relu(conv(x, params["e1_w"], params["e1_b"], 2, 1))
    h = jax.nn.relu(conv(h, params["e2_w"], params["e2_b"], 2, 1))
    h = conv(h, params["e3_w"], params["e3_b"], 1, 0)
    h = jax.nn.relu(convT(h, params["d1_w"], params["d1_b"], 1, 0, 0))
    h = jax.nn.relu(convT(h, params["d2_w"], params["d2_b"], 2, 1, 1))
    return jax.nn.sigmoid(convT(h, params["d3_w"], params["d3_b"], 2, 1, 1))


if __name__ == "__main__":
    key = jax.random.PRNGKey(0)
    pkey, xkey = jax.random.split(key)
    params = init_params(pkey)
    kparams = prepare_params(params)           # one-time weight repack (bf16)

    # MNIST-style single-channel 28x28 inputs; batch=2 primary, plus batch=1 and a
    # multi-block batch (11 -> two grid steps) to exercise padding / grid paths.
    for batch in (2, 1, 11):
        xk = jax.random.fold_in(xkey, batch)
        x = jax.random.uniform(xk, (batch, 1, 28, 28), jnp.float32)

        y = jax.block_until_ready(autoencoder_forward(kparams, x))

        assert y.shape == (batch, 1, 28, 28), y.shape
        assert bool(jnp.all(jnp.isfinite(y)))
        assert bool(jnp.all((y >= 0.0) & (y <= 1.0)))   # sigmoid output range

        y_ref = jax.block_until_ready(_reference_forward(params, x))
        err = float(jnp.max(jnp.abs(y - y_ref)))
        assert err < 0.05, f"batch={batch}: kernel deviates from reference, max abs err {err}"

    print("KERNEL_OK")
</pallas_src>

<mosaic_0001>
module attributes {stable_mosaic.version = 11 : i64} {
  func.func @_autoencoder_kernel(%arg0: i32, %arg1: memref<32x128xbf16, #tpu.memory_space<vmem>>, %arg2: memref<256x512xbf16, #tpu.memory_space<vmem>>, %arg3: memref<1024x256xbf16, #tpu.memory_space<vmem>>, %arg4: memref<1792x64xbf16, #tpu.memory_space<vmem>>, %arg5: memref<64x1792xbf16, #tpu.memory_space<vmem>>, %arg6: memref<512x512xbf16, #tpu.memory_space<vmem>>, %arg7: memref<1024x128xbf16, #tpu.memory_space<vmem>>, %arg8: memref<1x3328xf32, #tpu.memory_space<vmem>>, %arg9: memref<16x128xf32, #tpu.memory_space<vmem>>, %arg10: memref<32x512xbf16, #tpu.memory_space<vmem>>, %arg11: memref<32x256xbf16, #tpu.memory_space<vmem>>, %arg12: memref<32x256xbf16, #tpu.memory_space<vmem>>, %arg13: memref<32x512xbf16, #tpu.memory_space<vmem>>) attributes {dimension_semantics = [#tpu.dimension_semantics<parallel>], iteration_bounds = array<i64: 1>, scalar_prefetch = 0 : i64, scratch_operands = 4 : i64, tpu.core_type = #tpu.core_type<tc>, window_params = [{transform_indices = @transform_0, window_bounds = array<i64: 32, 128>}, {pipeline_mode = #tpu.pipeline_mode<synchronous>, transform_indices = @transform_1, window_bounds = array<i64: 256, 512>}, {pipeline_mode = #tpu.pipeline_mode<synchronous>, transform_indices = @transform_2, window_bounds = array<i64: 1024, 256>}, {pipeline_mode = #tpu.pipeline_mode<synchronous>, transform_indices = @transform_3, window_bounds = array<i64: 1792, 64>}, {pipeline_mode = #tpu.pipeline_mode<synchronous>, transform_indices = @transform_4, window_bounds = array<i64: 64, 1792>}, {pipeline_mode = #tpu.pipeline_mode<synchronous>, transform_indices = @transform_5, window_bounds = array<i64: 512, 512>}, {pipeline_mode = #tpu.pipeline_mode<synchronous>, transform_indices = @transform_6, window_bounds = array<i64: 1024, 128>}, {pipeline_mode = #tpu.pipeline_mode<synchronous>, transform_indices = @transform_7, window_bounds = array<i64: 1, 3328>}, {transform_indices = @transform_8, window_bounds = array<i64: 16, 128>}]} {
    %cst = arith.constant 0.000000e+00 : bf16
    %0 = vector.broadcast %cst : bf16 to vector<8x512xbf16>
    %c0 = arith.constant 0 : index
    %c0_0 = arith.constant 0 : index
    %1 = vector.load %arg10[%c0, %c0_0] : memref<32x512xbf16, #tpu.memory_space<vmem>>, vector<8x512xbf16>
    tpu.vector_store %arg10[%c0, %c0_0], %0 {strides = array<i32>} : memref<32x512xbf16, #tpu.memory_space<vmem>>, vector<8x512xbf16>,
    %cst_1 = arith.constant 0.000000e+00 : bf16
    %2 = vector.broadcast %cst_1 : bf16 to vector<10x512xbf16>
    %c22 = arith.constant 22 : index
    %c0_2 = arith.constant 0 : index
    %3 = vector.load %arg10[%c22, %c0_2] : memref<32x512xbf16, #tpu.memory_space<vmem>>, vector<10x512xbf16>
    tpu.vector_store %arg10[%c22, %c0_2], %2 {strides = array<i32>} : memref<32x512xbf16, #tpu.memory_space<vmem>>, vector<10x512xbf16>,
    %cst_3 = arith.constant 0.000000e+00 : bf16
    %4 = vector.broadcast %cst_3 : bf16 to vector<8x256xbf16>
    %c0_4 = arith.constant 0 : index
    %c0_5 = arith.constant 0 : index
    %5 = vector.load %arg11[%c0_4, %c0_5] : memref<32x256xbf16, #tpu.memory_space<vmem>>, vector<8x256xbf16>
    tpu.vector_store %arg11[%c0_4, %c0_5], %4 {strides = array<i32>} : memref<32x256xbf16, #tpu.memory_space<vmem>>, vector<8x256xbf16>,
    %cst_6 = arith.constant 0.000000e+00 : bf16
    %6 = vector.broadcast %cst_6 : bf16 to vector<10x256xbf16>
    %c22_7 = arith.constant 22 : index
    %c0_8 = arith.constant 0 : index
    %7 = vector.load %arg11[%c22_7, %c0_8] : memref<32x256xbf16, #tpu.memory_space<vmem>>, vector<10x256xbf16>
    tpu.vector_store %arg11[%c22_7, %c0_8], %6 {strides = array<i32>} : memref<32x256xbf16, #tpu.memory_space<vmem>>, vector<10x256xbf16>,
    %cst_9 = arith.constant 0.000000e+00 : bf16
    %8 = vector.broadcast %cst_9 : bf16 to vector<8x256xbf16>
    %c0_10 = arith.constant 0 : index
    %c0_11 = arith.constant 0 : index
    %9 = vector.load %arg12[%c0_10, %c0_11] : memref<32x256xbf16, #tpu.memory_space<vmem>>, vector<8x256xbf16>
    tpu.vector_store %arg12[%c0_10, %c0_11], %8 {strides = array<i32>} : memref<32x256xbf16, #tpu.memory_space<vmem>>, vector<8x256xbf16>,
    %cst_12 = arith.constant 0.000000e+00 : bf16
    %10 = vector.broadcast %cst_12 : bf16 to vector<10x256xbf16>
    %c22_13 = arith.constant 22 : index
    %c0_14 = arith.constant 0 : index
    %11 = vector.load %arg12[%c22_13, %c0_14] : memref<32x256xbf16, #tpu.memory_space<vmem>>, vector<10x256xbf16>
    tpu.vector_store %arg12[%c22_13, %c0_14], %10 {strides = array<i32>} : memref<32x256xbf16, #tpu.memory_space<vmem>>, vector<10x256xbf16>,
    %cst_15 = arith.constant 0.000000e+00 : bf16
    %12 = vector.broadcast %cst_15 : bf16 to vector<8x512xbf16>
    %c0_16 = arith.constant 0 : index
    %c0_17 = arith.constant 0 : index
    %13 = vector.load %arg13[%c0_16, %c0_17] : memref<32x512xbf16, #tpu.memory_space<vmem>>, vector<8x512xbf16>
    tpu.vector_store %arg13[%c0_16, %c0_17], %12 {strides = array<i32>} : memref<32x512xbf16, #tpu.memory_space<vmem>>, vector<8x512xbf16>,
    %cst_18 = arith.constant 0.000000e+00 : bf16
    %14 = vector.broadcast %cst_18 : bf16 to vector<10x512xbf16>
    %c22_19 = arith.constant 22 : index
    %c0_20 = arith.constant 0 : index
    %15 = vector.load %arg13[%c22_19, %c0_20] : memref<32x512xbf16, #tpu.memory_space<vmem>>, vector<10x512xbf16>
    tpu.vector_store %arg13[%c22_19, %c0_20], %14 {strides = array<i32>} : memref<32x512xbf16, #tpu.memory_space<vmem>>, vector<10x512xbf16>,
    %c0_21 = arith.constant 0 : index
    %c0_22 = arith.constant 0 : index
    %16 = vector.load %arg8[%c0_21, %c0_22] : memref<1x3328xf32, #tpu.memory_space<vmem>>, vector<1x512xf32>
    %c6 = arith.constant 6 : index
    %c0_23 = arith.constant 0 : index
    %17 = vector.load %arg1[%c6, %c0_23] : memref<32x128xbf16, #tpu.memory_space<vmem>>, vector<14x128xbf16>
    %c8 = arith.constant 8 : index
    %c0_24 = arith.constant 0 : index
    %18 = vector.load %arg1[%c8, %c0_24] : memref<32x128xbf16, #tpu.memory_space<vmem>>, vector<14x128xbf16>
    %19 = tpu.concatenate %17, %18 in 1 : vector<14x128xbf16>, vector<14x128xbf16> -> vector<14x256xbf16>
    %c0_25 = arith.constant 0 : index
    %c0_26 = arith.constant 0 : index
    %20 = vector.load %arg2[%c0_25, %c0_26] : memref<256x512xbf16, #tpu.memory_space<vmem>>, vector<256x512xbf16>
    %cst_27 = arith.constant dense<0.000000e+00> : vector<14x512xf32>
    %21 = tpu.matmul %19, %20, %cst_27 {dimension_numbers = #tpu.dot_dimension_numbers<[1], [0], [0], [1], [0, 0, 1, 1], [], []>} : vector<14x256xbf16>, vector<256x512xbf16>, vector<14x512xf32> -> vector<14x512xf32>
    %22 = vector.broadcast %16 : vector<1x512xf32> to vector<14x512xf32>
    %23 = arith.addf %21, %22 : vector<14x512xf32>
    %cst_28 = arith.constant 0.000000e+00 : f32
    %24 = vector.broadcast %cst_28 : f32 to vector<14x512xf32>
    %25 = arith.maximumf %23, %24 : vector<14x512xf32>
    %26 = arith.truncf %25 : vector<14x512xf32> to vector<14x512xbf16>
    %c8_29 = arith.constant 8 : index
    %c0_30 = arith.constant 0 : index
    %27 = vector.load %arg10[%c8_29, %c0_30] : memref<32x512xbf16, #tpu.memory_space<vmem>>, vector<14x512xbf16>
    tpu.vector_store %arg10[%c8_29, %c0_30], %26 {strides = array<i32>} : memref<32x512xbf16, #tpu.memory_space<vmem>>, vector<14x512xbf16>,
    %c0_31 = arith.constant 0 : index
    %c512 = arith.constant 512 : index
    %28 = vector.load %arg8[%c0_31, %c512] : memref<1x3328xf32, #tpu.memory_space<vmem>>, vector<1x256xf32>
    %c6_32 = arith.constant 6 : index
    %c0_33 = arith.constant 0 : index
    %29 = vector.load %arg10[%c6_32, %c0_33] : memref<32x512xbf16, #tpu.memory_space<vmem>>, vector<14x512xbf16>
    %c8_34 = arith.constant 8 : index
    %c0_35 = arith.constant 0 : index
    %30 = vector.load %arg10[%c8_34, %c0_35] : memref<32x512xbf16, #tpu.memory_space<vmem>>, vector<14x512xbf16>
    %31 = tpu.concatenate %29, %30 in 1 : vector<14x512xbf16>, vector<14x512xbf16> -> vector<14x1024xbf16>
    %c0_36 = arith.constant 0 : index
    %c0_37 = arith.constant 0 : index
    %32 = vector.load %arg3[%c0_36, %c0_37] : memref<1024x256xbf16, #tpu.memory_space<vmem>>, vector<1024x256xbf16>
    %cst_38 = arith.constant dense<0.000000e+00> : vector<14x256xf32>
    %33 = tpu.matmul %31, %32, %cst_38 {dimension_numbers = #tpu.dot_dimension_numbers<[1], [0], [0], [1], [0, 0, 1, 1], [], []>} : vector<14x1024xbf16>, vector<1024x256xbf16>, vector<14x256xf32> -> vector<14x256xf32>
    %34 = vector.broadcast %28 : vector<1x256xf32> to vector<14x256xf32>
    %35 = arith.addf %33, %34 : vector<14x256xf32>
    %cst_39 = arith.constant 0.000000e+00 : f32
    %36 = vector.broadcast %cst_39 : f32 to vector<14x256xf32>
    %37 = arith.maximumf %35, %36 : vector<14x256xf32>
    %38 = arith.truncf %37 : vector<14x256xf32> to vector<14x256xbf16>
    %c8_40 = arith.constant 8 : index
    %c0_41 = arith.constant 0 : index
    %39 = vector.load %arg11[%c8_40, %c0_41] : memref<32x256xbf16, #tpu.memory_space<vmem>>, vector<14x256xbf16>
    tpu.vector_store %arg11[%c8_40, %c0_41], %38 {strides = array<i32>} : memref<32x256xbf16, #tpu.memory_space<vmem>>, vector<14x256xbf16>,
    %c8_42 = arith.constant 8 : index
    %c0_43 = arith.constant 0 : index
    %40 = vector.load %arg11[%c8_42, %c0_43] : memref<32x256xbf16, #tpu.memory_space<vmem>>, vector<2x256xbf16>
    %c10 = arith.constant 10 : index
    %c0_44 = arith.constant 0 : index
    %41 = vector.load %arg11[%c10, %c0_44] : memref<32x256xbf16, #tpu.memory_space<vmem>>, vector<2x256xbf16>
    %c12 = arith.constant 12 : index
    %c0_45 = arith.constant 0 : index
    %42 = vector.load %arg11[%c12, %c0_45] : memref<32x256xbf16, #tpu.memory_space<vmem>>, vector<2x256xbf16>
    %c14 = arith.constant 14 : index
    %c0_46 = arith.constant 0 : index
    %43 = vector.load %arg11[%c14, %c0_46] : memref<32x256xbf16, #tpu.memory_space<vmem>>, vector<2x256xbf16>
    %c16 = arith.constant 16 : index
    %c0_47 = arith.constant 0 : index
    %44 = vector.load %arg11[%c16, %c0_47] : memref<32x256xbf16, #tpu.memory_space<vmem>>, vector<2x256xbf16>
    %c18 = arith.constant 18 : index
    %c0_48 = arith.constant 0 : index
    %45 = vector.load %arg11[%c18, %c0_48] : memref<32x256xbf16, #tpu.memory_space<vmem>>, vector<2x256xbf16>
    %c20 = arith.constant 20 : index
    %c0_49 = arith.constant 0 : index
    %46 = vector.load %arg11[%c20, %c0_49] : memref<32x256xbf16, #tpu.memory_space<vmem>>, vector<2x256xbf16>
    %47 = tpu.concatenate %40, %41, %42, %43, %44, %45, %46 in 1 : vector<2x256xbf16>, vector<2x256xbf16>, vector<2x256xbf16>, vector<2x256xbf16>, vector<2x256xbf16>, vector<2x256xbf16>, vector<2x256xbf16> -> vector<2x1792xbf16>
    %c0_50 = arith.constant 0 : index
    %c0_51 = arith.constant 0 : index
    %48 = vector.load %arg4[%c0_50, %c0_51] : memref<1792x64xbf16, #tpu.memory_space<vmem>>, vector<1792x64xbf16>
    %cst_52 = arith.constant dense<0.000000e+00> : vector<2x64xf32>
    %49 = tpu.matmul %47, %48, %cst_52 {dimension_numbers = #tpu.dot_dimension_numbers<[1], [0], [0], [1], [0, 0, 1, 1], [], []>} : vector<2x1792xbf16>, vector<1792x64xbf16>, vector<2x64xf32> -> vector<2x64xf32>
    %c0_53 = arith.constant 0 : index
    %c768 = arith.constant 768 : index
    %50 = vector.load %arg8[%c0_53, %c768] : memref<1x3328xf32, #tpu.memory_space<vmem>>, vector<1x64xf32>
    %51 = vector.broadcast %50 : vector<1x64xf32> to vector<2x64xf32>
    %52 = arith.addf %49, %51 : vector<2x64xf32>
    %53 = arith.truncf %52 : vector<2x64xf32> to vector<2x64xbf16>
    %c0_54 = arith.constant 0 : index
    %c0_55 = arith.constant 0 : index
    %54 = vector.load %arg5[%c0_54, %c0_55] : memref<64x1792xbf16, #tpu.memory_space<vmem>>, vector<64x1792xbf16>
    %cst_56 = arith.constant dense<0.000000e+00> : vector<2x1792xf32>
    %55 = tpu.matmul %53, %54, %cst_56 {dimension_numbers = #tpu.dot_dimension_numbers<[1], [0], [0], [1], [0, 0, 1, 1], [], []>} : vector<2x64xbf16>, vector<64x1792xbf16>, vector<2x1792xf32> -> vector<2x1792xf32>
    %c0_57 = arith.constant 0 : index
    %c896 = arith.constant 896 : index
    %56 = vector.load %arg8[%c0_57, %c896] : memref<1x3328xf32, #tpu.memory_space<vmem>>, vector<1x1792xf32>
    %57 = vector.broadcast %56 : vector<1x1792xf32> to vector<2x1792xf32>
    %58 = arith.addf %55, %57 : vector<2x1792xf32>
    %cst_58 = arith.constant 0.000000e+00 : f32
    %59 = vector.broadcast %cst_58 : f32 to vector<2x1792xf32>
    %60 = arith.maximumf %58, %59 : vector<2x1792xf32>
    %61 = vector.extract_strided_slice %60 {offsets = [0, 0], sizes = [2, 256], strides = [1, 1]} : vector<2x1792xf32> to vector<2x256xf32>
    %62 = arith.truncf %61 : vector<2x256xf32> to vector<2x256xbf16>
    %c8_59 = arith.constant 8 : index
    %c0_60 = arith.constant 0 : index
    %63 = vector.load %arg12[%c8_59, %c0_60] : memref<32x256xbf16, #tpu.memory_space<vmem>>, vector<2x256xbf16>
    tpu.vector_store %arg12[%c8_59, %c0_60], %62 {strides = array<i32>} : memref<32x256xbf16, #tpu.memory_space<vmem>>, vector<2x256xbf16>,
    %64 = vector.extract_strided_slice %60 {offsets = [0, 256], sizes = [2, 256], strides = [1, 1]} : vector<2x1792xf32> to vector<2x256xf32>
    %65 = arith.truncf %64 : vector<2x256xf32> to vector<2x256xbf16>
    %c10_61 = arith.constant 10 : index
    %c0_62 = arith.constant 0 : index
    %66 = vector.load %arg12[%c10_61, %c0_62] : memref<32x256xbf16, #tpu.memory_space<vmem>>, vector<2x256xbf16>
    tpu.vector_store %arg12[%c10_61, %c0_62], %65 {strides = array<i32>} : memref<32x256xbf16, #tpu.memory_space<vmem>>, vector<2x256xbf16>,
    %67 = vector.extract_strided_slice %60 {offsets = [0, 512], sizes = [2, 256], strides = [1, 1]} : vector<2x1792xf32> to vector<2x256xf32>
    %68 = arith.truncf %67 : vector<2x256xf32> to vector<2x256xbf16>
    %c12_63 = arith.constant 12 : index
    %c0_64 = arith.constant 0 : index
    %69 = vector.load %arg12[%c12_63, %c0_64] : memref<32x256xbf16, #tpu.memory_space<vmem>>, vector<2x256xbf16>
    tpu.vector_store %arg12[%c12_63, %c0_64], %68 {strides = array<i32>} : memref<32x256xbf16, #tpu.memory_space<vmem>>, vector<2x256xbf16>,
    %70 = vector.extract_strided_slice %60 {offsets = [0, 768], sizes = [2, 256], strides = [1, 1]} : vector<2x1792xf32> to vector<2x256xf32>
    %71 = arith.truncf %70 : vector<2x256xf32> to vector<2x256xbf16>
    %c14_65 = arith.constant 14 : index
    %c0_66 = arith.constant 0 : index
    %72 = vector.load %arg12[%c14_65, %c0_66] : memref<32x256xbf16, #tpu.memory_space<vmem>>, vector<2x256xbf16>
    tpu.vector_store %arg12[%c14_65, %c0_66], %71 {strides = array<i32>} : memref<32x256xbf16, #tpu.memory_space<vmem>>, vector<2x256xbf16>,
    %73 = vector.extract_strided_slice %60 {offsets = [0, 1024], sizes = [2, 256], strides = [1, 1]} : vector<2x1792xf32> to vector<2x256xf32>
    %74 = arith.truncf %73 : vector<2x256xf32> to vector<2x256xbf16>
    %c16_67 = arith.constant 16 : index
    %c0_68 = arith.constant 0 : index
    %75 = vector.load %arg12[%c16_67, %c0_68] : memref<32x256xbf16, #tpu.memory_space<vmem>>, vector<2x256xbf16>
    tpu.vector_store %arg12[%c16_67, %c0_68], %74 {strides = array<i32>} : memref<32x256xbf16, #tpu.memory_space<vmem>>, vector<2x256xbf16>,
    %76 = vector.extract_strided_slice %60 {offsets = [0, 1280], sizes = [2, 256], strides = [1, 1]} : vector<2x1792xf32> to vector<2x256xf32>
    %77 = arith.truncf %76 : vector<2x256xf32> to vector<2x256xbf16>
    %c18_69 = arith.constant 18 : index
    %c0_70 = arith.constant 0 : index
    %78 = vector.load %arg12[%c18_69, %c0_70] : memref<32x256xbf16, #tpu.memory_space<vmem>>, vector<2x256xbf16>
    tpu.vector_store %arg12[%c18_69, %c0_70], %77 {strides = array<i32>} : memref<32x256xbf16, #tpu.memory_space<vmem>>, vector<2x256xbf16>,
    %79 = vector.extract_strided_slice %60 {offsets = [0, 1536], sizes = [2, 256], strides = [1, 1]} : vector<2x1792xf32> to vector<2x256xf32>
    %80 = arith.truncf %79 : vector<2x256xf32> to vector<2x256xbf16>
    %c20_71 = arith.constant 20 : index
    %c0_72 = arith.constant 0 : index
    %81 = vector.load %arg12[%c20_71, %c0_72] : memref<32x256xbf16, #tpu.memory_space<vmem>>, vector<2x256xbf16>
    tpu.vector_store %arg12[%c20_71, %c0_72], %80 {strides = array<i32>} : memref<32x256xbf16, #tpu.memory_space<vmem>>, vector<2x256xbf16>,
    %c0_73 = arith.constant 0 : index
    %c2688 = arith.constant 2688 : index
    %82 = vector.load %arg8[%c0_73, %c2688] : memref<1x3328xf32, #tpu.memory_space<vmem>>, vector<1x512xf32>
    %c8_74 = arith.constant 8 : index
    %c0_75 = arith.constant 0 : index
    %83 = vector.load %arg12[%c8_74, %c0_75] : memref<32x256xbf16, #tpu.memory_space<vmem>>, vector<14x256xbf16>
    %c10_76 = arith.constant 10 : index
    %c0_77 = arith.constant 0 : index
    %84 = vector.load %arg12[%c10_76, %c0_77] : memref<32x256xbf16, #tpu.memory_space<vmem>>, vector<14x256xbf16>
    %85 = tpu.concatenate %83, %84 in 1 : vector<14x256xbf16>, vector<14x256xbf16> -> vector<14x512xbf16>
    %c0_78 = arith.constant 0 : index
    %c0_79 = arith.constant 0 : index
    %86 = vector.load %arg6[%c0_78, %c0_79] : memref<512x512xbf16, #tpu.memory_space<vmem>>, vector<512x512xbf16>
    %cst_80 = arith.constant dense<0.000000e+00> : vector<14x512xf32>
    %87 = tpu.matmul %85, %86, %cst_80 {dimension_numbers = #tpu.dot_dimension_numbers<[1], [0], [0], [1], [0, 0, 1, 1], [], []>} : vector<14x512xbf16>, vector<512x512xbf16>, vector<14x512xf32> -> vector<14x512xf32>
    %88 = vector.broadcast %82 : vector<1x512xf32> to vector<14x512xf32>
    %89 = arith.addf %87, %88 : vector<14x512xf32>
    %cst_81 = arith.constant 0.000000e+00 : f32
    %90 = vector.broadcast %cst_81 : f32 to vector<14x512xf32>
    %91 = arith.maximumf %89, %90 : vector<14x512xf32>
    %92 = arith.truncf %91 : vector<14x512xf32> to vector<14x512xbf16>
    %c8_82 = arith.constant 8 : index
    %c0_83 = arith.constant 0 : index
    %93 = vector.load %arg13[%c8_82, %c0_83] : memref<32x512xbf16, #tpu.memory_space<vmem>>, vector<14x512xbf16>
    tpu.vector_store %arg13[%c8_82, %c0_83], %92 {strides = array<i32>} : memref<32x512xbf16, #tpu.memory_space<vmem>>, vector<14x512xbf16>,
    %c0_84 = arith.constant 0 : index
    %c3200 = arith.constant 3200 : index
    %94 = vector.load %arg8[%c0_84, %c3200] : memref<1x3328xf32, #tpu.memory_space<vmem>>, vector<1x128xf32>
    %c8_85 = arith.constant 8 : index
    %c0_86 = arith.constant 0 : index
    %95 = vector.load %arg13[%c8_85, %c0_86] : memref<32x512xbf16, #tpu.memory_space<vmem>>, vector<14x512xbf16>
    %c10_87 = arith.constant 10 : index
    %c0_88 = arith.constant 0 : index
    %96 = vector.load %arg13[%c10_87, %c0_88] : memref<32x512xbf16, #tpu.memory_space<vmem>>, vector<14x512xbf16>
    %97 = tpu.concatenate %95, %96 in 1 : vector<14x512xbf16>, vector<14x512xbf16> -> vector<14x1024xbf16>
    %c0_89 = arith.constant 0 : index
    %c0_90 = arith.constant 0 : index
    %98 = vector.load %arg7[%c0_89, %c0_90] : memref<1024x128xbf16, #tpu.memory_space<vmem>>, vector<1024x128xbf16>
    %cst_91 = arith.constant dense<0.000000e+00> : vector<14x128xf32>
    %99 = tpu.matmul %97, %98, %cst_91 {dimension_numbers = #tpu.dot_dimension_numbers<[1], [0], [0], [1], [0, 0, 1, 1], [], []>} : vector<14x1024xbf16>, vector<1024x128xbf16>, vector<14x128xf32> -> vector<14x128xf32>
    %100 = vector.broadcast %94 : vector<1x128xf32> to vector<14x128xf32>
    %101 = arith.addf %99, %100 : vector<14x128xf32>
    %102 = arith.negf %101 : vector<14x128xf32>
    %103 = math.exp %102 : vector<14x128xf32>
    %cst_92 = arith.constant 1.000000e+00 : f32
    %104 = vector.broadcast %cst_92 : f32 to vector<14x128xf32>
    %105 = arith.addf %104, %103 : vector<14x128xf32>
    %106 = arith.divf %104, %105 : vector<14x128xf32>
    %c0_93 = arith.constant 0 : index
    %c0_94 = arith.constant 0 : index
    %107 = vector.load %arg9[%c0_93, %c0_94] : memref<16x128xf32, #tpu.memory_space<vmem>>, vector<14x128xf32>
    tpu.vector_store %arg9[%c0_93, %c0_94], %106 {strides = array<i32>} : memref<16x128xf32, #tpu.memory_space<vmem>>, vector<14x128xf32>,
    return
  }
  func.func @transform_0(%arg0: i32) -> (i32, i32) {
    %c0_i32 = arith.constant 0 : i32
    %c0_i32_0 = arith.constant 0 : i32
    return %arg0, %c0_i32 : i32, i32
  }
  func.func @transform_1(%arg0: i32) -> (i32, i32) {
    %c0_i32 = arith.constant 0 : i32
    %c0_i32_0 = arith.constant 0 : i32
    %c0_i32_1 = arith.constant 0 : i32
    return %c0_i32, %c0_i32_0 : i32, i32
  }
  func.func @transform_2(%arg0: i32) -> (i32, i32) {
    %c0_i32 = arith.constant 0 : i32
    %c0_i32_0 = arith.constant 0 : i32
    %c0_i32_1 = arith.constant 0 : i32
    return %c0_i32, %c0_i32_0 : i32, i32
  }
  func.func @transform_3(%arg0: i32) -> (i32, i32) {
    %c0_i32 = arith.constant 0 : i32
    %c0_i32_0 = arith.constant 0 : i32
    %c0_i32_1 = arith.constant 0 : i32
    return %c0_i32, %c0_i32_0 : i32, i32
  }
  func.func @transform_4(%arg0: i32) -> (i32, i32) {
    %c0_i32 = arith.constant 0 : i32
    %c0_i32_0 = arith.constant 0 : i32
    %c0_i32_1 = arith.constant 0 : i32
    return %c0_i32, %c0_i32_0 : i32, i32
  }
  func.func @transform_5(%arg0: i32) -> (i32, i32) {
    %c0_i32 = arith.constant 0 : i32
    %c0_i32_0 = arith.constant 0 : i32
    %c0_i32_1 = arith.constant 0 : i32
    return %c0_i32, %c0_i32_0 : i32, i32
  }
  func.func @transform_6(%arg0: i32) -> (i32, i32) {
    %c0_i32 = arith.constant 0 : i32
    %c0_i32_0 = arith.constant 0 : i32
    %c0_i32_1 = arith.constant 0 : i32
    return %c0_i32, %c0_i32_0 : i32, i32
  }
  func.func @transform_7(%arg0: i32) -> (i32, i32) {
    %c0_i32 = arith.constant 0 : i32
    %c0_i32_0 = arith.constant 0 : i32
    %c0_i32_1 = arith.constant 0 : i32
    return %c0_i32, %c0_i32_0 : i32, i32
  }
  func.func @transform_8(%arg0: i32) -> (i32, i32) {
    %c0_i32 = arith.constant 0 : i32
    %c0_i32_0 = arith.constant 0 : i32
    return %arg0, %c0_i32 : i32, i32
  }
}

</mosaic_0001>

<llo_original>
// kernel: autoencoder_forward.1
$region0: #{autoencoder_forward.1}
  #allocation0 [shape = 'u32[]', space=smem, size = 0x4, offset = 0x4, fixed_abs, tag = 'smem constant byte address 0x4 - core index']
  #allocation1 [shape = 'u32[144,128]{1,0:T(1,128)}', space=vmem, size = 0x12000, scoped, tag = 'internal scratch']
  #allocation2 [shape = 'bf16[32,512]{1,0:T(16,128)(2,1)}', space=vmem, size = 0x8000, scoped, tag = 'scratch operand']
  #allocation3 [shape = 'bf16[32,256]{1,0:T(16,128)(2,1)}', space=vmem, size = 0x4000, scoped, tag = 'scratch operand']
  #allocation4 [shape = 'bf16[32,256]{1,0:T(16,128)(2,1)}', space=vmem, size = 0x4000, scoped, tag = 'scratch operand']
  #allocation5 [shape = 'bf16[32,512]{1,0:T(16,128)(2,1)}', space=vmem, size = 0x8000, scoped, tag = 'scratch operand']
  %s0 = inlined_call_operand.vmem [shape: bf16[32,128], index: 0, kind: input, shape index: {}]
  %s1 = inlined_call_operand.hbm [shape: bf16[256,512], index: 1, kind: input, shape index: {}]
  %s2 = inlined_call_operand.vmem [shape: bf16[1024,256], index: 2, kind: input, shape index: {}]
  %s3 = inlined_call_operand.vmem [shape: bf16[1792,64], index: 3, kind: input, shape index: {}]
  %s4 = inlined_call_operand.hbm [shape: bf16[64,1792], index: 4, kind: input, shape index: {}]
  %s5 = inlined_call_operand.vmem [shape: bf16[512,512], index: 5, kind: input, shape index: {}]
  %s6 = inlined_call_operand.hbm [shape: bf16[1024,128], index: 6, kind: input, shape index: {}]
  %s7 = inlined_call_operand.hbm [shape: f32[1,3328], index: 7, kind: input, shape index: {}]
  %s8 = inlined_call_operand.vmem [shape: f32[16,128], index: 8, kind: output, shape index: {}]
  %s9 = sld [smem:[#allocation0]]
  $region58: #{autoencoder_forward.1} parent=0
    _
  %s11 = ssub.s32 1, %s9
  %s12 = scalar_select 0, %s11, %s9
  $region1: #{autoencoder_forward.1} parent=0
    #allocation6 [shape = 'u8[262144]{0}', space=vmem, size = 0x40000, scoped, tag = 'input window, operand 1, single buffered']
    #allocation7 [shape = 's32[1]{0}', space=sflag, size = 0x4, scoped, tag = 'scoped memory for autoencoder_forward.1']
    #allocation8 [shape = 'u8[229376]{0}', space=vmem, size = 0x38000, scoped, tag = 'input window, operand 4, single buffered']
    #allocation9 [shape = 's32[1]{0}', space=sflag, size = 0x4, scoped, tag = 'scoped memory for autoencoder_forward.1']
    #allocation10 [shape = 'u8[262144]{0}', space=vmem, size = 0x40000, scoped, tag = 'input window, operand 6, single buffered']
    #allocation11 [shape = 'u8[13312]{0}', space=vmem, size = 0x3400, scoped, tag = 'input window, operand 7, single buffered']
    #allocation12 [shape = 's32[1]{0}', space=sflag, size = 0x4, scoped, tag = 'scoped memory for autoencoder_forward.1']
    %13 = vsyncpa [#allocation7], 0
    %14 = vsyncpa [#allocation9], 0
    %15 = vsyncpa [#allocation12], 0
    // Predicated region
    $region2: #{autoencoder_forward.1} parent=1 // pred_check
      _
    $region3: #{autoencoder_forward.1} parent=1 // pred_check_branch
      %17 = sbr.rel (0) target = $region5
    $region4: #{autoencoder_forward.1} parent=1 // pred_region
      _
    $region5: #{autoencoder_forward.1} parent=1 // pred_fallthru
      _
    // Predicated region
    $region6: #{autoencoder_forward.1} parent=1 // pred_check
      _
    $region7: #{autoencoder_forward.1} parent=1 // pred_check_branch
      %19 = sbr.rel (0) target = $region9
    $region8: #{autoencoder_forward.1} parent=1 // pred_region
      %s21 = ssub.s32 8192, 8192
      %22 = vsyncadd [#allocation7], %s21
      %s23 = sshll.u32 [#allocation6], 4
      %s24 = int_to_ptr.vmem [resolvable:$true] %s23
      %29 = dma.hbm_to_vmem [thread:$0]  %s1, 8192, %s24, [#allocation7], 256, 256, 16
    $region9: #{autoencoder_forward.1} parent=1 // pred_fallthru
      _
    // Predicated region
    $region10: #{autoencoder_forward.1} parent=1 // pred_check
      _
    $region11: #{autoencoder_forward.1} parent=1 // pred_check_branch
      %31 = sbr.rel (0) target = $region13
    $region12: #{autoencoder_forward.1} parent=1 // pred_region
      _
    $region13: #{autoencoder_forward.1} parent=1 // pred_fallthru
      _
    // Predicated region
    $region14: #{autoencoder_forward.1} parent=1 // pred_check
      _
    $region15: #{autoencoder_forward.1} parent=1 // pred_check_branch
      %33 = sbr.rel (0) target = $region17
    $region16: #{autoencoder_forward.1} parent=1 // pred_region
      _
    $region17: #{autoencoder_forward.1} parent=1 // pred_fallthru
      _
    // Predicated region
    $region18: #{autoencoder_forward.1} parent=1 // pred_check
      _
    $region19: #{autoencoder_forward.1} parent=1 // pred_check_branch
      %35 = sbr.rel (0) target = $region21
    $region20: #{autoencoder_forward.1} parent=1 // pred_region
      %s37 = ssub.s32 7168, 7168
      %38 = vsyncadd [#allocation9], %s37
      %s39 = sshll.u32 [#allocation8], 4
      %s40 = int_to_ptr.vmem [resolvable:$true] %s39
      %45 = dma.hbm_to_vmem [thread:$0]  %s4, 7168, %s40, [#allocation9], 896, 896, 56
    $region21: #{autoencoder_forward.1} parent=1 // pred_fallthru
      _
    // Predicated region
    $region22: #{autoencoder_forward.1} parent=1 // pred_check
      _
    $region23: #{autoencoder_forward.1} parent=1 // pred_check_branch
      %47 = sbr.rel (0) target = $region25
    $region24: #{autoencoder_forward.1} parent=1 // pred_region
      _
    $region25: #{autoencoder_forward.1} parent=1 // pred_fallthru
      _
    // Predicated region
    $region26: #{autoencoder_forward.1} parent=1 // pred_check
      _
    $region27: #{autoencoder_forward.1} parent=1 // pred_check_branch
      %49 = sbr.rel (0) target = $region29
    $region28: #{autoencoder_forward.1} parent=1 // pred_region
      %s51 = ssub.s32 8192, 8192
      %52 = vsyncadd [#allocation9], %s51
      %s53 = sshll.u32 [#allocation10], 4
      %s54 = int_to_ptr.vmem [resolvable:$true] %s53
      %59 = dma.hbm_to_vmem [thread:$0]  %s6, 8192, %s54, [#allocation9], 64, 64, 4
    $region29: #{autoencoder_forward.1} parent=1 // pred_fallthru
      _
    // Predicated region
    $region30: #{autoencoder_forward.1} parent=1 // pred_check
      _
    $region31: #{autoencoder_forward.1} parent=1 // pred_check_branch
      %61 = sbr.rel (0) target = $region33
    $region32: #{autoencoder_forward.1} parent=1 // pred_region
      %s63 = ssub.s32 416, 416
      %64 = vsyncadd [#allocation12], %s63
      %s66 = sshll.u32 [#allocation11], 4
      %s67 = int_to_ptr.vmem [resolvable:$true] %s66
      %69 = dma.hbm_to_vmem [thread:$0]  %s7, 416, %s67, [#allocation12]
    $region33: #{autoencoder_forward.1} parent=1 // pred_fallthru
      _
    // Predicated region
    $region34: #{autoencoder_forward.1} parent=1 // pred_check
      _
    $region35: #{autoencoder_forward.1} parent=1 // pred_check_branch
      %71 = sbr.rel (0) target = $region37
    $region36: #{autoencoder_forward.1} parent=1 // pred_region
      %72 = dma.done [#allocation7], 8192
    $region37: #{autoencoder_forward.1} parent=1 // pred_fallthru
      _
    // Predicated region
    $region38: #{autoencoder_forward.1} parent=1 // pred_check
      _
    $region39: #{autoencoder_forward.1} parent=1 // pred_check_branch
      %74 = sbr.rel (0) target = $region41
    $region40: #{autoencoder_forward.1} parent=1 // pred_region
      %75 = dma.done [#allocation9], 7168
    $region41: #{autoencoder_forward.1} parent=1 // pred_fallthru
      _
    // Predicated region
    $region42: #{autoencoder_forward.1} parent=1 // pred_check
      _
    $region43: #{autoencoder_forward.1} parent=1 // pred_check_branch
      %77 = sbr.rel (0) target = $region45
    $region44: #{autoencoder_forward.1} parent=1 // pred_region
      %78 = dma.done [#allocation9], 8192
    $region45: #{autoencoder_forward.1} parent=1 // pred_fallthru
      _
    // Predicated region
    $region46: #{autoencoder_forward.1} parent=1 // pred_check
      _
    $region47: #{autoencoder_forward.1} parent=1 // pred_check_branch
      %80 = sbr.rel (0) target = $region49
    $region48: #{autoencoder_forward.1} parent=1 // pred_region
      %81 = dma.done [#allocation12], 416
    $region49: #{autoencoder_forward.1} parent=1 // pred_fallthru
      _
    %83 = vst [vmem:[#allocation2] sm:$0xf] 0
    %84 = vst [vmem:[#allocation2 + $0x8] sm:$0xf] 0
    %85 = vst [vmem:[#allocation2 + $0x10] sm:$0xf] 0
    %86 = vst [vmem:[#allocation2 + $0x18] sm:$0xf] 0
    %87 = vst [vmem:[#allocation2 + $0x20] sm:$0xf8] 0
    %88 = vst [vmem:[#allocation2 + $0x28] sm:$0xf8] 0
    %89 = vst [vmem:[#allocation2 + $0x30] sm:$0xf8] 0
    %90 = vst [vmem:[#allocation2 + $0x38] sm:$0xf8] 0
    %91 = vst [vmem:[#allocation3] sm:$0xf] 0
    %92 = vst [vmem:[#allocation3 + $0x8] sm:$0xf] 0
    %93 = vst [vmem:[#allocation3 + $0x10] sm:$0xf8] 0
    %94 = vst [vmem:[#allocation3 + $0x18] sm:$0xf8] 0
    %95 = vst [vmem:[#allocation4] sm:$0xf] 0
    %96 = vst [vmem:[#allocation4 + $0x8] sm:$0xf] 0
    %97 = vst [vmem:[#allocation4 + $0x10] sm:$0xf8] 0
    %98 = vst [vmem:[#allocation4 + $0x18] sm:$0xf8] 0
    %99 = vst [vmem:[#allocation5] sm:$0xf] 0
    %100 = vst [vmem:[#allocation5 + $0x8] sm:$0xf] 0
    %101 = vst [vmem:[#allocation5 + $0x10] sm:$0xf] 0
    %102 = vst [vmem:[#allocation5 + $0x18] sm:$0xf] 0
    %103 = vst [vmem:[#allocation5 + $0x20] sm:$0xf8] 0
    %104 = vst [vmem:[#allocation5 + $0x28] sm:$0xf8] 0
    %105 = vst [vmem:[#allocation5 + $0x30] sm:$0xf8] 0
    %106 = vst [vmem:[#allocation5 + $0x38] sm:$0xf8] 0
    %v107 = vld [vmem:[#allocation11] sm:$0xf]
    %v108 = vld [vmem:[%s0] sm:$0x8]
    %v109 = vld [vmem:[%s0 + $0x4] sm:$0xf]
    %v110 = vld [vmem:[%s0 + $0x8] sm:$0x3]
    %v111 = vld [vmem:[%s0 + $0x8] sm:$0x7]
    %v115 = vunpack.c.l.b16 %v108
    %v116 = vunpack.c.l.b16 %v109
    %v117 = vunpack.c.l.b16 %v110
    %v118 = vpack.c.b16 %v116, %v115
    %v119 = vpack.c.b16 %v117, %v117
    %v121 = vunpack.c.l.b16 %v111
    %v122 = vpack.c.b16 %v121, %v116
    %v123 = vrot.slane %v122, 5
    %v124 = vld [vmem:[#allocation6] sm:$0xff]
    %v125 = vld [vmem:[#allocation6 + $0x8] sm:$0xff]
    %v126 = vld [vmem:[#allocation6 + $0x10] sm:$0xff]
    %v127 = vld [vmem:[#allocation6 + $0x18] sm:$0xff]
    %v128 = vld [vmem:[#allocation6 + $0x20] sm:$0xff]
    %v129 = vld [vmem:[#allocation6 + $0x28] sm:$0xff]
    %v130 = vld [vmem:[#allocation6 + $0x30] sm:$0xff]
    %v131 = vld [vmem:[#allocation6 + $0x38] sm:$0xff]
    %v132 = vld [vmem:[#allocation6 + $0x40] sm:$0xff]
    %v133 = vld [vmem:[#allocation6 + $0x48] sm:$0xff]
    %v134 = vld [vmem:[#allocation6 + $0x50] sm:$0xff]
    %v135 = vld [vmem:[#allocation6 + $0x58] sm:$0xff]
    %v136 = vld [vmem:[#allocation6 + $0x60] sm:$0xff]
    %v137 = vld [vmem:[#allocation6 + $0x68] sm:$0xff]
    %v138 = vld [vmem:[#allocation6 + $0x70] sm:$0xff]
    %v139 = vld [vmem:[#allocation6 + $0x78] sm:$0xff]
    %v140 = vld [vmem:[#allocation6 + $0x80] sm:$0xff]
    %v141 = vld [vmem:[#allocation6 + $0x88] sm:$0xff]
    %v142 = vld [vmem:[#allocation6 + $0x90] sm:$0xff]
    %v143 = vld [vmem:[#allocation6 + $0x98] sm:$0xff]
    %v144 = vld [vmem:[#allocation6 + $0xa0] sm:$0xff]
    %v145 = vld [vmem:[#allocation6 + $0xa8] sm:$0xff]
    %v146 = vld [vmem:[#allocation6 + $0xb0] sm:$0xff]
    %v147 = vld [vmem:[#allocation6 + $0xb8] sm:$0xff]
    %v148 = vld [vmem:[#allocation6 + $0xc0] sm:$0xff]
    %v149 = vld [vmem:[#allocation6 + $0xc8] sm:$0xff]
    %v150 = vld [vmem:[#allocation6 + $0xd0] sm:$0xff]
    %v151 = vld [vmem:[#allocation6 + $0xd8] sm:$0xff]
    %v152 = vld [vmem:[#allocation6 + $0xe0] sm:$0xff]
    %v153 = vld [vmem:[#allocation6 + $0xe8] sm:$0xff]
    %v154 = vld [vmem:[#allocation6 + $0xf0] sm:$0xff]
    %v155 = vld [vmem:[#allocation6 + $0xf8] sm:$0xff]
    %v156 = vld [vmem:[#allocation6 + $0x100] sm:$0xff]
    %v157 = vld [vmem:[#allocation6 + $0x108] sm:$0xff]
    %v158 = vld [vmem:[#allocation6 + $0x110] sm:$0xff]
    %v159 = vld [vmem:[#allocation6 + $0x118] sm:$0xff]
    %v160 = vld [vmem:[#allocation6 + $0x120] sm:$0xff]
    %v161 = vld [vmem:[#allocation6 + $0x128] sm:$0xff]
    %v162 = vld [vmem:[#allocation6 + $0x130] sm:$0xff]
    %v163 = vld [vmem:[#allocation6 + $0x138] sm:$0xff]
    %v164 = vld [vmem:[#allocation6 + $0x140] sm:$0xff]
    %v165 = vld [vmem:[#allocation6 + $0x148] sm:$0xff]
    %v166 = vld [vmem:[#allocation6 + $0x150] sm:$0xff]
    %v167 = vld [vmem:[#allocation6 + $0x158] sm:$0xff]
    %v168 = vld [vmem:[#allocation6 + $0x160] sm:$0xff]
    %v169 = vld [vmem:[#allocation6 + $0x168] sm:$0xff]
    %v170 = vld [vmem:[#allocation6 + $0x170] sm:$0xff]
    %v171 = vld [vmem:[#allocation6 + $0x178] sm:$0xff]
    %v172 = vld [vmem:[#allocation6 + $0x180] sm:$0xff]
    %v173 = vld [vmem:[#allocation6 + $0x188] sm:$0xff]
    %v174 = vld [vmem:[#allocation6 + $0x190] sm:$0xff]
    %v175 = vld [vmem:[#allocation6 + $0x198] sm:$0xff]
    %v176 = vld [vmem:[#allocation6 + $0x1a0] sm:$0xff]
    %v177 = vld [vmem:[#allocation6 + $0x1a8] sm:$0xff]
    %v178 = vld [vmem:[#allocation6 + $0x1b0] sm:$0xff]
    %v179 = vld [vmem:[#allocation6 + $0x1b8] sm:$0xff]
    %v180 = vld [vmem:[#allocation6 + $0x1c0] sm:$0xff]
    %v181 = vld [vmem:[#allocation6 + $0x1c8] sm:$0xff]
    %v182 = vld [vmem:[#allocation6 + $0x1d0] sm:$0xff]
    %v183 = vld [vmem:[#allocation6 + $0x1d8] sm:$0xff]
    %v184 = vld [vmem:[#allocation6 + $0x1e0] sm:$0xff]
    %v185 = vld [vmem:[#allocation6 + $0x1e8] sm:$0xff]
    %v186 = vld [vmem:[#allocation6 + $0x1f0] sm:$0xff]
    %v187 = vld [vmem:[#allocation6 + $0x1f8] sm:$0xff]
    %v189 = vlaneseq
    %v190 = vshrl.u32 %v189, 7
    %v191 = vsub.s32 0, %v190
    %v192 = vrot.slane %v107, %v191
    %v193 = vlaneseq
    %v194 = vshrl.u32 %v193, 7
    %v195 = vsub.s32 1, %v194
    %v196 = vrot.slane %v107, %v195
    %v197 = vlaneseq
    %v198 = vshrl.u32 %v197, 7
    %v199 = vsub.s32 2, %v198
    %v200 = vrot.slane %v107, %v199
    %v201 = vlaneseq
    %v202 = vshrl.u32 %v201, 7
    %v203 = vsub.s32 3, %v202
    %v204 = vrot.slane %v107, %v203
    %vm209 = vcmask 1044480
    %v210 = vrot.slane %v118, 3
    %v211 = vrot.slane %v119, 3
    %v212 = vsel %vm209, %v210, %v211
    %v213 = vrot.slane %v123, 3
    %v214 = vsel %vm209, %v213, %v213
    %v281 = vunpack.c.l.b16 %v124
    %v282 = vunpack.c.h.b16 %v124
    %v283 = vunpack.c.l.b16 %v125
    %v284 = vunpack.c.h.b16 %v125
    %v285 = vunpack.c.l.b16 %v126
    %v286 = vunpack.c.h.b16 %v126
    %v287 = vunpack.c.l.b16 %v127
    %v288 = vunpack.c.h.b16 %v127
    %v289 = vunpack.c.l.b16 %v128
    %v290 = vunpack.c.h.b16 %v128
    %v291 = vunpack.c.l.b16 %v129
    %v292 = vunpack.c.h.b16 %v129
    %v293 = vunpack.c.l.b16 %v130
    %v294 = vunpack.c.h.b16 %v130
    %v295 = vunpack.c.l.b16 %v131
    %v296 = vunpack.c.h.b16 %v131
    %v297 = vunpack.c.l.b16 %v132
    %v298 = vunpack.c.h.b16 %v132
    %v299 = vunpack.c.l.b16 %v133
    %v300 = vunpack.c.h.b16 %v133
    %v301 = vunpack.c.l.b16 %v134
    %v302 = vunpack.c.h.b16 %v134
    %v303 = vunpack.c.l.b16 %v135
    %v304 = vunpack.c.h.b16 %v135
    %v305 = vunpack.c.l.b16 %v136
    %v306 = vunpack.c.h.b16 %v136
    %v307 = vunpack.c.l.b16 %v137
    %v308 = vunpack.c.h.b16 %v137
    %v309 = vunpack.c.l.b16 %v138
    %v310 = vunpack.c.h.b16 %v138
    %v311 = vunpack.c.l.b16 %v139
    %v312 = vunpack.c.h.b16 %v139
    %v313 = vunpack.c.l.b16 %v140
    %v314 = vunpack.c.h.b16 %v140
    %v315 = vunpack.c.l.b16 %v141
    %v316 = vunpack.c.h.b16 %v141
    %v317 = vunpack.c.l.b16 %v142
    %v318 = vunpack.c.h.b16 %v142
    %v319 = vunpack.c.l.b16 %v143
    %v320 = vunpack.c.h.b16 %v143
    %v321 = vunpack.c.l.b16 %v144
    %v322 = vunpack.c.h.b16 %v144
    %v323 = vunpack.c.l.b16 %v145
    %v324 = vunpack.c.h.b16 %v145
    %v325 = vunpack.c.l.b16 %v146
    %v326 = vunpack.c.h.b16 %v146
    %v327 = vunpack.c.l.b16 %v147
    %v328 = vunpack.c.h.b16 %v147
    %v329 = vunpack.c.l.b16 %v148
    %v330 = vunpack.c.h.b16 %v148
    %v331 = vunpack.c.l.b16 %v149
    %v332 = vunpack.c.h.b16 %v149
    %v333 = vunpack.c.l.b16 %v150
    %v334 = vunpack.c.h.b16 %v150
    %v335 = vunpack.c.l.b16 %v151
    %v336 = vunpack.c.h.b16 %v151
    %v337 = vunpack.c.l.b16 %v152
    %v338 = vunpack.c.h.b16 %v152
    %v339 = vunpack.c.l.b16 %v153
    %v340 = vunpack.c.h.b16 %v153
    %v341 = vunpack.c.l.b16 %v154
    %v342 = vunpack.c.h.b16 %v154
    %v343 = vunpack.c.l.b16 %v155
    %v344 = vunpack.c.h.b16 %v155
    %v345 = vunpack.c.l.b16 %v156
    %v346 = vunpack.c.h.b16 %v156
    %v347 = vunpack.c.l.b16 %v157
    %v348 = vunpack.c.h.b16 %v157
    %v349 = vunpack.c.l.b16 %v158
    %v350 = vunpack.c.h.b16 %v158
    %v351 = vunpack.c.l.b16 %v159
    %v352 = vunpack.c.h.b16 %v159
    %v353 = vunpack.c.l.b16 %v160
    %v354 = vunpack.c.h.b16 %v160
    %v355 = vunpack.c.l.b16 %v161
    %v356 = vunpack.c.h.b16 %v161
    %v357 = vunpack.c.l.b16 %v162
    %v358 = vunpack.c.h.b16 %v162
    %v359 = vunpack.c.l.b16 %v163
    %v360 = vunpack.c.h.b16 %v163
    %v361 = vunpack.c.l.b16 %v164
    %v362 = vunpack.c.h.b16 %v164
    %v363 = vunpack.c.l.b16 %v165
    %v364 = vunpack.c.h.b16 %v165
    %v365 = vunpack.c.l.b16 %v166
    %v366 = vunpack.c.h.b16 %v166
    %v367 = vunpack.c.l.b16 %v167
    %v368 = vunpack.c.h.b16 %v167
    %v369 = vunpack.c.l.b16 %v168
    %v370 = vunpack.c.h.b16 %v168
    %v371 = vunpack.c.l.b16 %v169
    %v372 = vunpack.c.h.b16 %v169
    %v373 = vunpack.c.l.b16 %v170
    %v374 = vunpack.c.h.b16 %v170
    %v375 = vunpack.c.l.b16 %v171
    %v376 = vunpack.c.h.b16 %v171
    %v377 = vunpack.c.l.b16 %v172
    %v378 = vunpack.c.h.b16 %v172
    %v379 = vunpack.c.l.b16 %v173
    %v380 = vunpack.c.h.b16 %v173
    %v381 = vunpack.c.l.b16 %v174
    %v382 = vunpack.c.h.b16 %v174
    %v383 = vunpack.c.l.b16 %v175
    %v384 = vunpack.c.h.b16 %v175
    %v385 = vunpack.c.l.b16 %v176
    %v386 = vunpack.c.h.b16 %v176
    %v387 = vunpack.c.l.b16 %v177
    %v388 = vunpack.c.h.b16 %v177
    %v389 = vunpack.c.l.b16 %v178
    %v390 = vunpack.c.h.b16 %v178
    %v391 = vunpack.c.l.b16 %v179
    %v392 = vunpack.c.h.b16 %v179
    %v393 = vunpack.c.l.b16 %v180
    %v394 = vunpack.c.h.b16 %v180
    %v395 = vunpack.c.l.b16 %v181
    %v396 = vunpack.c.h.b16 %v181
    %v397 = vunpack.c.l.b16 %v182
    %v398 = vunpack.c.h.b16 %v182
    %v399 = vunpack.c.l.b16 %v183
    %v400 = vunpack.c.h.b16 %v183
    %v401 = vunpack.c.l.b16 %v184
    %v402 = vunpack.c.h.b16 %v184
    %v403 = vunpack.c.l.b16 %v185
    %v404 = vunpack.c.h.b16 %v185
    %v405 = vunpack.c.l.b16 %v186
    %v406 = vunpack.c.h.b16 %v186
    %v407 = vunpack.c.l.b16 %v187
    %v408 = vunpack.c.h.b16 %v187
    %v409 = vpack.c.b16 %v285, %v281
    %v410 = vpack.c.b16 %v286, %v282
    %v411 = vpack.c.b16 %v287, %v283
    %v412 = vpack.c.b16 %v288, %v284
    %v413 = vpack.c.b16 %v293, %v289
    %v414 = vpack.c.b16 %v294, %v290
    %v415 = vpack.c.b16 %v295, %v291
    %v416 = vpack.c.b16 %v296, %v292
    %v417 = vpack.c.b16 %v301, %v297
    %v418 = vpack.c.b16 %v302, %v298
    %v419 = vpack.c.b16 %v303, %v299
    %v420 = vpack.c.b16 %v304, %v300
    %v421 = vpack.c.b16 %v309, %v305
    %v422 = vpack.c.b16 %v310, %v306
    %v423 = vpack.c.b16 %v311, %v307
    %v424 = vpack.c.b16 %v312, %v308
    %v425 = vpack.c.b16 %v317, %v313
    %v426 = vpack.c.b16 %v318, %v314
    %v427 = vpack.c.b16 %v319, %v315
    %v428 = vpack.c.b16 %v320, %v316
    %v429 = vpack.c.b16 %v325, %v321
    %v430 = vpack.c.b16 %v326, %v322
    %v431 = vpack.c.b16 %v327, %v323
    %v432 = vpack.c.b16 %v328, %v324
    %v433 = vpack.c.b16 %v333, %v329
    %v434 = vpack.c.b16 %v334, %v330
    %v435 = vpack.c.b16 %v335, %v331
    %v436 = vpack.c.b16 %v336, %v332
    %v437 = vpack.c.b16 %v341, %v337
    %v438 = vpack.c.b16 %v342, %v338
    %v439 = vpack.c.b16 %v343, %v339
    %v440 = vpack.c.b16 %v344, %v340
    %v441 = vpack.c.b16 %v349, %v345
    %v442 = vpack.c.b16 %v350, %v346
    %v443 = vpack.c.b16 %v351, %v347
    %v444 = vpack.c.b16 %v352, %v348
    %v445 = vpack.c.b16 %v357, %v353
    %v446 = vpack.c.b16 %v358, %v354
    %v447 = vpack.c.b16 %v359, %v355
    %v448 = vpack.c.b16 %v360, %v356
    %v449 = vpack.c.b16 %v365, %v361
    %v450 = vpack.c.b16 %v366, %v362
    %v451 = vpack.c.b16 %v367, %v363
    %v452 = vpack.c.b16 %v368, %v364
    %v453 = vpack.c.b16 %v373, %v369
    %v454 = vpack.c.b16 %v374, %v370
    %v455 = vpack.c.b16 %v375, %v371
    %v456 = vpack.c.b16 %v376, %v372
    %v457 = vpack.c.b16 %v381, %v377
    %v458 = vpack.c.b16 %v382, %v378
    %v459 = vpack.c.b16 %v383, %v379
    %v460 = vpack.c.b16 %v384, %v380
    %v461 = vpack.c.b16 %v389, %v385
    %v462 = vpack.c.b16 %v390, %v386
    %v463 = vpack.c.b16 %v391, %v387
    %v464 = vpack.c.b16 %v392, %v388
    %v465 = vpack.c.b16 %v397, %v393
    %v466 = vpack.c.b16 %v398, %v394
    %v467 = vpack.c.b16 %v399, %v395
    %v468 = vpack.c.b16 %v400, %v396
    %v469 = vpack.c.b16 %v405, %v401
    %v470 = vpack.c.b16 %v406, %v402
    %v471 = vpack.c.b16 %v407, %v403
    %v472 = vpack.c.b16 %v408, %v404
    %537 = vmatprep.subr.bf16.mxu0 %v410
    %538 = vmatpush1.bf16.msra.mxu0 %v409
    %539 = vmatprep.subr.bf16.mxu0 %v414
    %540 = vmatpush1.bf16.msra.mxu0 %v413
    %541 = vmatprep.subr.bf16.mxu0 %v418
    %542 = vmatpush1.bf16.msra.mxu0 %v417
    %543 = vmatprep.subr.bf16.mxu0 %v422
    %544 = vmatpush1.bf16.msra.mxu0 %v421
    %545 = vmatprep.subr.bf16.mxu0 %v426
    %546 = vmatpush1.bf16.msra.mxu0 %v425
    %547 = vmatprep.subr.bf16.mxu0 %v430
    %548 = vmatpush1.bf16.msra.mxu0 %v429
    %549 = vmatprep.subr.bf16.mxu0 %v434
    %550 = vmatpush1.bf16.msra.mxu0 %v433
    %551 = vmatprep.subr.bf16.mxu0 %v438
    %552 = vmatpush1.bf16.msra.mxu0 %v437
    %553 = vmatprep.subr.bf16.mxu0 %v442
    %554 = vmatpush1.bf16.msra.mxu0 %v441
    %555 = vmatprep.subr.bf16.mxu0 %v446
    %556 = vmatpush1.bf16.msra.mxu0 %v445
    %557 = vmatprep.subr.bf16.mxu0 %v450
    %558 = vmatpush1.bf16.msra.mxu0 %v449
    %559 = vmatprep.subr.bf16.mxu0 %v454
    %560 = vmatpush1.bf16.msra.mxu0 %v453
    %561 = vmatprep.subr.bf16.mxu0 %v458
    %562 = vmatpush1.bf16.msra.mxu0 %v457
    %563 = vmatprep.subr.bf16.mxu0 %v462
    %564 = vmatpush1.bf16.msra.mxu0 %v461
    %565 = vmatprep.subr.bf16.mxu0 %v466
    %566 = vmatpush1.bf16.msra.mxu0 %v465
    %567 = vmatprep.subr.bf16.mxu0 %v470
    %568 = vmatpush1.bf16.msra.mxu0 %v469
    %569 = vmatprep.mubr.bf16.mxu0 %v214
    %570 = vmatmul.mubr.bf16.gmra.mrb[0].mxu0 %v212
    %v571 = vpop.f32.mrb[0].mxu0
    %v572 = vadd.f32 %v192, %v571
    %v573 = vpop.f32.mrb[0].mxu0
    %v574 = vadd.f32 %v196, %v573
    %v575 = vpop.f32.mrb[0].mxu0
    %v576 = vadd.f32 %v192, %v575
    %v577 = vpop.f32.mrb[0].mxu0
    %v578 = vadd.f32 %v196, %v577
    %579 = vdwg.mxu0
    %580 = vmatprep.subr.bf16.mxu0 %v412
    %581 = vmatpush1.bf16.msra.mxu0 %v411
    %582 = vmatprep.subr.bf16.mxu0 %v416
    %583 = vmatpush1.bf16.msra.mxu0 %v415
    %584 = vmatprep.subr.bf16.mxu0 %v420
    %585 = vmatpush1.bf16.msra.mxu0 %v419
    %586 = vmatprep.subr.bf16.mxu0 %v424
    %587 = vmatpush1.bf16.msra.mxu0 %v423
    %588 = vmatprep.subr.bf16.mxu0 %v428
    %589 = vmatpush1.bf16.msra.mxu0 %v427
    %590 = vmatprep.subr.bf16.mxu0 %v432
    %591 = vmatpush1.bf16.msra.mxu0 %v431
    %592 = vmatprep.subr.bf16.mxu0 %v436
    %593 = vmatpush1.bf16.msra.mxu0 %v435
    %594 = vmatprep.subr.bf16.mxu0 %v440
    %595 = vmatpush1.bf16.msra.mxu0 %v439
    %596 = vmatprep.subr.bf16.mxu0 %v444
    %597 = vmatpush1.bf16.msra.mxu0 %v443
    %598 = vmatprep.subr.bf16.mxu0 %v448
    %599 = vmatpush1.bf16.msra.mxu0 %v447
    %600 = vmatprep.subr.bf16.mxu0 %v452
    %601 = vmatpush1.bf16.msra.mxu0 %v451
    %602 = vmatprep.subr.bf16.mxu0 %v456
    %603 = vmatpush1.bf16.msra.mxu0 %v455
    %604 = vmatprep.subr.bf16.mxu0 %v460
    %605 = vmatpush1.bf16.msra.mxu0 %v459
    %606 = vmatprep.subr.bf16.mxu0 %v464
    %607 = vmatpush1.bf16.msra.mxu0 %v463
    %608 = vmatprep.subr.bf16.mxu0 %v468
    %609 = vmatpush1.bf16.msra.mxu0 %v467
    %610 = vmatprep.subr.bf16.mxu0 %v472
    %611 = vmatpush1.bf16.msra.mxu0 %v471
    %612 = vmatprep.mubr.bf16.mxu0 %v214
    %613 = vmatmul.mubr.bf16.gmra.mrb[0].mxu0 %v212
    %v614 = vpop.f32.mrb[0].mxu0
    %v615 = vadd.f32 %v200, %v614
    %v616 = vpop.f32.mrb[0].mxu0
    %v617 = vadd.f32 %v204, %v616
    %v618 = vpop.f32.mrb[0].mxu0
    %v619 = vadd.f32 %v200, %v618
    %v620 = vpop.f32.mrb[0].mxu0
    %v621 = vadd.f32 %v204, %v620
    %622 = vdwg.mxu0
    %v623 = vmax.f32 %v572, 0.0
    %v624 = vmax.f32 %v574, 0.0
    %v625 = vmax.f32 %v615, 0.0
    %v626 = vmax.f32 %v617, 0.0
    %v627 = vmax.f32 %v576, 0.0
    %v628 = vmax.f32 %v578, 0.0
    %v629 = vmax.f32 %v619, 0.0
    %v630 = vmax.f32 %v621, 0.0
    %v631 = vpack.c.bf16 %v627, %v623
    %v632 = vpack.c.bf16 %v628, %v624
    %v633 = vpack.c.bf16 %v629, %v625
    %v634 = vpack.c.bf16 %v630, %v626
    %v639 = vrot.slane %v631, 4
    %v640 = vrot.slane %v632, 4
    %v641 = vrot.slane %v633, 4
    %v642 = vrot.slane %v634, 4
    %647 = vst [vmem:[#allocation2] sm:$0xf0] %v639
    %648 = vst [vmem:[#allocation2 + $0x8] sm:$0xf0] %v640
    %649 = vst [vmem:[#allocation2 + $0x10] sm:$0xf0] %v641
    %650 = vst [vmem:[#allocation2 + $0x18] sm:$0xf0] %v642
    %651 = vst [vmem:[#allocation2 + $0x20] sm:$0x7] %v639
    %652 = vst [vmem:[#allocation2 + $0x28] sm:$0x7] %v640
    %653 = vst [vmem:[#allocation2 + $0x30] sm:$0x7] %v641
    %654 = vst [vmem:[#allocation2 + $0x38] sm:$0x7] %v642
    %v655 = vld [vmem:[#allocation11 + $0x4] sm:$0x3]
    %v656 = vld [vmem:[#allocation2] sm:$0xf8]
    %v657 = vld [vmem:[#allocation2 + $0x8] sm:$0xf8]
    %v658 = vld [vmem:[#allocation2 + $0x10] sm:$0xf8]
    %v659 = vld [vmem:[#allocation2 + $0x18] sm:$0xf8]
    %v660 = vld [vmem:[#allocation2 + $0x20] sm:$0x3]
    %v661 = vld [vmem:[#allocation2 + $0x28] sm:$0x3]
    %v662 = vld [vmem:[#allocation2 + $0x30] sm:$0x3]
    %v663 = vld [vmem:[#allocation2 + $0x38] sm:$0x3]
    %v664 = vld [vmem:[#allocation2] sm:$0xf0]
    %v665 = vld [vmem:[#allocation2 + $0x8] sm:$0xf0]
    %v666 = vld [vmem:[#allocation2 + $0x10] sm:$0xf0]
    %v667 = vld [vmem:[#allocation2 + $0x18] sm:$0xf0]
    %v668 = vld [vmem:[#allocation2 + $0x20] sm:$0x7]
    %v669 = vld [vmem:[#allocation2 + $0x28] sm:$0x7]
    %v670 = vld [vmem:[#allocation2 + $0x30] sm:$0x7]
    %v671 = vld [vmem:[#allocation2 + $0x38] sm:$0x7]
    %vm680 = vcmask 1046528
    %v681 = vrot.slane %v664, 1
    %v682 = vrot.slane %v668, 1
    %v683 = vsel %vm680, %v681, %v682
    %v684 = vrot.slane %v665, 1
    %v685 = vrot.slane %v669, 1
    %v686 = vsel %vm680, %v684, %v685
    %v687 = vrot.slane %v666, 1
    %v688 = vrot.slane %v670, 1
    %v689 = vsel %vm680, %v687, %v688
    %v690 = vrot.slane %v667, 1
    %v691 = vrot.slane %v671, 1
    %v692 = vsel %vm680, %v690, %v691
    %v693 = vld [vmem:[%s2] sm:$0xff]
    %v694 = vld [vmem:[%s2 + $0x8] sm:$0xff]
    %v695 = vld [vmem:[%s2 + $0x10] sm:$0xff]
    %v696 = vld [vmem:[%s2 + $0x18] sm:$0xff]
    %v697 = vld [vmem:[%s2 + $0x20] sm:$0xff]
    %v698 = vld [vmem:[%s2 + $0x28] sm:$0xff]
    %v699 = vld [vmem:[%s2 + $0x30] sm:$0xff]
    %v700 = vld [vmem:[%s2 + $0x38] sm:$0xff]
    %v701 = vld [vmem:[%s2 + $0x40] sm:$0xff]
    %v702 = vld [vmem:[%s2 + $0x48] sm:$0xff]
    %v703 = vld [vmem:[%s2 + $0x50] sm:$0xff]
    %v704 = vld [vmem:[%s2 + $0x58] sm:$0xff]
    %v705 = vld [vmem:[%s2 + $0x60] sm:$0xff]
    %v706 = vld [vmem:[%s2 + $0x68] sm:$0xff]
    %v707 = vld [vmem:[%s2 + $0x70] sm:$0xff]
    %v708 = vld [vmem:[%s2 + $0x78] sm:$0xff]
    %v709 = vld [vmem:[%s2 + $0x80] sm:$0xff]
    %v710 = vld [vmem:[%s2 + $0x88] sm:$0xff]
    %v711 = vld [vmem:[%s2 + $0x90] sm:$0xff]
    %v712 = vld [vmem:[%s2 + $0x98] sm:$0xff]
    %v713 = vld [vmem:[%s2 + $0xa0] sm:$0xff]
    %v714 = vld [vmem:[%s2 + $0xa8] sm:$0xff]
    %v715 = vld [vmem:[%s2 + $0xb0] sm:$0xff]
    %v716 = vld [vmem:[%s2 + $0xb8] sm:$0xff]
    %v717 = vld [vmem:[%s2 + $0xc0] sm:$0xff]
    %v718 = vld [vmem:[%s2 + $0xc8] sm:$0xff]
    %v719 = vld [vmem:[%s2 + $0xd0] sm:$0xff]
    %v720 = vld [vmem:[%s2 + $0xd8] sm:$0xff]
    %v721 = vld [vmem:[%s2 + $0xe0] sm:$0xff]
    %v722 = vld [vmem:[%s2 + $0xe8] sm:$0xff]
    %v723 = vld [vmem:[%s2 + $0xf0] sm:$0xff]
    %v724 = vld [vmem:[%s2 + $0xf8] sm:$0xff]
    %v725 = vld [vmem:[%s2 + $0x100] sm:$0xff]
    %v726 = vld [vmem:[%s2 + $0x108] sm:$0xff]
    %v727 = vld [vmem:[%s2 + $0x110] sm:$0xff]
    %v728 = vld [vmem:[%s2 + $0x118] sm:$0xff]
    %v729 = vld [vmem:[%s2 + $0x120] sm:$0xff]
    %v730 = vld [vmem:[%s2 + $0x128] sm:$0xff]
    %v731 = vld [vmem:[%s2 + $0x130] sm:$0xff]
    %v732 = vld [vmem:[%s2 + $0x138] sm:$0xff]
    %v733 = vld [vmem:[%s2 + $0x140] sm:$0xff]
    %v734 = vld [vmem:[%s2 + $0x148] sm:$0xff]
    %v735 = vld [vmem:[%s2 + $0x150] sm:$0xff]
    %v736 = vld [vmem:[%s2 + $0x158] sm:$0xff]
    %v737 = vld [vmem:[%s2 + $0x160] sm:$0xff]
    %v738 = vld [vmem:[%s2 + $0x168] sm:$0xff]
    %v739 = vld [vmem:[%s2 + $0x170] sm:$0xff]
    %v740 = vld [vmem:[%s2 + $0x178] sm:$0xff]
    %v741 = vld [vmem:[%s2 + $0x180] sm:$0xff]
    %v742 = vld [vmem:[%s2 + $0x188] sm:$0xff]
    %v743 = vld [vmem:[%s2 + $0x190] sm:$0xff]
    %v744 = vld [vmem:[%s2 + $0x198] sm:$0xff]
    %v745 = vld [vmem:[%s2 + $0x1a0] sm:$0xff]
    %v746 = vld [vmem:[%s2 + $0x1a8] sm:$0xff]
    %v747 = vld [vmem:[%s2 + $0x1b0] sm:$0xff]
    %v748 = vld [vmem:[%s2 + $0x1b8] sm:$0xff]
    %v749 = vld [vmem:[%s2 + $0x1c0] sm:$0xff]
    %v750 = vld [vmem:[%s2 + $0x1c8] sm:$0xff]
    %v751 = vld [vmem:[%s2 + $0x1d0] sm:$0xff]
    %v752 = vld [vmem:[%s2 + $0x1d8] sm:$0xff]
    %v753 = vld [vmem:[%s2 + $0x1e0] sm:$0xff]
    %v754 = vld [vmem:[%s2 + $0x1e8] sm:$0xff]
    %v755 = vld [vmem:[%s2 + $0x1f0] sm:$0xff]
    %v756 = vld [vmem:[%s2 + $0x1f8] sm:$0xff]
    %v757 = vld [vmem:[%s2 + $0x200] sm:$0xff]
    %v758 = vld [vmem:[%s2 + $0x208] sm:$0xff]
    %v759 = vld [vmem:[%s2 + $0x210] sm:$0xff]
    %v760 = vld [vmem:[%s2 + $0x218] sm:$0xff]
    %v761 = vld [vmem:[%s2 + $0x220] sm:$0xff]
    %v762 = vld [vmem:[%s2 + $0x228] sm:$0xff]
    %v763 = vld [vmem:[%s2 + $0x230] sm:$0xff]
    %v764 = vld [vmem:[%s2 + $0x238] sm:$0xff]
    %v765 = vld [vmem:[%s2 + $0x240] sm:$0xff]
    %v766 = vld [vmem:[%s2 + $0x248] sm:$0xff]
    %v767 = vld [vmem:[%s2 + $0x250] sm:$0xff]
    %v768 = vld [vmem:[%s2 + $0x258] sm:$0xff]
    %v769 = vld [vmem:[%s2 + $0x260] sm:$0xff]
    %v770 = vld [vmem:[%s2 + $0x268] sm:$0xff]
    %v771 = vld [vmem:[%s2 + $0x270] sm:$0xff]
    %v772 = vld [vmem:[%s2 + $0x278] sm:$0xff]
    %v773 = vld [vmem:[%s2 + $0x280] sm:$0xff]
    %v774 = vld [vmem:[%s2 + $0x288] sm:$0xff]
    %v775 = vld [vmem:[%s2 + $0x290] sm:$0xff]
    %v776 = vld [vmem:[%s2 + $0x298] sm:$0xff]
    %v777 = vld [vmem:[%s2 + $0x2a0] sm:$0xff]
    %v778 = vld [vmem:[%s2 + $0x2a8] sm:$0xff]
    %v779 = vld [vmem:[%s2 + $0x2b0] sm:$0xff]
    %v780 = vld [vmem:[%s2 + $0x2b8] sm:$0xff]
    %v781 = vld [vmem:[%s2 + $0x2c0] sm:$0xff]
    %v782 = vld [vmem:[%s2 + $0x2c8] sm:$0xff]
    %v783 = vld [vmem:[%s2 + $0x2d0] sm:$0xff]
    %v784 = vld [vmem:[%s2 + $0x2d8] sm:$0xff]
    %v785 = vld [vmem:[%s2 + $0x2e0] sm:$0xff]
    %v786 = vld [vmem:[%s2 + $0x2e8] sm:$0xff]
    %v787 = vld [vmem:[%s2 + $0x2f0] sm:$0xff]
    %v788 = vld [vmem:[%s2 + $0x2f8] sm:$0xff]
    %v789 = vld [vmem:[%s2 + $0x300] sm:$0xff]
    %v790 = vld [vmem:[%s2 + $0x308] sm:$0xff]
    %v791 = vld [vmem:[%s2 + $0x310] sm:$0xff]
    %v792 = vld [vmem:[%s2 + $0x318] sm:$0xff]
    %v793 = vld [vmem:[%s2 + $0x320] sm:$0xff]
    %v794 = vld [vmem:[%s2 + $0x328] sm:$0xff]
    %v795 = vld [vmem:[%s2 + $0x330] sm:$0xff]
    %v796 = vld [vmem:[%s2 + $0x338] sm:$0xff]
    %v797 = vld [vmem:[%s2 + $0x340] sm:$0xff]
    %v798 = vld [vmem:[%s2 + $0x348] sm:$0xff]
    %v799 = vld [vmem:[%s2 + $0x350] sm:$0xff]
    %v800 = vld [vmem:[%s2 + $0x358] sm:$0xff]
    %v801 = vld [vmem:[%s2 + $0x360] sm:$0xff]
    %v802 = vld [vmem:[%s2 + $0x368] sm:$0xff]
    %v803 = vld [vmem:[%s2 + $0x370] sm:$0xff]
    %v804 = vld [vmem:[%s2 + $0x378] sm:$0xff]
    %v805 = vld [vmem:[%s2 + $0x380] sm:$0xff]
    %v806 = vld [vmem:[%s2 + $0x388] sm:$0xff]
    %v807 = vld [vmem:[%s2 + $0x390] sm:$0xff]
    %v808 = vld [vmem:[%s2 + $0x398] sm:$0xff]
    %v809 = vld [vmem:[%s2 + $0x3a0] sm:$0xff]
    %v810 = vld [vmem:[%s2 + $0x3a8] sm:$0xff]
    %v811 = vld [vmem:[%s2 + $0x3b0] sm:$0xff]
    %v812 = vld [vmem:[%s2 + $0x3b8] sm:$0xff]
    %v813 = vld [vmem:[%s2 + $0x3c0] sm:$0xff]
    %v814 = vld [vmem:[%s2 + $0x3c8] sm:$0xff]
    %v815 = vld [vmem:[%s2 + $0x3d0] sm:$0xff]
    %v816 = vld [vmem:[%s2 + $0x3d8] sm:$0xff]
    %v817 = vld [vmem:[%s2 + $0x3e0] sm:$0xff]
    %v818 = vld [vmem:[%s2 + $0x3e8] sm:$0xff]
    %v819 = vld [vmem:[%s2 + $0x3f0] sm:$0xff]
    %v820 = vld [vmem:[%s2 + $0x3f8] sm:$0xff]
    %v822 = vlaneseq
    %v823 = vshrl.u32 %v822, 7
    %v824 = vsub.s32 0, %v823
    %v825 = vrot.slane %v655, %v824
    %v826 = vlaneseq
    %v827 = vshrl.u32 %v826, 7
    %v828 = vsub.s32 1, %v827
    %v829 = vrot.slane %v655, %v828
    %v840 = vrot.slane %v656, 3
    %v841 = vrot.slane %v660, 3
    %v842 = vsel %vm209, %v840, %v841
    %v843 = vrot.slane %v657, 3
    %v844 = vrot.slane %v661, 3
    %v845 = vsel %vm209, %v843, %v844
    %v846 = vrot.slane %v658, 3
    %v847 = vrot.slane %v662, 3
    %v848 = vsel %vm209, %v846, %v847
    %v849 = vrot.slane %v659, 3
    %v850 = vrot.slane %v663, 3
    %v851 = vsel %vm209, %v849, %v850
    %v852 = vrot.slane %v683, 3
    %v853 = vrot.slane %v682, 3
    %v854 = vsel %vm209, %v852, %v853
    %v855 = vrot.slane %v686, 3
    %v856 = vrot.slane %v685, 3
    %v857 = vsel %vm209, %v855, %v856
    %v858 = vrot.slane %v689, 3
    %v859 = vrot.slane %v688, 3
    %v860 = vsel %vm209, %v858, %v859
    %v861 = vrot.slane %v692, 3
    %v862 = vrot.slane %v691, 3
    %v863 = vsel %vm209, %v861, %v862
    %v1000 = vunpack.c.l.b16 %v693
    %v1001 = vunpack.c.h.b16 %v693
    %v1002 = vunpack.c.l.b16 %v694
    %v1003 = vunpack.c.h.b16 %v694
    %v1004 = vunpack.c.l.b16 %v695
    %v1005 = vunpack.c.h.b16 %v695
    %v1006 = vunpack.c.l.b16 %v696
    %v1007 = vunpack.c.h.b16 %v696
    %v1008 = vunpack.c.l.b16 %v697
    %v1009 = vunpack.c.h.b16 %v697
    %v1010 = vunpack.c.l.b16 %v698
    %v1011 = vunpack.c.h.b16 %v698
    %v1012 = vunpack.c.l.b16 %v699
    %v1013 = vunpack.c.h.b16 %v699
    %v1014 = vunpack.c.l.b16 %v700
    %v1015 = vunpack.c.h.b16 %v700
    %v1016 = vunpack.c.l.b16 %v701
    %v1017 = vunpack.c.h.b16 %v701
    %v1018 = vunpack.c.l.b16 %v702
    %v1019 = vunpack.c.h.b16 %v702
    %v1020 = vunpack.c.l.b16 %v703
    %v1021 = vunpack.c.h.b16 %v703
    %v1022 = vunpack.c.l.b16 %v704
    %v1023 = vunpack.c.h.b16 %v704
    %v1024 = vunpack.c.l.b16 %v705
    %v1025 = vunpack.c.h.b16 %v705
    %v1026 = vunpack.c.l.b16 %v706
    %v1027 = vunpack.c.h.b16 %v706
    %v1028 = vunpack.c.l.b16 %v707
    %v1029 = vunpack.c.h.b16 %v707
    %v1030 = vunpack.c.l.b16 %v708
    %v1031 = vunpack.c.h.b16 %v708
    %v1032 = vunpack.c.l.b16 %v709
    %v1033 = vunpack.c.h.b16 %v709
    %v1034 = vunpack.c.l.b16 %v710
    %v1035 = vunpack.c.h.b16 %v710
    %v1036 = vunpack.c.l.b16 %v711
    %v1037 = vunpack.c.h.b16 %v711
    %v1038 = vunpack.c.l.b16 %v712
    %v1039 = vunpack.c.h.b16 %v712
    %v1040 = vunpack.c.l.b16 %v713
    %v1041 = vunpack.c.h.b16 %v713
    %v1042 = vunpack.c.l.b16 %v714
    %v1043 = vunpack.c.h.b16 %v714
    %v1044 = vunpack.c.l.b16 %v715
    %v1045 = vunpack.c.h.b16 %v715
    %v1046 = vunpack.c.l.b16 %v716
    %v1047 = vunpack.c.h.b16 %v716
    %v1048 = vunpack.c.l.b16 %v717
    %v1049 = vunpack.c.h.b16 %v717
    %v1050 = vunpack.c.l.b16 %v718
    %v1051 = vunpack.c.h.b16 %v718
    %v1052 = vunpack.c.l.b16 %v719
    %v1053 = vunpack.c.h.b16 %v719
    %v1054 = vunpack.c.l.b16 %v720
    %v1055 = vunpack.c.h.b16 %v720
    %v1056 = vunpack.c.l.b16 %v721
    %v1057 = vunpack.c.h.b16 %v721
    %v1058 = vunpack.c.l.b16 %v722
    %v1059 = vunpack.c.h.b16 %v722
    %v1060 = vunpack.c.l.b16 %v723
    %v1061 = vunpack.c.h.b16 %v723
    %v1062 = vunpack.c.l.b16 %v724
    %v1063 = vunpack.c.h.b16 %v724
    %v1064 = vunpack.c.l.b16 %v725
    %v1065 = vunpack.c.h.b16 %v725
    %v1066 = vunpack.c.l.b16 %v726
    %v1067 = vunpack.c.h.b16 %v726
    %v1068 = vunpack.c.l.b16 %v727
    %v1069 = vunpack.c.h.b16 %v727
    %v1070 = vunpack.c.l.b16 %v728
    %v1071 = vunpack.c.h.b16 %v728
    %v1072 = vunpack.c.l.b16 %v729
    %v1073 = vunpack.c.h.b16 %v729
    %v1074 = vunpack.c.l.b16 %v730
    %v1075 = vunpack.c.h.b16 %v730
    %v1076 = vunpack.c.l.b16 %v731
    %v1077 = vunpack.c.h.b16 %v731
    %v1078 = vunpack.c.l.b16 %v732
    %v1079 = vunpack.c.h.b16 %v732
    %v1080 = vunpack.c.l.b16 %v733
    %v1081 = vunpack.c.h.b16 %v733
    %v1082 = vunpack.c.l.b16 %v734
    %v1083 = vunpack.c.h.b16 %v734
    %v1084 = vunpack.c.l.b16 %v735
    %v1085 = vunpack.c.h.b16 %v735
    %v1086 = vunpack.c.l.b16 %v736
    %v1087 = vunpack.c.h.b16 %v736
    %v1088 = vunpack.c.l.b16 %v737
    %v1089 = vunpack.c.h.b16 %v737
    %v1090 = vunpack.c.l.b16 %v738
    %v1091 = vunpack.c.h.b16 %v738
    %v1092 = vunpack.c.l.b16 %v739
    %v1093 = vunpack.c.h.b16 %v739
    %v1094 = vunpack.c.l.b16 %v740
    %v1095 = vunpack.c.h.b16 %v740
    %v1096 = vunpack.c.l.b16 %v741
    %v1097 = vunpack.c.h.b16 %v741
    %v1098 = vunpack.c.l.b16 %v742
    %v1099 = vunpack.c.h.b16 %v742
    %v1100 = vunpack.c.l.b16 %v743
    %v1101 = vunpack.c.h.b16 %v743
    %v1102 = vunpack.c.l.b16 %v744
    %v1103 = vunpack.c.h.b16 %v744
    %v1104 = vunpack.c.l.b16 %v745
    %v1105 = vunpack.c.h.b16 %v745
    %v1106 = vunpack.c.l.b16 %v746
    %v1107 = vunpack.c.h.b16 %v746
    %v1108 = vunpack.c.l.b16 %v747
    %v1109 = vunpack.c.h.b16 %v747
    %v1110 = vunpack.c.l.b16 %v748
    %v1111 = vunpack.c.h.b16 %v748
    %v1112 = vunpack.c.l.b16 %v749
    %v1113 = vunpack.c.h.b16 %v749
    %v1114 = vunpack.c.l.b16 %v750
    %v1115 = vunpack.c.h.b16 %v750
    %v1116 = vunpack.c.l.b16 %v751
    %v1117 = vunpack.c.h.b16 %v751
    %v1118 = vunpack.c.l.b16 %v752
    %v1119 = vunpack.c.h.b16 %v752
    %v1120 = vunpack.c.l.b16 %v753
    %v1121 = vunpack.c.h.b16 %v753
    %v1122 = vunpack.c.l.b16 %v754
    %v1123 = vunpack.c.h.b16 %v754
    %v1124 = vunpack.c.l.b16 %v755
    %v1125 = vunpack.c.h.b16 %v755
    %v1126 = vunpack.c.l.b16 %v756
    %v1127 = vunpack.c.h.b16 %v756
    %v1128 = vunpack.c.l.b16 %v757
    %v1129 = vunpack.c.h.b16 %v757
    %v1130 = vunpack.c.l.b16 %v758
    %v1131 = vunpack.c.h.b16 %v758
    %v1132 = vunpack.c.l.b16 %v759
    %v1133 = vunpack.c.h.b16 %v759
    %v1134 = vunpack.c.l.b16 %v760
    %v1135 = vunpack.c.h.b16 %v760
    %v1136 = vunpack.c.l.b16 %v761
    %v1137 = vunpack.c.h.b16 %v761
    %v1138 = vunpack.c.l.b16 %v762
    %v1139 = vunpack.c.h.b16 %v762
    %v1140 = vunpack.c.l.b16 %v763
    %v1141 = vunpack.c.h.b16 %v763
    %v1142 = vunpack.c.l.b16 %v764
    %v1143 = vunpack.c.h.b16 %v764
    %v1144 = vunpack.c.l.b16 %v765
    %v1145 = vunpack.c.h.b16 %v765
    %v1146 = vunpack.c.l.b16 %v766
    %v1147 = vunpack.c.h.b16 %v766
    %v1148 = vunpack.c.l.b16 %v767
    %v1149 = vunpack.c.h.b16 %v767
    %v1150 = vunpack.c.l.b16 %v768
    %v1151 = vunpack.c.h.b16 %v768
    %v1152 = vunpack.c.l.b16 %v769
    %v1153 = vunpack.c.h.b16 %v769
    %v1154 = vunpack.c.l.b16 %v770
    %v1155 = vunpack.c.h.b16 %v770
    %v1156 = vunpack.c.l.b16 %v771
    %v1157 = vunpack.c.h.b16 %v771
    %v1158 = vunpack.c.l.b16 %v772
    %v1159 = vunpack.c.h.b16 %v772
    %v1160 = vunpack.c.l.b16 %v773
    %v1161 = vunpack.c.h.b16 %v773
    %v1162 = vunpack.c.l.b16 %v774
    %v1163 = vunpack.c.h.b16 %v774
    %v1164 = vunpack.c.l.b16 %v775
    %v1165 = vunpack.c.h.b16 %v775
    %v1166 = vunpack.c.l.b16 %v776
    %v1167 = vunpack.c.h.b16 %v776
    %v1168 = vunpack.c.l.b16 %v777
    %v1169 = vunpack.c.h.b16 %v777
    %v1170 = vunpack.c.l.b16 %v778
    %v1171 = vunpack.c.h.b16 %v778
    %v1172 = vunpack.c.l.b16 %v779
    %v1173 = vunpack.c.h.b16 %v779
    %v1174 = vunpack.c.l.b16 %v780
    %v1175 = vunpack.c.h.b16 %v780
    %v1176 = vunpack.c.l.b16 %v781
    %v1177 = vunpack.c.h.b16 %v781
    %v1178 = vunpack.c.l.b16 %v782
    %v1179 = vunpack.c.h.b16 %v782
    %v1180 = vunpack.c.l.b16 %v783
    %v1181 = vunpack.c.h.b16 %v783
    %v1182 = vunpack.c.l.b16 %v784
    %v1183 = vunpack.c.h.b16 %v784
    %v1184 = vunpack.c.l.b16 %v785
    %v1185 = vunpack.c.h.b16 %v785
    %v1186 = vunpack.c.l.b16 %v786
    %v1187 = vunpack.c.h.b16 %v786
    %v1188 = vunpack.c.l.b16 %v787
    %v1189 = vunpack.c.h.b16 %v787
    %v1190 = vunpack.c.l.b16 %v788
    %v1191 = vunpack.c.h.b16 %v788
    %v1192 = vunpack.c.l.b16 %v789
    %v1193 = vunpack.c.h.b16 %v789
    %v1194 = vunpack.c.l.b16 %v790
    %v1195 = vunpack.c.h.b16 %v790
    %v1196 = vunpack.c.l.b16 %v791
    %v1197 = vunpack.c.h.b16 %v791
    %v1198 = vunpack.c.l.b16 %v792
    %v1199 = vunpack.c.h.b16 %v792
    %v1200 = vunpack.c.l.b16 %v793
    %v1201 = vunpack.c.h.b16 %v793
    %v1202 = vunpack.c.l.b16 %v794
    %v1203 = vunpack.c.h.b16 %v794
    %v1204 = vunpack.c.l.b16 %v795
    %v1205 = vunpack.c.h.b16 %v795
    %v1206 = vunpack.c.l.b16 %v796
    %v1207 = vunpack.c.h.b16 %v796
    %v1208 = vunpack.c.l.b16 %v797
    %v1209 = vunpack.c.h.b16 %v797
    %v1210 = vunpack.c.l.b16 %v798
    %v1211 = vunpack.c.h.b16 %v798
    %v1212 = vunpack.c.l.b16 %v799
    %v1213 = vunpack.c.h.b16 %v799
    %v1214 = vunpack.c.l.b16 %v800
    %v1215 = vunpack.c.h.b16 %v800
    %v1216 = vunpack.c.l.b16 %v801
    %v1217 = vunpack.c.h.b16 %v801
    %v1218 = vunpack.c.l.b16 %v802
    %v1219 = vunpack.c.h.b16 %v802
    %v1220 = vunpack.c.l.b16 %v803
    %v1221 = vunpack.c.h.b16 %v803
    %v1222 = vunpack.c.l.b16 %v804
    %v1223 = vunpack.c.h.b16 %v804
    %v1224 = vunpack.c.l.b16 %v805
    %v1225 = vunpack.c.h.b16 %v805
    %v1226 = vunpack.c.l.b16 %v806
    %v1227 = vunpack.c.h.b16 %v806
    %v1228 = vunpack.c.l.b16 %v807
    %v1229 = vunpack.c.h.b16 %v807
    %v1230 = vunpack.c.l.b16 %v808
    %v1231 = vunpack.c.h.b16 %v808
    %v1232 = vunpack.c.l.b16 %v809
    %v1233 = vunpack.c.h.b16 %v809
    %v1234 = vunpack.c.l.b16 %v810
    %v1235 = vunpack.c.h.b16 %v810
    %v1236 = vunpack.c.l.b16 %v811
    %v1237 = vunpack.c.h.b16 %v811
    %v1238 = vunpack.c.l.b16 %v812
    %v1239 = vunpack.c.h.b16 %v812
    %v1240 = vunpack.c.l.b16 %v813
    %v1241 = vunpack.c.h.b16 %v813
    %v1242 = vunpack.c.l.b16 %v814
    %v1243 = vunpack.c.h.b16 %v814
    %v1244 = vunpack.c.l.b16 %v815
    %v1245 = vunpack.c.h.b16 %v815
    %v1246 = vunpack.c.l.b16 %v816
    %v1247 = vunpack.c.h.b16 %v816
    %v1248 = vunpack.c.l.b16 %v817
    %v1249 = vunpack.c.h.b16 %v817
    %v1250 = vunpack.c.l.b16 %v818
    %v1251 = vunpack.c.h.b16 %v818
    %v1252 = vunpack.c.l.b16 %v819
    %v1253 = vunpack.c.h.b16 %v819
    %v1254 = vunpack.c.l.b16 %v820
    %v1255 = vunpack.c.h.b16 %v820
    %v1256 = vpack.c.b16 %v1002, %v1000
    %v1257 = vpack.c.b16 %v1003, %v1001
    %v1258 = vpack.c.b16 %v1006, %v1004
    %v1259 = vpack.c.b16 %v1007, %v1005
    %v1260 = vpack.c.b16 %v1010, %v1008
    %v1261 = vpack.c.b16 %v1011, %v1009
    %v1262 = vpack.c.b16 %v1014, %v1012
    %v1263 = vpack.c.b16 %v1015, %v1013
    %v1264 = vpack.c.b16 %v1018, %v1016
    %v1265 = vpack.c.b16 %v1019, %v1017
    %v1266 = vpack.c.b16 %v1022, %v1020
    %v1267 = vpack.c.b16 %v1023, %v1021
    %v1268 = vpack.c.b16 %v1026, %v1024
    %v1269 = vpack.c.b16 %v1027, %v1025
    %v1270 = vpack.c.b16 %v1030, %v1028
    %v1271 = vpack.c.b16 %v1031, %v1029
    %v1272 = vpack.c.b16 %v1034, %v1032
    %v1273 = vpack.c.b16 %v1035, %v1033
    %v1274 = vpack.c.b16 %v1038, %v1036
    %v1275 = vpack.c.b16 %v1039, %v1037
    %v1276 = vpack.c.b16 %v1042, %v1040
    %v1277 = vpack.c.b16 %v1043, %v1041
    %v1278 = vpack.c.b16 %v1046, %v1044
    %v1279 = vpack.c.b16 %v1047, %v1045
    %v1280 = vpack.c.b16 %v1050, %v1048
    %v1281 = vpack.c.b16 %v1051, %v1049
    %v1282 = vpack.c.b16 %v1054, %v1052
    %v1283 = vpack.c.b16 %v1055, %v1053
    %v1284 = vpack.c.b16 %v1058, %v1056
    %v1285 = vpack.c.b16 %v1059, %v1057
    %v1286 = vpack.c.b16 %v1062, %v1060
    %v1287 = vpack.c.b16 %v1063, %v1061
    %v1288 = vpack.c.b16 %v1066, %v1064
    %v1289 = vpack.c.b16 %v1067, %v1065
    %v1290 = vpack.c.b16 %v1070, %v1068
    %v1291 = vpack.c.b16 %v1071, %v1069
    %v1292 = vpack.c.b16 %v1074, %v1072
    %v1293 = vpack.c.b16 %v1075, %v1073
    %v1294 = vpack.c.b16 %v1078, %v1076
    %v1295 = vpack.c.b16 %v1079, %v1077
    %v1296 = vpack.c.b16 %v1082, %v1080
    %v1297 = vpack.c.b16 %v1083, %v1081
    %v1298 = vpack.c.b16 %v1086, %v1084
    %v1299 = vpack.c.b16 %v1087, %v1085
    %v1300 = vpack.c.b16 %v1090, %v1088
    %v1301 = vpack.c.b16 %v1091, %v1089
    %v1302 = vpack.c.b16 %v1094, %v1092
    %v1303 = vpack.c.b16 %v1095, %v1093
    %v1304 = vpack.c.b16 %v1098, %v1096
    %v1305 = vpack.c.b16 %v1099, %v1097
    %v1306 = vpack.c.b16 %v1102, %v1100
    %v1307 = vpack.c.b16 %v1103, %v1101
    %v1308 = vpack.c.b16 %v1106, %v1104
    %v1309 = vpack.c.b16 %v1107, %v1105
    %v1310 = vpack.c.b16 %v1110, %v1108
    %v1311 = vpack.c.b16 %v1111, %v1109
    %v1312 = vpack.c.b16 %v1114, %v1112
    %v1313 = vpack.c.b16 %v1115, %v1113
    %v1314 = vpack.c.b16 %v1118, %v1116
    %v1315 = vpack.c.b16 %v1119, %v1117
    %v1316 = vpack.c.b16 %v1122, %v1120
    %v1317 = vpack.c.b16 %v1123, %v1121
    %v1318 = vpack.c.b16 %v1126, %v1124
    %v1319 = vpack.c.b16 %v1127, %v1125
    %v1320 = vpack.c.b16 %v1130, %v1128
    %v1321 = vpack.c.b16 %v1131, %v1129
    %v1322 = vpack.c.b16 %v1134, %v1132
    %v1323 = vpack.c.b16 %v1135, %v1133
    %v1324 = vpack.c.b16 %v1138, %v1136
    %v1325 = vpack.c.b16 %v1139, %v1137
    %v1326 = vpack.c.b16 %v1142, %v1140
    %v1327 = vpack.c.b16 %v1143, %v1141
    %v1328 = vpack.c.b16 %v1146, %v1144
    %v1329 = vpack.c.b16 %v1147, %v1145
    %v1330 = vpack.c.b16 %v1150, %v1148
    %v1331 = vpack.c.b16 %v1151, %v1149
    %v1332 = vpack.c.b16 %v1154, %v1152
    %v1333 = vpack.c.b16 %v1155, %v1153
    %v1334 = vpack.c.b16 %v1158, %v1156
    %v1335 = vpack.c.b16 %v1159, %v1157
    %v1336 = vpack.c.b16 %v1162, %v1160
    %v1337 = vpack.c.b16 %v1163, %v1161
    %v1338 = vpack.c.b16 %v1166, %v1164
    %v1339 = vpack.c.b16 %v1167, %v1165
    %v1340 = vpack.c.b16 %v1170, %v1168
    %v1341 = vpack.c.b16 %v1171, %v1169
    %v1342 = vpack.c.b16 %v1174, %v1172
    %v1343 = vpack.c.b16 %v1175, %v1173
    %v1344 = vpack.c.b16 %v1178, %v1176
    %v1345 = vpack.c.b16 %v1179, %v1177
    %v1346 = vpack.c.b16 %v1182, %v1180
    %v1347 = vpack.c.b16 %v1183, %v1181
    %v1348 = vpack.c.b16 %v1186, %v1184
    %v1349 = vpack.c.b16 %v1187, %v1185
    %v1350 = vpack.c.b16 %v1190, %v1188
    %v1351 = vpack.c.b16 %v1191, %v1189
    %v1352 = vpack.c.b16 %v1194, %v1192
    %v1353 = vpack.c.b16 %v1195, %v1193
    %v1354 = vpack.c.b16 %v1198, %v1196
    %v1355 = vpack.c.b16 %v1199, %v1197
    %v1356 = vpack.c.b16 %v1202, %v1200
    %v1357 = vpack.c.b16 %v1203, %v1201
    %v1358 = vpack.c.b16 %v1206, %v1204
    %v1359 = vpack.c.b16 %v1207, %v1205
    %v1360 = vpack.c.b16 %v1210, %v1208
    %v1361 = vpack.c.b16 %v1211, %v1209
    %v1362 = vpack.c.b16 %v1214, %v1212
    %v1363 = vpack.c.b16 %v1215, %v1213
    %v1364 = vpack.c.b16 %v1218, %v1216
    %v1365 = vpack.c.b16 %v1219, %v1217
    %v1366 = vpack.c.b16 %v1222, %v1220
    %v1367 = vpack.c.b16 %v1223, %v1221
    %v1368 = vpack.c.b16 %v1226, %v1224
    %v1369 = vpack.c.b16 %v1227, %v1225
    %v1370 = vpack.c.b16 %v1230, %v1228
    %v1371 = vpack.c.b16 %v1231, %v1229
    %v1372 = vpack.c.b16 %v1234, %v1232
    %v1373 = vpack.c.b16 %v1235, %v1233
    %v1374 = vpack.c.b16 %v1238, %v1236
    %v1375 = vpack.c.b16 %v1239, %v1237
    %v1376 = vpack.c.b16 %v1242, %v1240
    %v1377 = vpack.c.b16 %v1243, %v1241
    %v1378 = vpack.c.b16 %v1246, %v1244
    %v1379 = vpack.c.b16 %v1247, %v1245
    %v1380 = vpack.c.b16 %v1250, %v1248
    %v1381 = vpack.c.b16 %v1251, %v1249
    %v1382 = vpack.c.b16 %v1254, %v1252
    %v1383 = vpack.c.b16 %v1255, %v1253
    %1512 = vmatprep.subr.bf16.mxu0 %v1257
    %1513 = vmatpush1.bf16.msra.mxu0 %v1256
    %1514 = vmatprep.subr.bf16.mxu0 %v1259
    %1515 = vmatpush1.bf16.msra.mxu0 %v1258
    %1516 = vmatprep.subr.bf16.mxu0 %v1261
    %1517 = vmatpush1.bf16.msra.mxu0 %v1260
    %1518 = vmatprep.subr.bf16.mxu0 %v1263
    %1519 = vmatpush1.bf16.msra.mxu0 %v1262
    %1520 = vmatprep.subr.bf16.mxu0 %v1265
    %1521 = vmatpush1.bf16.msra.mxu0 %v1264
    %1522 = vmatprep.subr.bf16.mxu0 %v1267
    %1523 = vmatpush1.bf16.msra.mxu0 %v1266
    %1524 = vmatprep.subr.bf16.mxu0 %v1269
    %1525 = vmatpush1.bf16.msra.mxu0 %v1268
    %1526 = vmatprep.subr.bf16.mxu0 %v1271
    %1527 = vmatpush1.bf16.msra.mxu0 %v1270
    %1528 = vmatprep.subr.bf16.mxu0 %v1273
    %1529 = vmatpush1.bf16.msra.mxu0 %v1272
    %1530 = vmatprep.subr.bf16.mxu0 %v1275
    %1531 = vmatpush1.bf16.msra.mxu0 %v1274
    %1532 = vmatprep.subr.bf16.mxu0 %v1277
    %1533 = vmatpush1.bf16.msra.mxu0 %v1276
    %1534 = vmatprep.subr.bf16.mxu0 %v1279
    %1535 = vmatpush1.bf16.msra.mxu0 %v1278
    %1536 = vmatprep.subr.bf16.mxu0 %v1281
    %1537 = vmatpush1.bf16.msra.mxu0 %v1280
    %1538 = vmatprep.subr.bf16.mxu0 %v1283
    %1539 = vmatpush1.bf16.msra.mxu0 %v1282
    %1540 = vmatprep.subr.bf16.mxu0 %v1285
    %1541 = vmatpush1.bf16.msra.mxu0 %v1284
    %1542 = vmatprep.subr.bf16.mxu0 %v1287
    %1543 = vmatpush1.bf16.msra.mxu0 %v1286
    %1544 = vmatprep.mubr.bf16.mxu0 %v845
    %1545 = vmatmul.mubr.bf16.gmra.mrb[0].mxu0 %v842
    %v1546 = vpop.f32.mrb[0].mxu0
    %v1547 = vadd.f32 %v825, %v1546
    %v1548 = vpop.f32.mrb[0].mxu0
    %v1549 = vadd.f32 %v829, %v1548
    %v1550 = vpop.f32.mrb[0].mxu0
    %v1551 = vadd.f32 %v825, %v1550
    %v1552 = vpop.f32.mrb[0].mxu0
    %v1553 = vadd.f32 %v829, %v1552
    %1554 = vdwg.mxu0
    %1555 = vmatprep.subr.bf16.mxu0 %v1289
    %1556 = vmatpush1.bf16.msra.mxu0 %v1288
    %1557 = vmatprep.subr.bf16.mxu0 %v1291
    %1558 = vmatpush1.bf16.msra.mxu0 %v1290
    %1559 = vmatprep.subr.bf16.mxu0 %v1293
    %1560 = vmatpush1.bf16.msra.mxu0 %v1292
    %1561 = vmatprep.subr.bf16.mxu0 %v1295
    %1562 = vmatpush1.bf16.msra.mxu0 %v1294
    %1563 = vmatprep.subr.bf16.mxu0 %v1297
    %1564 = vmatpush1.bf16.msra.mxu0 %v1296
    %1565 = vmatprep.subr.bf16.mxu0 %v1299
    %1566 = vmatpush1.bf16.msra.mxu0 %v1298
    %1567 = vmatprep.subr.bf16.mxu0 %v1301
    %1568 = vmatpush1.bf16.msra.mxu0 %v1300
    %1569 = vmatprep.subr.bf16.mxu0 %v1303
    %1570 = vmatpush1.bf16.msra.mxu0 %v1302
    %1571 = vmatprep.subr.bf16.mxu0 %v1305
    %1572 = vmatpush1.bf16.msra.mxu0 %v1304
    %1573 = vmatprep.subr.bf16.mxu0 %v1307
    %1574 = vmatpush1.bf16.msra.mxu0 %v1306
    %1575 = vmatprep.subr.bf16.mxu0 %v1309
    %1576 = vmatpush1.bf16.msra.mxu0 %v1308
    %1577 = vmatprep.subr.bf16.mxu0 %v1311
    %1578 = vmatpush1.bf16.msra.mxu0 %v1310
    %1579 = vmatprep.subr.bf16.mxu0 %v1313
    %1580 = vmatpush1.bf16.msra.mxu0 %v1312
    %1581 = vmatprep.subr.bf16.mxu0 %v1315
    %1582 = vmatpush1.bf16.msra.mxu0 %v1314
    %1583 = vmatprep.subr.bf16.mxu0 %v1317
    %1584 = vmatpush1.bf16.msra.mxu0 %v1316
    %1585 = vmatprep.subr.bf16.mxu0 %v1319
    %1586 = vmatpush1.bf16.msra.mxu0 %v1318
    %1587 = vmatprep.mubr.bf16.mxu0 %v851
    %1588 = vmatmul.mubr.bf16.gmra.mrb[0].mxu0 %v848
    %v1589 = vpop.f32.mrb[0].mxu0
    %v1590 = vadd.f32 %v1547, %v1589
    %v1591 = vpop.f32.mrb[0].mxu0
    %v1592 = vadd.f32 %v1549, %v1591
    %v1593 = vpop.f32.mrb[0].mxu0
    %v1594 = vadd.f32 %v1551, %v1593
    %v1595 = vpop.f32.mrb[0].mxu0
    %v1596 = vadd.f32 %v1553, %v1595
    %1597 = vdwg.mxu0
    %1598 = vmatprep.subr.bf16.mxu0 %v1321
    %1599 = vmatpush1.bf16.msra.mxu0 %v1320
    %1600 = vmatprep.subr.bf16.mxu0 %v1323
    %1601 = vmatpush1.bf16.msra.mxu0 %v1322
    %1602 = vmatprep.subr.bf16.mxu0 %v1325
    %1603 = vmatpush1.bf16.msra.mxu0 %v1324
    %1604 = vmatprep.subr.bf16.mxu0 %v1327
    %1605 = vmatpush1.bf16.msra.mxu0 %v1326
    %1606 = vmatprep.subr.bf16.mxu0 %v1329
    %1607 = vmatpush1.bf16.msra.mxu0 %v1328
    %1608 = vmatprep.subr.bf16.mxu0 %v1331
    %1609 = vmatpush1.bf16.msra.mxu0 %v1330
    %1610 = vmatprep.subr.bf16.mxu0 %v1333
    %1611 = vmatpush1.bf16.msra.mxu0 %v1332
    %1612 = vmatprep.subr.bf16.mxu0 %v1335
    %1613 = vmatpush1.bf16.msra.mxu0 %v1334
    %1614 = vmatprep.subr.bf16.mxu0 %v1337
    %1615 = vmatpush1.bf16.msra.mxu0 %v1336
    %1616 = vmatprep.subr.bf16.mxu0 %v1339
    %1617 = vmatpush1.bf16.msra.mxu0 %v1338
    %1618 = vmatprep.subr.bf16.mxu0 %v1341
    %1619 = vmatpush1.bf16.msra.mxu0 %v1340
    %1620 = vmatprep.subr.bf16.mxu0 %v1343
    %1621 = vmatpush1.bf16.msra.mxu0 %v1342
    %1622 = vmatprep.subr.bf16.mxu0 %v1345
    %1623 = vmatpush1.bf16.msra.mxu0 %v1344
    %1624 = vmatprep.subr.bf16.mxu0 %v1347
    %1625 = vmatpush1.bf16.msra.mxu0 %v1346
    %1626 = vmatprep.subr.bf16.mxu0 %v1349
    %1627 = vmatpush1.bf16.msra.mxu0 %v1348
    %1628 = vmatprep.subr.bf16.mxu0 %v1351
    %1629 = vmatpush1.bf16.msra.mxu0 %v1350
    %1630 = vmatprep.mubr.bf16.mxu0 %v857
    %1631 = vmatmul.mubr.bf16.gmra.mrb[0].mxu0 %v854
    %v1632 = vpop.f32.mrb[0].mxu0
    %v1633 = vadd.f32 %v1590, %v1632
    %v1634 = vpop.f32.mrb[0].mxu0
    %v1635 = vadd.f32 %v1592, %v1634
    %v1636 = vpop.f32.mrb[0].mxu0
    %v1637 = vadd.f32 %v1594, %v1636
    %v1638 = vpop.f32.mrb[0].mxu0
    %v1639 = vadd.f32 %v1596, %v1638
    %1640 = vdwg.mxu0
    %1641 = vmatprep.subr.bf16.mxu0 %v1353
    %1642 = vmatpush1.bf16.msra.mxu0 %v1352
    %1643 = vmatprep.subr.bf16.mxu0 %v1355
    %1644 = vmatpush1.bf16.msra.mxu0 %v1354
    %1645 = vmatprep.subr.bf16.mxu0 %v1357
    %1646 = vmatpush1.bf16.msra.mxu0 %v1356
    %1647 = vmatprep.subr.bf16.mxu0 %v1359
    %1648 = vmatpush1.bf16.msra.mxu0 %v1358
    %1649 = vmatprep.subr.bf16.mxu0 %v1361
    %1650 = vmatpush1.bf16.msra.mxu0 %v1360
    %1651 = vmatprep.subr.bf16.mxu0 %v1363
    %1652 = vmatpush1.bf16.msra.mxu0 %v1362
    %1653 = vmatprep.subr.bf16.mxu0 %v1365
    %1654 = vmatpush1.bf16.msra.mxu0 %v1364
    %1655 = vmatprep.subr.bf16.mxu0 %v1367
    %1656 = vmatpush1.bf16.msra.mxu0 %v1366
    %1657 = vmatprep.subr.bf16.mxu0 %v1369
    %1658 = vmatpush1.bf16.msra.mxu0 %v1368
    %1659 = vmatprep.subr.bf16.mxu0 %v1371
    %1660 = vmatpush1.bf16.msra.mxu0 %v1370
    %1661 = vmatprep.subr.bf16.mxu0 %v1373
    %1662 = vmatpush1.bf16.msra.mxu0 %v1372
    %1663 = vmatprep.subr.bf16.mxu0 %v1375
    %1664 = vmatpush1.bf16.msra.mxu0 %v1374
    %1665 = vmatprep.subr.bf16.mxu0 %v1377
    %1666 = vmatpush1.bf16.msra.mxu0 %v1376
    %1667 = vmatprep.subr.bf16.mxu0 %v1379
    %1668 = vmatpush1.bf16.msra.mxu0 %v1378
    %1669 = vmatprep.subr.bf16.mxu0 %v1381
    %1670 = vmatpush1.bf16.msra.mxu0 %v1380
    %1671 = vmatprep.subr.bf16.mxu0 %v1383
    %1672 = vmatpush1.bf16.msra.mxu0 %v1382
    %1673 = vmatprep.mubr.bf16.mxu0 %v863
    %1674 = vmatmul.mubr.bf16.gmra.mrb[0].mxu0 %v860
    %v1675 = vpop.f32.mrb[0].mxu0
    %v1676 = vadd.f32 %v1633, %v1675
    %v1677 = vpop.f32.mrb[0].mxu0
    %v1678 = vadd.f32 %v1635, %v1677
    %v1679 = vpop.f32.mrb[0].mxu0
    %v1680 = vadd.f32 %v1637, %v1679
    %v1681 = vpop.f32.mrb[0].mxu0
    %v1682 = vadd.f32 %v1639, %v1681
    %1683 = vdwg.mxu0
    %v1684 = vmax.f32 %v1676, 0.0
    %v1685 = vmax.f32 %v1678, 0.0
    %v1686 = vmax.f32 %v1680, 0.0
    %v1687 = vmax.f32 %v1682, 0.0
    %v1688 = vpack.c.bf16 %v1686, %v1684
    %v1689 = vpack.c.bf16 %v1687, %v1685
    %v1692 = vrot.slane %v1688, 4
    %v1693 = vrot.slane %v1689, 4
    %1696 = vst [vmem:[#allocation3] sm:$0xf0] %v1692
    %1697 = vst [vmem:[#allocation3 + $0x8] sm:$0xf0] %v1693
    %1698 = vst [vmem:[#allocation3 + $0x10] sm:$0x7] %v1692
    %1699 = vst [vmem:[#allocation3 + $0x18] sm:$0x7] %v1693
    %v1700 = vld [vmem:[#allocation3] sm:$0x10]
    %v1701 = vld [vmem:[#allocation3 + $0x8] sm:$0x10]
    %v1702 = vld [vmem:[#allocation3] sm:$0x20]
    %v1703 = vld [vmem:[#allocation3 + $0x8] sm:$0x20]
    %v1704 = vld [vmem:[#allocation3] sm:$0x40]
    %v1705 = vld [vmem:[#allocation3 + $0x8] sm:$0x40]
    %v1706 = vld [vmem:[#allocation3] sm:$0x80]
    %v1707 = vld [vmem:[#allocation3 + $0x8] sm:$0x80]
    %v1708 = vld [vmem:[#allocation3 + $0x10] sm:$0x1]
    %v1709 = vld [vmem:[#allocation3 + $0x18] sm:$0x1]
    %v1710 = vld [vmem:[#allocation3 + $0x10] sm:$0x2]
    %v1711 = vld [vmem:[#allocation3 + $0x18] sm:$0x2]
    %v1712 = vld [vmem:[#allocation3 + $0x10] sm:$0x4]
    %v1713 = vld [vmem:[#allocation3 + $0x18] sm:$0x4]
    %v1716 = vrot.slane %v1702, 1
    %v1717 = vrot.slane %v1703, 1
    %v1720 = vrot.slane %v1704, 2
    %v1721 = vrot.slane %v1705, 2
    %v1724 = vrot.slane %v1706, 3
    %v1725 = vrot.slane %v1707, 3
    %v1728 = vrot.slane %v1708, 4
    %v1729 = vrot.slane %v1709, 4
    %v1732 = vrot.slane %v1710, 5
    %v1733 = vrot.slane %v1711, 5
    %v1736 = vrot.slane %v1712, 6
    %v1737 = vrot.slane %v1713, 6
    %v1738 = vld [vmem:[%s3] sm:$0xf]
    %v1739 = vld [vmem:[%s3 + $0x4] sm:$0xf]
    %v1740 = vld [vmem:[%s3 + $0x8] sm:$0xf]
    %v1741 = vld [vmem:[%s3 + $0xc] sm:$0xf]
    %v1742 = vld [vmem:[%s3 + $0x10] sm:$0xf]
    %v1743 = vld [vmem:[%s3 + $0x14] sm:$0xf]
    %v1744 = vld [vmem:[%s3 + $0x18] sm:$0xf]
    %v1745 = vld [vmem:[%s3 + $0x1c] sm:$0xf]
    %v1746 = vld [vmem:[%s3 + $0x20] sm:$0xf]
    %v1747 = vld [vmem:[%s3 + $0x24] sm:$0xf]
    %v1748 = vld [vmem:[%s3 + $0x28] sm:$0xf]
    %v1749 = vld [vmem:[%s3 + $0x2c] sm:$0xf]
    %v1750 = vld [vmem:[%s3 + $0x30] sm:$0xf]
    %v1751 = vld [vmem:[%s3 + $0x34] sm:$0xf]
    %v1752 = vld [vmem:[%s3 + $0x38] sm:$0xf]
    %v1753 = vld [vmem:[%s3 + $0x3c] sm:$0xf]
    %v1754 = vld [vmem:[%s3 + $0x40] sm:$0xf]
    %v1755 = vld [vmem:[%s3 + $0x44] sm:$0xf]
    %v1756 = vld [vmem:[%s3 + $0x48] sm:$0xf]
    %v1757 = vld [vmem:[%s3 + $0x4c] sm:$0xf]
    %v1758 = vld [vmem:[%s3 + $0x50] sm:$0xf]
    %v1759 = vld [vmem:[%s3 + $0x54] sm:$0xf]
    %v1760 = vld [vmem:[%s3 + $0x58] sm:$0xf]
    %v1761 = vld [vmem:[%s3 + $0x5c] sm:$0xf]
    %v1762 = vld [vmem:[%s3 + $0x60] sm:$0xf]
    %v1763 = vld [vmem:[%s3 + $0x64] sm:$0xf]
    %v1764 = vld [vmem:[%s3 + $0x68] sm:$0xf]
    %v1765 = vld [vmem:[%s3 + $0x6c] sm:$0xf]
    %v1766 = vld [vmem:[%s3 + $0x70] sm:$0xf]
    %v1767 = vld [vmem:[%s3 + $0x74] sm:$0xf]
    %v1768 = vld [vmem:[%s3 + $0x78] sm:$0xf]
    %v1769 = vld [vmem:[%s3 + $0x7c] sm:$0xf]
    %v1770 = vld [vmem:[%s3 + $0x80] sm:$0xf]
    %v1771 = vld [vmem:[%s3 + $0x84] sm:$0xf]
    %v1772 = vld [vmem:[%s3 + $0x88] sm:$0xf]
    %v1773 = vld [vmem:[%s3 + $0x8c] sm:$0xf]
    %v1774 = vld [vmem:[%s3 + $0x90] sm:$0xf]
    %v1775 = vld [vmem:[%s3 + $0x94] sm:$0xf]
    %v1776 = vld [vmem:[%s3 + $0x98] sm:$0xf]
    %v1777 = vld [vmem:[%s3 + $0x9c] sm:$0xf]
    %v1778 = vld [vmem:[%s3 + $0xa0] sm:$0xf]
    %v1779 = vld [vmem:[%s3 + $0xa4] sm:$0xf]
    %v1780 = vld [vmem:[%s3 + $0xa8] sm:$0xf]
    %v1781 = vld [vmem:[%s3 + $0xac] sm:$0xf]
    %v1782 = vld [vmem:[%s3 + $0xb0] sm:$0xf]
    %v1783 = vld [vmem:[%s3 + $0xb4] sm:$0xf]
    %v1784 = vld [vmem:[%s3 + $0xb8] sm:$0xf]
    %v1785 = vld [vmem:[%s3 + $0xbc] sm:$0xf]
    %v1786 = vld [vmem:[%s3 + $0xc0] sm:$0xf]
    %v1787 = vld [vmem:[%s3 + $0xc4] sm:$0xf]
    %v1788 = vld [vmem:[%s3 + $0xc8] sm:$0xf]
    %v1789 = vld [vmem:[%s3 + $0xcc] sm:$0xf]
    %v1790 = vld [vmem:[%s3 + $0xd0] sm:$0xf]
    %v1791 = vld [vmem:[%s3 + $0xd4] sm:$0xf]
    %v1792 = vld [vmem:[%s3 + $0xd8] sm:$0xf]
    %v1793 = vld [vmem:[%s3 + $0xdc] sm:$0xf]
    %v1794 = vld [vmem:[%s3 + $0xe0] sm:$0xf]
    %v1795 = vld [vmem:[%s3 + $0xe4] sm:$0xf]
    %v1796 = vld [vmem:[%s3 + $0xe8] sm:$0xf]
    %v1797 = vld [vmem:[%s3 + $0xec] sm:$0xf]
    %v1798 = vld [vmem:[%s3 + $0xf0] sm:$0xf]
    %v1799 = vld [vmem:[%s3 + $0xf4] sm:$0xf]
    %v1800 = vld [vmem:[%s3 + $0xf8] sm:$0xf]
    %v1801 = vld [vmem:[%s3 + $0xfc] sm:$0xf]
    %v1802 = vld [vmem:[%s3 + $0x100] sm:$0xf]
    %v1803 = vld [vmem:[%s3 + $0x104] sm:$0xf]
    %v1804 = vld [vmem:[%s3 + $0x108] sm:$0xf]
    %v1805 = vld [vmem:[%s3 + $0x10c] sm:$0xf]
    %v1806 = vld [vmem:[%s3 + $0x110] sm:$0xf]
    %v1807 = vld [vmem:[%s3 + $0x114] sm:$0xf]
    %v1808 = vld [vmem:[%s3 + $0x118] sm:$0xf]
    %v1809 = vld [vmem:[%s3 + $0x11c] sm:$0xf]
    %v1810 = vld [vmem:[%s3 + $0x120] sm:$0xf]
    %v1811 = vld [vmem:[%s3 + $0x124] sm:$0xf]
    %v1812 = vld [vmem:[%s3 + $0x128] sm:$0xf]
    %v1813 = vld [vmem:[%s3 + $0x12c] sm:$0xf]
    %v1814 = vld [vmem:[%s3 + $0x130] sm:$0xf]
    %v1815 = vld [vmem:[%s3 + $0x134] sm:$0xf]
    %v1816 = vld [vmem:[%s3 + $0x138] sm:$0xf]
    %v1817 = vld [vmem:[%s3 + $0x13c] sm:$0xf]
    %v1818 = vld [vmem:[%s3 + $0x140] sm:$0xf]
    %v1819 = vld [vmem:[%s3 + $0x144] sm:$0xf]
    %v1820 = vld [vmem:[%s3 + $0x148] sm:$0xf]
    %v1821 = vld [vmem:[%s3 + $0x14c] sm:$0xf]
    %v1822 = vld [vmem:[%s3 + $0x150] sm:$0xf]
    %v1823 = vld [vmem:[%s3 + $0x154] sm:$0xf]
    %v1824 = vld [vmem:[%s3 + $0x158] sm:$0xf]
    %v1825 = vld [vmem:[%s3 + $0x15c] sm:$0xf]
    %v1826 = vld [vmem:[%s3 + $0x160] sm:$0xf]
    %v1827 = vld [vmem:[%s3 + $0x164] sm:$0xf]
    %v1828 = vld [vmem:[%s3 + $0x168] sm:$0xf]
    %v1829 = vld [vmem:[%s3 + $0x16c] sm:$0xf]
    %v1830 = vld [vmem:[%s3 + $0x170] sm:$0xf]
    %v1831 = vld [vmem:[%s3 + $0x174] sm:$0xf]
    %v1832 = vld [vmem:[%s3 + $0x178] sm:$0xf]
    %v1833 = vld [vmem:[%s3 + $0x17c] sm:$0xf]
    %v1834 = vld [vmem:[%s3 + $0x180] sm:$0xf]
    %v1835 = vld [vmem:[%s3 + $0x184] sm:$0xf]
    %v1836 = vld [vmem:[%s3 + $0x188] sm:$0xf]
    %v1837 = vld [vmem:[%s3 + $0x18c] sm:$0xf]
    %v1838 = vld [vmem:[%s3 + $0x190] sm:$0xf]
    %v1839 = vld [vmem:[%s3 + $0x194] sm:$0xf]
    %v1840 = vld [vmem:[%s3 + $0x198] sm:$0xf]
    %v1841 = vld [vmem:[%s3 + $0x19c] sm:$0xf]
    %v1842 = vld [vmem:[%s3 + $0x1a0] sm:$0xf]
    %v1843 = vld [vmem:[%s3 + $0x1a4] sm:$0xf]
    %v1844 = vld [vmem:[%s3 + $0x1a8] sm:$0xf]
    %v1845 = vld [vmem:[%s3 + $0x1ac] sm:$0xf]
    %v1846 = vld [vmem:[%s3 + $0x1b0] sm:$0xf]
    %v1847 = vld [vmem:[%s3 + $0x1b4] sm:$0xf]
    %v1848 = vld [vmem:[%s3 + $0x1b8] sm:$0xf]
    %v1849 = vld [vmem:[%s3 + $0x1bc] sm:$0xf]
    %v1850 = vld [vmem:[%s3 + $0x1c0] sm:$0xf]
    %v1851 = vld [vmem:[%s3 + $0x1c4] sm:$0xf]
    %v1852 = vld [vmem:[%s3 + $0x1c8] sm:$0xf]
    %v1853 = vld [vmem:[%s3 + $0x1cc] sm:$0xf]
    %v1854 = vld [vmem:[%s3 + $0x1d0] sm:$0xf]
    %v1855 = vld [vmem:[%s3 + $0x1d4] sm:$0xf]
    %v1856 = vld [vmem:[%s3 + $0x1d8] sm:$0xf]
    %v1857 = vld [vmem:[%s3 + $0x1dc] sm:$0xf]
    %v1858 = vld [vmem:[%s3 + $0x1e0] sm:$0xf]
    %v1859 = vld [vmem:[%s3 + $0x1e4] sm:$0xf]
    %v1860 = vld [vmem:[%s3 + $0x1e8] sm:$0xf]
    %v1861 = vld [vmem:[%s3 + $0x1ec] sm:$0xf]
    %v1862 = vld [vmem:[%s3 + $0x1f0] sm:$0xf]
    %v1863 = vld [vmem:[%s3 + $0x1f4] sm:$0xf]
    %v1864 = vld [vmem:[%s3 + $0x1f8] sm:$0xf]
    %v1865 = vld [vmem:[%s3 + $0x1fc] sm:$0xf]
    %v1866 = vld [vmem:[%s3 + $0x200] sm:$0xf]
    %v1867 = vld [vmem:[%s3 + $0x204] sm:$0xf]
    %v1868 = vld [vmem:[%s3 + $0x208] sm:$0xf]
    %v1869 = vld [vmem:[%s3 + $0x20c] sm:$0xf]
    %v1870 = vld [vmem:[%s3 + $0x210] sm:$0xf]
    %v1871 = vld [vmem:[%s3 + $0x214] sm:$0xf]
    %v1872 = vld [vmem:[%s3 + $0x218] sm:$0xf]
    %v1873 = vld [vmem:[%s3 + $0x21c] sm:$0xf]
    %v1874 = vld [vmem:[%s3 + $0x220] sm:$0xf]
    %v1875 = vld [vmem:[%s3 + $0x224] sm:$0xf]
    %v1876 = vld [vmem:[%s3 + $0x228] sm:$0xf]
    %v1877 = vld [vmem:[%s3 + $0x22c] sm:$0xf]
    %v1878 = vld [vmem:[%s3 + $0x230] sm:$0xf]
    %v1879 = vld [vmem:[%s3 + $0x234] sm:$0xf]
    %v1880 = vld [vmem:[%s3 + $0x238] sm:$0xf]
    %v1881 = vld [vmem:[%s3 + $0x23c] sm:$0xf]
    %v1882 = vld [vmem:[%s3 + $0x240] sm:$0xf]
    %v1883 = vld [vmem:[%s3 + $0x244] sm:$0xf]
    %v1884 = vld [vmem:[%s3 + $0x248] sm:$0xf]
    %v1885 = vld [vmem:[%s3 + $0x24c] sm:$0xf]
    %v1886 = vld [vmem:[%s3 + $0x250] sm:$0xf]
    %v1887 = vld [vmem:[%s3 + $0x254] sm:$0xf]
    %v1888 = vld [vmem:[%s3 + $0x258] sm:$0xf]
    %v1889 = vld [vmem:[%s3 + $0x25c] sm:$0xf]
    %v1890 = vld [vmem:[%s3 + $0x260] sm:$0xf]
    %v1891 = vld [vmem:[%s3 + $0x264] sm:$0xf]
    %v1892 = vld [vmem:[%s3 + $0x268] sm:$0xf]
    %v1893 = vld [vmem:[%s3 + $0x26c] sm:$0xf]
    %v1894 = vld [vmem:[%s3 + $0x270] sm:$0xf]
    %v1895 = vld [vmem:[%s3 + $0x274] sm:$0xf]
    %v1896 = vld [vmem:[%s3 + $0x278] sm:$0xf]
    %v1897 = vld [vmem:[%s3 + $0x27c] sm:$0xf]
    %v1898 = vld [vmem:[%s3 + $0x280] sm:$0xf]
    %v1899 = vld [vmem:[%s3 + $0x284] sm:$0xf]
    %v1900 = vld [vmem:[%s3 + $0x288] sm:$0xf]
    %v1901 = vld [vmem:[%s3 + $0x28c] sm:$0xf]
    %v1902 = vld [vmem:[%s3 + $0x290] sm:$0xf]
    %v1903 = vld [vmem:[%s3 + $0x294] sm:$0xf]
    %v1904 = vld [vmem:[%s3 + $0x298] sm:$0xf]
    %v1905 = vld [vmem:[%s3 + $0x29c] sm:$0xf]
    %v1906 = vld [vmem:[%s3 + $0x2a0] sm:$0xf]
    %v1907 = vld [vmem:[%s3 + $0x2a4] sm:$0xf]
    %v1908 = vld [vmem:[%s3 + $0x2a8] sm:$0xf]
    %v1909 = vld [vmem:[%s3 + $0x2ac] sm:$0xf]
    %v1910 = vld [vmem:[%s3 + $0x2b0] sm:$0xf]
    %v1911 = vld [vmem:[%s3 + $0x2b4] sm:$0xf]
    %v1912 = vld [vmem:[%s3 + $0x2b8] sm:$0xf]
    %v1913 = vld [vmem:[%s3 + $0x2bc] sm:$0xf]
    %v1914 = vld [vmem:[%s3 + $0x2c0] sm:$0xf]
    %v1915 = vld [vmem:[%s3 + $0x2c4] sm:$0xf]
    %v1916 = vld [vmem:[%s3 + $0x2c8] sm:$0xf]
    %v1917 = vld [vmem:[%s3 + $0x2cc] sm:$0xf]
    %v1918 = vld [vmem:[%s3 + $0x2d0] sm:$0xf]
    %v1919 = vld [vmem:[%s3 + $0x2d4] sm:$0xf]
    %v1920 = vld [vmem:[%s3 + $0x2d8] sm:$0xf]
    %v1921 = vld [vmem:[%s3 + $0x2dc] sm:$0xf]
    %v1922 = vld [vmem:[%s3 + $0x2e0] sm:$0xf]
    %v1923 = vld [vmem:[%s3 + $0x2e4] sm:$0xf]
    %v1924 = vld [vmem:[%s3 + $0x2e8] sm:$0xf]
    %v1925 = vld [vmem:[%s3 + $0x2ec] sm:$0xf]
    %v1926 = vld [vmem:[%s3 + $0x2f0] sm:$0xf]
    %v1927 = vld [vmem:[%s3 + $0x2f4] sm:$0xf]
    %v1928 = vld [vmem:[%s3 + $0x2f8] sm:$0xf]
    %v1929 = vld [vmem:[%s3 + $0x2fc] sm:$0xf]
    %v1930 = vld [vmem:[%s3 + $0x300] sm:$0xf]
    %v1931 = vld [vmem:[%s3 + $0x304] sm:$0xf]
    %v1932 = vld [vmem:[%s3 + $0x308] sm:$0xf]
    %v1933 = vld [vmem:[%s3 + $0x30c] sm:$0xf]
    %v1934 = vld [vmem:[%s3 + $0x310] sm:$0xf]
    %v1935 = vld [vmem:[%s3 + $0x314] sm:$0xf]
    %v1936 = vld [vmem:[%s3 + $0x318] sm:$0xf]
    %v1937 = vld [vmem:[%s3 + $0x31c] sm:$0xf]
    %v1938 = vld [vmem:[%s3 + $0x320] sm:$0xf]
    %v1939 = vld [vmem:[%s3 + $0x324] sm:$0xf]
    %v1940 = vld [vmem:[%s3 + $0x328] sm:$0xf]
    %v1941 = vld [vmem:[%s3 + $0x32c] sm:$0xf]
    %v1942 = vld [vmem:[%s3 + $0x330] sm:$0xf]
    %v1943 = vld [vmem:[%s3 + $0x334] sm:$0xf]
    %v1944 = vld [vmem:[%s3 + $0x338] sm:$0xf]
    %v1945 = vld [vmem:[%s3 + $0x33c] sm:$0xf]
    %v1946 = vld [vmem:[%s3 + $0x340] sm:$0xf]
    %v1947 = vld [vmem:[%s3 + $0x344] sm:$0xf]
    %v1948 = vld [vmem:[%s3 + $0x348] sm:$0xf]
    %v1949 = vld [vmem:[%s3 + $0x34c] sm:$0xf]
    %v1950 = vld [vmem:[%s3 + $0x350] sm:$0xf]
    %v1951 = vld [vmem:[%s3 + $0x354] sm:$0xf]
    %v1952 = vld [vmem:[%s3 + $0x358] sm:$0xf]
    %v1953 = vld [vmem:[%s3 + $0x35c] sm:$0xf]
    %v1954 = vld [vmem:[%s3 + $0x360] sm:$0xf]
    %v1955 = vld [vmem:[%s3 + $0x364] sm:$0xf]
    %v1956 = vld [vmem:[%s3 + $0x368] sm:$0xf]
    %v1957 = vld [vmem:[%s3 + $0x36c] sm:$0xf]
    %v1958 = vld [vmem:[%s3 + $0x370] sm:$0xf]
    %v1959 = vld [vmem:[%s3 + $0x374] sm:$0xf]
    %v1960 = vld [vmem:[%s3 + $0x378] sm:$0xf]
    %v1961 = vld [vmem:[%s3 + $0x37c] sm:$0xf]
    %v1962 = vld [vmem:[#allocation11 + $0x6] sm:$0x1]
    %v1964 = vlaneseq
    %v1965 = vshrl.u32 %v1964, 7
    %v1966 = vsub.s32 0, %v1965
    %v1967 = vrot.slane %v1962, %v1966
    %v1971 = vrot.slane %v1700, 4
    %v1972 = vrot.slane %v1701, 4
    %v1973 = vrot.slane %v1716, 4
    %v1974 = vrot.slane %v1717, 4
    %v1975 = vrot.slane %v1720, 4
    %v1976 = vrot.slane %v1721, 4
    %v1977 = vrot.slane %v1724, 4
    %v1978 = vrot.slane %v1725, 4
    %v1979 = vrot.slane %v1728, 4
    %v1980 = vrot.slane %v1729, 4
    %v1981 = vrot.slane %v1732, 4
    %v1982 = vrot.slane %v1733, 4
    %v1983 = vrot.slane %v1736, 4
    %v1984 = vrot.slane %v1737, 4
    %v2223 = vunpack.c.l.b16 %v1738
    %v2224 = vunpack.c.l.b16 %v1739
    %v2225 = vunpack.c.l.b16 %v1740
    %v2226 = vunpack.c.l.b16 %v1741
    %v2227 = vunpack.c.l.b16 %v1742
    %v2228 = vunpack.c.l.b16 %v1743
    %v2229 = vunpack.c.l.b16 %v1744
    %v2230 = vunpack.c.l.b16 %v1745
    %v2231 = vunpack.c.l.b16 %v1746
    %v2232 = vunpack.c.l.b16 %v1747
    %v2233 = vunpack.c.l.b16 %v1748
    %v2234 = vunpack.c.l.b16 %v1749
    %v2235 = vunpack.c.l.b16 %v1750
    %v2236 = vunpack.c.l.b16 %v1751
    %v2237 = vunpack.c.l.b16 %v1752
    %v2238 = vunpack.c.l.b16 %v1753
    %v2239 = vunpack.c.l.b16 %v1754
    %v2240 = vunpack.c.l.b16 %v1755
    %v2241 = vunpack.c.l.b16 %v1756
    %v2242 = vunpack.c.l.b16 %v1757
    %v2243 = vunpack.c.l.b16 %v1758
    %v2244 = vunpack.c.l.b16 %v1759
    %v2245 = vunpack.c.l.b16 %v1760
    %v2246 = vunpack.c.l.b16 %v1761
    %v2247 = vunpack.c.l.b16 %v1762
    %v2248 = vunpack.c.l.b16 %v1763
    %v2249 = vunpack.c.l.b16 %v1764
    %v2250 = vunpack.c.l.b16 %v1765
    %v2251 = vunpack.c.l.b16 %v1766
    %v2252 = vunpack.c.l.b16 %v1767
    %v2253 = vunpack.c.l.b16 %v1768
    %v2254 = vunpack.c.l.b16 %v1769
    %v2255 = vunpack.c.l.b16 %v1770
    %v2256 = vunpack.c.l.b16 %v1771
    %v2257 = vunpack.c.l.b16 %v1772
    %v2258 = vunpack.c.l.b16 %v1773
    %v2259 = vunpack.c.l.b16 %v1774
    %v2260 = vunpack.c.l.b16 %v1775
    %v2261 = vunpack.c.l.b16 %v1776
    %v2262 = vunpack.c.l.b16 %v1777
    %v2263 = vunpack.c.l.b16 %v1778
    %v2264 = vunpack.c.l.b16 %v1779
    %v2265 = vunpack.c.l.b16 %v1780
    %v2266 = vunpack.c.l.b16 %v1781
    %v2267 = vunpack.c.l.b16 %v1782
    %v2268 = vunpack.c.l.b16 %v1783
    %v2269 = vunpack.c.l.b16 %v1784
    %v2270 = vunpack.c.l.b16 %v1785
    %v2271 = vunpack.c.l.b16 %v1786
    %v2272 = vunpack.c.l.b16 %v1787
    %v2273 = vunpack.c.l.b16 %v1788
    %v2274 = vunpack.c.l.b16 %v1789
    %v2275 = vunpack.c.l.b16 %v1790
    %v2276 = vunpack.c.l.b16 %v1791
    %v2277 = vunpack.c.l.b16 %v1792
    %v2278 = vunpack.c.l.b16 %v1793
    %v2279 = vunpack.c.l.b16 %v1794
    %v2280 = vunpack.c.l.b16 %v1795
    %v2281 = vunpack.c.l.b16 %v1796
    %v2282 = vunpack.c.l.b16 %v1797
    %v2283 = vunpack.c.l.b16 %v1798
    %v2284 = vunpack.c.l.b16 %v1799
    %v2285 = vunpack.c.l.b16 %v1800
    %v2286 = vunpack.c.l.b16 %v1801
    %v2287 = vunpack.c.l.b16 %v1802
    %v2288 = vunpack.c.l.b16 %v1803
    %v2289 = vunpack.c.l.b16 %v1804
    %v2290 = vunpack.c.l.b16 %v1805
    %v2291 = vunpack.c.l.b16 %v1806
    %v2292 = vunpack.c.l.b16 %v1807
    %v2293 = vunpack.c.l.b16 %v1808
    %v2294 = vunpack.c.l.b16 %v1809
    %v2295 = vunpack.c.l.b16 %v1810
    %v2296 = vunpack.c.l.b16 %v1811
    %v2297 = vunpack.c.l.b16 %v1812
    %v2298 = vunpack.c.l.b16 %v1813
    %v2299 = vunpack.c.l.b16 %v1814
    %v2300 = vunpack.c.l.b16 %v1815
    %v2301 = vunpack.c.l.b16 %v1816
    %v2302 = vunpack.c.l.b16 %v1817
    %v2303 = vunpack.c.l.b16 %v1818
    %v2304 = vunpack.c.l.b16 %v1819
    %v2305 = vunpack.c.l.b16 %v1820
    %v2306 = vunpack.c.l.b16 %v1821
    %v2307 = vunpack.c.l.b16 %v1822
    %v2308 = vunpack.c.l.b16 %v1823
    %v2309 = vunpack.c.l.b16 %v1824
    %v2310 = vunpack.c.l.b16 %v1825
    %v2311 = vunpack.c.l.b16 %v1826
    %v2312 = vunpack.c.l.b16 %v1827
    %v2313 = vunpack.c.l.b16 %v1828
    %v2314 = vunpack.c.l.b16 %v1829
    %v2315 = vunpack.c.l.b16 %v1830
    %v2316 = vunpack.c.l.b16 %v1831
    %v2317 = vunpack.c.l.b16 %v1832
    %v2318 = vunpack.c.l.b16 %v1833
    %v2319 = vunpack.c.l.b16 %v1834
    %v2320 = vunpack.c.l.b16 %v1835
    %v2321 = vunpack.c.l.b16 %v1836
    %v2322 = vunpack.c.l.b16 %v1837
    %v2323 = vunpack.c.l.b16 %v1838
    %v2324 = vunpack.c.l.b16 %v1839
    %v2325 = vunpack.c.l.b16 %v1840
    %v2326 = vunpack.c.l.b16 %v1841
    %v2327 = vunpack.c.l.b16 %v1842
    %v2328 = vunpack.c.l.b16 %v1843
    %v2329 = vunpack.c.l.b16 %v1844
    %v2330 = vunpack.c.l.b16 %v1845
    %v2331 = vunpack.c.l.b16 %v1846
    %v2332 = vunpack.c.l.b16 %v1847
    %v2333 = vunpack.c.l.b16 %v1848
    %v2334 = vunpack.c.l.b16 %v1849
    %v2335 = vunpack.c.l.b16 %v1850
    %v2336 = vunpack.c.l.b16 %v1851
    %v2337 = vunpack.c.l.b16 %v1852
    %v2338 = vunpack.c.l.b16 %v1853
    %v2339 = vunpack.c.l.b16 %v1854
    %v2340 = vunpack.c.l.b16 %v1855
    %v2341 = vunpack.c.l.b16 %v1856
    %v2342 = vunpack.c.l.b16 %v1857
    %v2343 = vunpack.c.l.b16 %v1858
    %v2344 = vunpack.c.l.b16 %v1859
    %v2345 = vunpack.c.l.b16 %v1860
    %v2346 = vunpack.c.l.b16 %v1861
    %v2347 = vunpack.c.l.b16 %v1862
    %v2348 = vunpack.c.l.b16 %v1863
    %v2349 = vunpack.c.l.b16 %v1864
    %v2350 = vunpack.c.l.b16 %v1865
    %v2351 = vunpack.c.l.b16 %v1866
    %v2352 = vunpack.c.l.b16 %v1867
    %v2353 = vunpack.c.l.b16 %v1868
    %v2354 = vunpack.c.l.b16 %v1869
    %v2355 = vunpack.c.l.b16 %v1870
    %v2356 = vunpack.c.l.b16 %v1871
    %v2357 = vunpack.c.l.b16 %v1872
    %v2358 = vunpack.c.l.b16 %v1873
    %v2359 = vunpack.c.l.b16 %v1874
    %v2360 = vunpack.c.l.b16 %v1875
    %v2361 = vunpack.c.l.b16 %v1876
    %v2362 = vunpack.c.l.b16 %v1877
    %v2363 = vunpack.c.l.b16 %v1878
    %v2364 = vunpack.c.l.b16 %v1879
    %v2365 = vunpack.c.l.b16 %v1880
    %v2366 = vunpack.c.l.b16 %v1881
    %v2367 = vunpack.c.l.b16 %v1882
    %v2368 = vunpack.c.l.b16 %v1883
    %v2369 = vunpack.c.l.b16 %v1884
    %v2370 = vunpack.c.l.b16 %v1885
    %v2371 = vunpack.c.l.b16 %v1886
    %v2372 = vunpack.c.l.b16 %v1887
    %v2373 = vunpack.c.l.b16 %v1888
    %v2374 = vunpack.c.l.b16 %v1889
    %v2375 = vunpack.c.l.b16 %v1890
    %v2376 = vunpack.c.l.b16 %v1891
    %v2377 = vunpack.c.l.b16 %v1892
    %v2378 = vunpack.c.l.b16 %v1893
    %v2379 = vunpack.c.l.b16 %v1894
    %v2380 = vunpack.c.l.b16 %v1895
    %v2381 = vunpack.c.l.b16 %v1896
    %v2382 = vunpack.c.l.b16 %v1897
    %v2383 = vunpack.c.l.b16 %v1898
    %v2384 = vunpack.c.l.b16 %v1899
    %v2385 = vunpack.c.l.b16 %v1900
    %v2386 = vunpack.c.l.b16 %v1901
    %v2387 = vunpack.c.l.b16 %v1902
    %v2388 = vunpack.c.l.b16 %v1903
    %v2389 = vunpack.c.l.b16 %v1904
    %v2390 = vunpack.c.l.b16 %v1905
    %v2391 = vunpack.c.l.b16 %v1906
    %v2392 = vunpack.c.l.b16 %v1907
    %v2393 = vunpack.c.l.b16 %v1908
    %v2394 = vunpack.c.l.b16 %v1909
    %v2395 = vunpack.c.l.b16 %v1910
    %v2396 = vunpack.c.l.b16 %v1911
    %v2397 = vunpack.c.l.b16 %v1912
    %v2398 = vunpack.c.l.b16 %v1913
    %v2399 = vunpack.c.l.b16 %v1914
    %v2400 = vunpack.c.l.b16 %v1915
    %v2401 = vunpack.c.l.b16 %v1916
    %v2402 = vunpack.c.l.b16 %v1917
    %v2403 = vunpack.c.l.b16 %v1918
    %v2404 = vunpack.c.l.b16 %v1919
    %v2405 = vunpack.c.l.b16 %v1920
    %v2406 = vunpack.c.l.b16 %v1921
    %v2407 = vunpack.c.l.b16 %v1922
    %v2408 = vunpack.c.l.b16 %v1923
    %v2409 = vunpack.c.l.b16 %v1924
    %v2410 = vunpack.c.l.b16 %v1925
    %v2411 = vunpack.c.l.b16 %v1926
    %v2412 = vunpack.c.l.b16 %v1927
    %v2413 = vunpack.c.l.b16 %v1928
    %v2414 = vunpack.c.l.b16 %v1929
    %v2415 = vunpack.c.l.b16 %v1930
    %v2416 = vunpack.c.l.b16 %v1931
    %v2417 = vunpack.c.l.b16 %v1932
    %v2418 = vunpack.c.l.b16 %v1933
    %v2419 = vunpack.c.l.b16 %v1934
    %v2420 = vunpack.c.l.b16 %v1935
    %v2421 = vunpack.c.l.b16 %v1936
    %v2422 = vunpack.c.l.b16 %v1937
    %v2423 = vunpack.c.l.b16 %v1938
    %v2424 = vunpack.c.l.b16 %v1939
    %v2425 = vunpack.c.l.b16 %v1940
    %v2426 = vunpack.c.l.b16 %v1941
    %v2427 = vunpack.c.l.b16 %v1942
    %v2428 = vunpack.c.l.b16 %v1943
    %v2429 = vunpack.c.l.b16 %v1944
    %v2430 = vunpack.c.l.b16 %v1945
    %v2431 = vunpack.c.l.b16 %v1946
    %v2432 = vunpack.c.l.b16 %v1947
    %v2433 = vunpack.c.l.b16 %v1948
    %v2434 = vunpack.c.l.b16 %v1949
    %v2435 = vunpack.c.l.b16 %v1950
    %v2436 = vunpack.c.l.b16 %v1951
    %v2437 = vunpack.c.l.b16 %v1952
    %v2438 = vunpack.c.l.b16 %v1953
    %v2439 = vunpack.c.l.b16 %v1954
    %v2440 = vunpack.c.l.b16 %v1955
    %v2441 = vunpack.c.l.b16 %v1956
    %v2442 = vunpack.c.l.b16 %v1957
    %v2443 = vunpack.c.l.b16 %v1958
    %v2444 = vunpack.c.l.b16 %v1959
    %v2445 = vunpack.c.l.b16 %v1960
    %v2446 = vunpack.c.l.b16 %v1961
    %v2447 = vpack.c.b16 %v2224, %v2223
    %v2448 = vpack.c.b16 %v2226, %v2225
    %v2449 = vpack.c.b16 %v2228, %v2227
    %v2450 = vpack.c.b16 %v2230, %v2229
    %v2451 = vpack.c.b16 %v2232, %v2231
    %v2452 = vpack.c.b16 %v2234, %v2233
    %v2453 = vpack.c.b16 %v2236, %v2235
    %v2454 = vpack.c.b16 %v2238, %v2237
    %v2455 = vpack.c.b16 %v2240, %v2239
    %v2456 = vpack.c.b16 %v2242, %v2241
    %v2457 = vpack.c.b16 %v2244, %v2243
    %v2458 = vpack.c.b16 %v2246, %v2245
    %v2459 = vpack.c.b16 %v2248, %v2247
    %v2460 = vpack.c.b16 %v2250, %v2249
    %v2461 = vpack.c.b16 %v2252, %v2251
    %v2462 = vpack.c.b16 %v2254, %v2253
    %v2463 = vpack.c.b16 %v2256, %v2255
    %v2464 = vpack.c.b16 %v2258, %v2257
    %v2465 = vpack.c.b16 %v2260, %v2259
    %v2466 = vpack.c.b16 %v2262, %v2261
    %v2467 = vpack.c.b16 %v2264, %v2263
    %v2468 = vpack.c.b16 %v2266, %v2265
    %v2469 = vpack.c.b16 %v2268, %v2267
    %v2470 = vpack.c.b16 %v2270, %v2269
    %v2471 = vpack.c.b16 %v2272, %v2271
    %v2472 = vpack.c.b16 %v2274, %v2273
    %v2473 = vpack.c.b16 %v2276, %v2275
    %v2474 = vpack.c.b16 %v2278, %v2277
    %v2475 = vpack.c.b16 %v2280, %v2279
    %v2476 = vpack.c.b16 %v2282, %v2281
    %v2477 = vpack.c.b16 %v2284, %v2283
    %v2478 = vpack.c.b16 %v2286, %v2285
    %v2479 = vpack.c.b16 %v2288, %v2287
    %v2480 = vpack.c.b16 %v2290, %v2289
    %v2481 = vpack.c.b16 %v2292, %v2291
    %v2482 = vpack.c.b16 %v2294, %v2293
    %v2483 = vpack.c.b16 %v2296, %v2295
    %v2484 = vpack.c.b16 %v2298, %v2297
    %v2485 = vpack.c.b16 %v2300, %v2299
    %v2486 = vpack.c.b16 %v2302, %v2301
    %v2487 = vpack.c.b16 %v2304, %v2303
    %v2488 = vpack.c.b16 %v2306, %v2305
    %v2489 = vpack.c.b16 %v2308, %v2307
    %v2490 = vpack.c.b16 %v2310, %v2309
    %v2491 = vpack.c.b16 %v2312, %v2311
    %v2492 = vpack.c.b16 %v2314, %v2313
    %v2493 = vpack.c.b16 %v2316, %v2315
    %v2494 = vpack.c.b16 %v2318, %v2317
    %v2495 = vpack.c.b16 %v2320, %v2319
    %v2496 = vpack.c.b16 %v2322, %v2321
    %v2497 = vpack.c.b16 %v2324, %v2323
    %v2498 = vpack.c.b16 %v2326, %v2325
    %v2499 = vpack.c.b16 %v2328, %v2327
    %v2500 = vpack.c.b16 %v2330, %v2329
    %v2501 = vpack.c.b16 %v2332, %v2331
    %v2502 = vpack.c.b16 %v2334, %v2333
    %v2503 = vpack.c.b16 %v2336, %v2335
    %v2504 = vpack.c.b16 %v2338, %v2337
    %v2505 = vpack.c.b16 %v2340, %v2339
    %v2506 = vpack.c.b16 %v2342, %v2341
    %v2507 = vpack.c.b16 %v2344, %v2343
    %v2508 = vpack.c.b16 %v2346, %v2345
    %v2509 = vpack.c.b16 %v2348, %v2347
    %v2510 = vpack.c.b16 %v2350, %v2349
    %v2511 = vpack.c.b16 %v2352, %v2351
    %v2512 = vpack.c.b16 %v2354, %v2353
    %v2513 = vpack.c.b16 %v2356, %v2355
    %v2514 = vpack.c.b16 %v2358, %v2357
    %v2515 = vpack.c.b16 %v2360, %v2359
    %v2516 = vpack.c.b16 %v2362, %v2361
    %v2517 = vpack.c.b16 %v2364, %v2363
    %v2518 = vpack.c.b16 %v2366, %v2365
    %v2519 = vpack.c.b16 %v2368, %v2367
    %v2520 = vpack.c.b16 %v2370, %v2369
    %v2521 = vpack.c.b16 %v2372, %v2371
    %v2522 = vpack.c.b16 %v2374, %v2373
    %v2523 = vpack.c.b16 %v2376, %v2375
    %v2524 = vpack.c.b16 %v2378, %v2377
    %v2525 = vpack.c.b16 %v2380, %v2379
    %v2526 = vpack.c.b16 %v2382, %v2381
    %v2527 = vpack.c.b16 %v2384, %v2383
    %v2528 = vpack.c.b16 %v2386, %v2385
    %v2529 = vpack.c.b16 %v2388, %v2387
    %v2530 = vpack.c.b16 %v2390, %v2389
    %v2531 = vpack.c.b16 %v2392, %v2391
    %v2532 = vpack.c.b16 %v2394, %v2393
    %v2533 = vpack.c.b16 %v2396, %v2395
    %v2534 = vpack.c.b16 %v2398, %v2397
    %v2535 = vpack.c.b16 %v2400, %v2399
    %v2536 = vpack.c.b16 %v2402, %v2401
    %v2537 = vpack.c.b16 %v2404, %v2403
    %v2538 = vpack.c.b16 %v2406, %v2405
    %v2539 = vpack.c.b16 %v2408, %v2407
    %v2540 = vpack.c.b16 %v2410, %v2409
    %v2541 = vpack.c.b16 %v2412, %v2411
    %v2542 = vpack.c.b16 %v2414, %v2413
    %v2543 = vpack.c.b16 %v2416, %v2415
    %v2544 = vpack.c.b16 %v2418, %v2417
    %v2545 = vpack.c.b16 %v2420, %v2419
    %v2546 = vpack.c.b16 %v2422, %v2421
    %v2547 = vpack.c.b16 %v2424, %v2423
    %v2548 = vpack.c.b16 %v2426, %v2425
    %v2549 = vpack.c.b16 %v2428, %v2427
    %v2550 = vpack.c.b16 %v2430, %v2429
    %v2551 = vpack.c.b16 %v2432, %v2431
    %v2552 = vpack.c.b16 %v2434, %v2433
    %v2553 = vpack.c.b16 %v2436, %v2435
    %v2554 = vpack.c.b16 %v2438, %v2437
    %v2555 = vpack.c.b16 %v2440, %v2439
    %v2556 = vpack.c.b16 %v2442, %v2441
    %v2557 = vpack.c.b16 %v2444, %v2443
    %v2558 = vpack.c.b16 %v2446, %v2445
    %2671 = vmatprep.subr.bf16.mxu0 0
    %2672 = vmatpush1.bf16.msra.mxu0 %v2447
    %2673 = vmatprep.subr.bf16.mxu0 0
    %2674 = vmatpush1.bf16.msra.mxu0 %v2448
    %2675 = vmatprep.subr.bf16.mxu0 0
    %2676 = vmatpush1.bf16.msra.mxu0 %v2449
    %2677 = vmatprep.subr.bf16.mxu0 0
    %2678 = vmatpush1.bf16.msra.mxu0 %v2450
    %2679 = vmatprep.subr.bf16.mxu0 0
    %2680 = vmatpush1.bf16.msra.mxu0 %v2451
    %2681 = vmatprep.subr.bf16.mxu0 0
    %2682 = vmatpush1.bf16.msra.mxu0 %v2452
    %2683 = vmatprep.subr.bf16.mxu0 0
    %2684 = vmatpush1.bf16.msra.mxu0 %v2453
    %2685 = vmatprep.subr.bf16.mxu0 0
    %2686 = vmatpush1.bf16.msra.mxu0 %v2454
    %2687 = vmatprep.subr.bf16.mxu0 0
    %2688 = vmatpush1.bf16.msra.mxu0 %v2455
    %2689 = vmatprep.subr.bf16.mxu0 0
    %2690 = vmatpush1.bf16.msra.mxu0 %v2456
    %2691 = vmatprep.subr.bf16.mxu0 0
    %2692 = vmatpush1.bf16.msra.mxu0 %v2457
    %2693 = vmatprep.subr.bf16.mxu0 0
    %2694 = vmatpush1.bf16.msra.mxu0 %v2458
    %2695 = vmatprep.subr.bf16.mxu0 0
    %2696 = vmatpush1.bf16.msra.mxu0 %v2459
    %2697 = vmatprep.subr.bf16.mxu0 0
    %2698 = vmatpush1.bf16.msra.mxu0 %v2460
    %2699 = vmatprep.subr.bf16.mxu0 0
    %2700 = vmatpush1.bf16.msra.mxu0 %v2461
    %2701 = vmatprep.subr.bf16.mxu0 0
    %2702 = vmatpush1.bf16.msra.mxu0 %v2462
    %2703 = vmatprep.mubr.bf16.mxu0 %v1972
    %2704 = vmatmul.mubr.bf16.gmra.mrb[0].mxu0 %v1971
    %v2705 = vpop.f32.mrb[0].mxu0
    %v2706 = vadd.f32 %v1967, %v2705
    %v2707 = vpop.f32.mrb[0].mxu0
    %v2708 = vpop.f32.mrb[0].mxu0
    %v2709 = vpop.f32.mrb[0].mxu0
    %2710 = vdwg.mxu0
    %2711 = vmatprep.subr.bf16.mxu0 0
    %2712 = vmatpush1.bf16.msra.mxu0 %v2463
    %2713 = vmatprep.subr.bf16.mxu0 0
    %2714 = vmatpush1.bf16.msra.mxu0 %v2464
    %2715 = vmatprep.subr.bf16.mxu0 0
    %2716 = vmatpush1.bf16.msra.mxu0 %v2465
    %2717 = vmatprep.subr.bf16.mxu0 0
    %2718 = vmatpush1.bf16.msra.mxu0 %v2466
    %2719 = vmatprep.subr.bf16.mxu0 0
    %2720 = vmatpush1.bf16.msra.mxu0 %v2467
    %2721 = vmatprep.subr.bf16.mxu0 0
    %2722 = vmatpush1.bf16.msra.mxu0 %v2468
    %2723 = vmatprep.subr.bf16.mxu0 0
    %2724 = vmatpush1.bf16.msra.mxu0 %v2469
    %2725 = vmatprep.subr.bf16.mxu0 0
    %2726 = vmatpush1.bf16.msra.mxu0 %v2470
    %2727 = vmatprep.subr.bf16.mxu0 0
    %2728 = vmatpush1.bf16.msra.mxu0 %v2471
    %2729 = vmatprep.subr.bf16.mxu0 0
    %2730 = vmatpush1.bf16.msra.mxu0 %v2472
    %2731 = vmatprep.subr.bf16.mxu0 0
    %2732 = vmatpush1.bf16.msra.mxu0 %v2473
    %2733 = vmatprep.subr.bf16.mxu0 0
    %2734 = vmatpush1.bf16.msra.mxu0 %v2474
    %2735 = vmatprep.subr.bf16.mxu0 0
    %2736 = vmatpush1.bf16.msra.mxu0 %v2475
    %2737 = vmatprep.subr.bf16.mxu0 0
    %2738 = vmatpush1.bf16.msra.mxu0 %v2476
    %2739 = vmatprep.subr.bf16.mxu0 0
    %2740 = vmatpush1.bf16.msra.mxu0 %v2477
    %2741 = vmatprep.subr.bf16.mxu0 0
    %2742 = vmatpush1.bf16.msra.mxu0 %v2478
    %2743 = vmatprep.mubr.bf16.mxu0 %v1974
    %2744 = vmatmul.mubr.bf16.gmra.mrb[0].mxu0 %v1973
    %v2745 = vpop.f32.mrb[0].mxu0
    %v2746 = vadd.f32 %v2706, %v2745
    %v2747 = vpop.f32.mrb[0].mxu0
    %v2748 = vpop.f32.mrb[0].mxu0
    %v2749 = vpop.f32.mrb[0].mxu0
    %2750 = vdwg.mxu0
    %2751 = vmatprep.subr.bf16.mxu0 0
    %2752 = vmatpush1.bf16.msra.mxu0 %v2479
    %2753 = vmatprep.subr.bf16.mxu0 0
    %2754 = vmatpush1.bf16.msra.mxu0 %v2480
    %2755 = vmatprep.subr.bf16.mxu0 0
    %2756 = vmatpush1.bf16.msra.mxu0 %v2481
    %2757 = vmatprep.subr.bf16.mxu0 0
    %2758 = vmatpush1.bf16.msra.mxu0 %v2482
    %2759 = vmatprep.subr.bf16.mxu0 0
    %2760 = vmatpush1.bf16.msra.mxu0 %v2483
    %2761 = vmatprep.subr.bf16.mxu0 0
    %2762 = vmatpush1.bf16.msra.mxu0 %v2484
    %2763 = vmatprep.subr.bf16.mxu0 0
    %2764 = vmatpush1.bf16.msra.mxu0 %v2485
    %2765 = vmatprep.subr.bf16.mxu0 0
    %2766 = vmatpush1.bf16.msra.mxu0 %v2486
    %2767 = vmatprep.subr.bf16.mxu0 0
    %2768 = vmatpush1.bf16.msra.mxu0 %v2487
    %2769 = vmatprep.subr.bf16.mxu0 0
    %2770 = vmatpush1.bf16.msra.mxu0 %v2488
    %2771 = vmatprep.subr.bf16.mxu0 0
    %2772 = vmatpush1.bf16.msra.mxu0 %v2489
    %2773 = vmatprep.subr.bf16.mxu0 0
    %2774 = vmatpush1.bf16.msra.mxu0 %v2490
    %2775 = vmatprep.subr.bf16.mxu0 0
    %2776 = vmatpush1.bf16.msra.mxu0 %v2491
    %2777 = vmatprep.subr.bf16.mxu0 0
    %2778 = vmatpush1.bf16.msra.mxu0 %v2492
    %2779 = vmatprep.subr.bf16.mxu0 0
    %2780 = vmatpush1.bf16.msra.mxu0 %v2493
    %2781 = vmatprep.subr.bf16.mxu0 0
    %2782 = vmatpush1.bf16.msra.mxu0 %v2494
    %2783 = vmatprep.mubr.bf16.mxu0 %v1976
    %2784 = vmatmul.mubr.bf16.gmra.mrb[0].mxu0 %v1975
    %v2785 = vpop.f32.mrb[0].mxu0
    %v2786 = vadd.f32 %v2746, %v2785
    %v2787 = vpop.f32.mrb[0].mxu0
    %v2788 = vpop.f32.mrb[0].mxu0
    %v2789 = vpop.f32.mrb[0].mxu0
    %2790 = vdwg.mxu0
    %2791 = vmatprep.subr.bf16.mxu0 0
    %2792 = vmatpush1.bf16.msra.mxu0 %v2495
    %2793 = vmatprep.subr.bf16.mxu0 0
    %2794 = vmatpush1.bf16.msra.mxu0 %v2496
    %2795 = vmatprep.subr.bf16.mxu0 0
    %2796 = vmatpush1.bf16.msra.mxu0 %v2497
    %2797 = vmatprep.subr.bf16.mxu0 0
    %2798 = vmatpush1.bf16.msra.mxu0 %v2498
    %2799 = vmatprep.subr.bf16.mxu0 0
    %2800 = vmatpush1.bf16.msra.mxu0 %v2499
    %2801 = vmatprep.subr.bf16.mxu0 0
    %2802 = vmatpush1.bf16.msra.mxu0 %v2500
    %2803 = vmatprep.subr.bf16.mxu0 0
    %2804 = vmatpush1.bf16.msra.mxu0 %v2501
    %2805 = vmatprep.subr.bf16.mxu0 0
    %2806 = vmatpush1.bf16.msra.mxu0 %v2502
    %2807 = vmatprep.subr.bf16.mxu0 0
    %2808 = vmatpush1.bf16.msra.mxu0 %v2503
    %2809 = vmatprep.subr.bf16.mxu0 0
    %2810 = vmatpush1.bf16.msra.mxu0 %v2504
    %2811 = vmatprep.subr.bf16.mxu0 0
    %2812 = vmatpush1.bf16.msra.mxu0 %v2505
    %2813 = vmatprep.subr.bf16.mxu0 0
    %2814 = vmatpush1.bf16.msra.mxu0 %v2506
    %2815 = vmatprep.subr.bf16.mxu0 0
    %2816 = vmatpush1.bf16.msra.mxu0 %v2507
    %2817 = vmatprep.subr.bf16.mxu0 0
    %2818 = vmatpush1.bf16.msra.mxu0 %v2508
    %2819 = vmatprep.subr.bf16.mxu0 0
    %2820 = vmatpush1.bf16.msra.mxu0 %v2509
    %2821 = vmatprep.subr.bf16.mxu0 0
    %2822 = vmatpush1.bf16.msra.mxu0 %v2510
    %2823 = vmatprep.mubr.bf16.mxu0 %v1978
    %2824 = vmatmul.mubr.bf16.gmra.mrb[0].mxu0 %v1977
    %v2825 = vpop.f32.mrb[0].mxu0
    %v2826 = vadd.f32 %v2786, %v2825
    %v2827 = vpop.f32.mrb[0].mxu0
    %v2828 = vpop.f32.mrb[0].mxu0
    %v2829 = vpop.f32.mrb[0].mxu0
    %2830 = vdwg.mxu0
    %2831 = vmatprep.subr.bf16.mxu0 0
    %2832 = vmatpush1.bf16.msra.mxu0 %v2511
    %2833 = vmatprep.subr.bf16.mxu0 0
    %2834 = vmatpush1.bf16.msra.mxu0 %v2512
    %2835 = vmatprep.subr.bf16.mxu0 0
    %2836 = vmatpush1.bf16.msra.mxu0 %v2513
    %2837 = vmatprep.subr.bf16.mxu0 0
    %2838 = vmatpush1.bf16.msra.mxu0 %v2514
    %2839 = vmatprep.subr.bf16.mxu0 0
    %2840 = vmatpush1.bf16.msra.mxu0 %v2515
    %2841 = vmatprep.subr.bf16.mxu0 0
    %2842 = vmatpush1.bf16.msra.mxu0 %v2516
    %2843 = vmatprep.subr.bf16.mxu0 0
    %2844 = vmatpush1.bf16.msra.mxu0 %v2517
    %2845 = vmatprep.subr.bf16.mxu0 0
    %2846 = vmatpush1.bf16.msra.mxu0 %v2518
    %2847 = vmatprep.subr.bf16.mxu0 0
    %2848 = vmatpush1.bf16.msra.mxu0 %v2519
    %2849 = vmatprep.subr.bf16.mxu0 0
    %2850 = vmatpush1.bf16.msra.mxu0 %v2520
    %2851 = vmatprep.subr.bf16.mxu0 0
    %2852 = vmatpush1.bf16.msra.mxu0 %v2521
    %2853 = vmatprep.subr.bf16.mxu0 0
    %2854 = vmatpush1.bf16.msra.mxu0 %v2522
    %2855 = vmatprep.subr.bf16.mxu0 0
    %2856 = vmatpush1.bf16.msra.mxu0 %v2523
    %2857 = vmatprep.subr.bf16.mxu0 0
    %2858 = vmatpush1.bf16.msra.mxu0 %v2524
    %2859 = vmatprep.subr.bf16.mxu0 0
    %2860 = vmatpush1.bf16.msra.mxu0 %v2525
    %2861 = vmatprep.subr.bf16.mxu0 0
    %2862 = vmatpush1.bf16.msra.mxu0 %v2526
    %2863 = vmatprep.mubr.bf16.mxu0 %v1980
    %2864 = vmatmul.mubr.bf16.gmra.mrb[0].mxu0 %v1979
    %v2865 = vpop.f32.mrb[0].mxu0
    %v2866 = vadd.f32 %v2826, %v2865
    %v2867 = vpop.f32.mrb[0].mxu0
    %v2868 = vpop.f32.mrb[0].mxu0
    %v2869 = vpop.f32.mrb[0].mxu0
    %2870 = vdwg.mxu0
    %2871 = vmatprep.subr.bf16.mxu0 0
    %2872 = vmatpush1.bf16.msra.mxu0 %v2527
    %2873 = vmatprep.subr.bf16.mxu0 0
    %2874 = vmatpush1.bf16.msra.mxu0 %v2528
    %2875 = vmatprep.subr.bf16.mxu0 0
    %2876 = vmatpush1.bf16.msra.mxu0 %v2529
    %2877 = vmatprep.subr.bf16.mxu0 0
    %2878 = vmatpush1.bf16.msra.mxu0 %v2530
    %2879 = vmatprep.subr.bf16.mxu0 0
    %2880 = vmatpush1.bf16.msra.mxu0 %v2531
    %2881 = vmatprep.subr.bf16.mxu0 0
    %2882 = vmatpush1.bf16.msra.mxu0 %v2532
    %2883 = vmatprep.subr.bf16.mxu0 0
    %2884 = vmatpush1.bf16.msra.mxu0 %v2533
    %2885 = vmatprep.subr.bf16.mxu0 0
    %2886 = vmatpush1.bf16.msra.mxu0 %v2534
    %2887 = vmatprep.subr.bf16.mxu0 0
    %2888 = vmatpush1.bf16.msra.mxu0 %v2535
    %2889 = vmatprep.subr.bf16.mxu0 0
    %2890 = vmatpush1.bf16.msra.mxu0 %v2536
    %2891 = vmatprep.subr.bf16.mxu0 0
    %2892 = vmatpush1.bf16.msra.mxu0 %v2537
    %2893 = vmatprep.subr.bf16.mxu0 0
    %2894 = vmatpush1.bf16.msra.mxu0 %v2538
    %2895 = vmatprep.subr.bf16.mxu0 0
    %2896 = vmatpush1.bf16.msra.mxu0 %v2539
    %2897 = vmatprep.subr.bf16.mxu0 0
    %2898 = vmatpush1.bf16.msra.mxu0 %v2540
    %2899 = vmatprep.subr.bf16.mxu0 0
    %2900 = vmatpush1.bf16.msra.mxu0 %v2541
    %2901 = vmatprep.subr.bf16.mxu0 0
    %2902 = vmatpush1.bf16.msra.mxu0 %v2542
    %2903 = vmatprep.mubr.bf16.mxu0 %v1982
    %2904 = vmatmul.mubr.bf16.gmra.mrb[0].mxu0 %v1981
    %v2905 = vpop.f32.mrb[0].mxu0
    %v2906 = vadd.f32 %v2866, %v2905
    %v2907 = vpop.f32.mrb[0].mxu0
    %v2908 = vpop.f32.mrb[0].mxu0
    %v2909 = vpop.f32.mrb[0].mxu0
    %2910 = vdwg.mxu0
    %2911 = vmatprep.subr.bf16.mxu0 0
    %2912 = vmatpush1.bf16.msra.mxu0 %v2543
    %2913 = vmatprep.subr.bf16.mxu0 0
    %2914 = vmatpush1.bf16.msra.mxu0 %v2544
    %2915 = vmatprep.subr.bf16.mxu0 0
    %2916 = vmatpush1.bf16.msra.mxu0 %v2545
    %2917 = vmatprep.subr.bf16.mxu0 0
    %2918 = vmatpush1.bf16.msra.mxu0 %v2546
    %2919 = vmatprep.subr.bf16.mxu0 0
    %2920 = vmatpush1.bf16.msra.mxu0 %v2547
    %2921 = vmatprep.subr.bf16.mxu0 0
    %2922 = vmatpush1.bf16.msra.mxu0 %v2548
    %2923 = vmatprep.subr.bf16.mxu0 0
    %2924 = vmatpush1.bf16.msra.mxu0 %v2549
    %2925 = vmatprep.subr.bf16.mxu0 0
    %2926 = vmatpush1.bf16.msra.mxu0 %v2550
    %2927 = vmatprep.subr.bf16.mxu0 0
    %2928 = vmatpush1.bf16.msra.mxu0 %v2551
    %2929 = vmatprep.subr.bf16.mxu0 0
    %2930 = vmatpush1.bf16.msra.mxu0 %v2552
    %2931 = vmatprep.subr.bf16.mxu0 0
    %2932 = vmatpush1.bf16.msra.mxu0 %v2553
    %2933 = vmatprep.subr.bf16.mxu0 0
    %2934 = vmatpush1.bf16.msra.mxu0 %v2554
    %2935 = vmatprep.subr.bf16.mxu0 0
    %2936 = vmatpush1.bf16.msra.mxu0 %v2555
    %2937 = vmatprep.subr.bf16.mxu0 0
    %2938 = vmatpush1.bf16.msra.mxu0 %v2556
    %2939 = vmatprep.subr.bf16.mxu0 0
    %2940 = vmatpush1.bf16.msra.mxu0 %v2557
    %2941 = vmatprep.subr.bf16.mxu0 0
    %2942 = vmatpush1.bf16.msra.mxu0 %v2558
    %2943 = vmatprep.mubr.bf16.mxu0 %v1984
    %2944 = vmatmul.mubr.bf16.gmra.mrb[0].mxu0 %v1983
    %v2945 = vpop.f32.mrb[0].mxu0
    %v2946 = vadd.f32 %v2906, %v2945
    %v2947 = vpop.f32.mrb[0].mxu0
    %v2948 = vpop.f32.mrb[0].mxu0
    %v2949 = vpop.f32.mrb[0].mxu0
    %2950 = vdwg.mxu0
    %v2951 = vpack.c.bf16 %v2946, %v2946
    %v2952 = vld [vmem:[#allocation8] sm:$0xff]
    %v2953 = vld [vmem:[#allocation8 + $0x8] sm:$0xff]
    %v2954 = vld [vmem:[#allocation8 + $0x10] sm:$0xff]
    %v2955 = vld [vmem:[#allocation8 + $0x18] sm:$0xff]
    %v2956 = vld [vmem:[#allocation8 + $0x20] sm:$0xff]
    %v2957 = vld [vmem:[#allocation8 + $0x28] sm:$0xff]
    %v2958 = vld [vmem:[#allocation8 + $0x30] sm:$0xff]
    %v2959 = vld [vmem:[#allocation8 + $0x38] sm:$0xff]
    %v2960 = vld [vmem:[#allocation8 + $0x40] sm:$0xff]
    %v2961 = vld [vmem:[#allocation8 + $0x48] sm:$0xff]
    %v2962 = vld [vmem:[#allocation8 + $0x50] sm:$0xff]
    %v2963 = vld [vmem:[#allocation8 + $0x58] sm:$0xff]
    %v2964 = vld [vmem:[#allocation8 + $0x60] sm:$0xff]
    %v2965 = vld [vmem:[#allocation8 + $0x68] sm:$0xff]
    %v2966 = vld [vmem:[#allocation8 + $0x70] sm:$0xff]
    %v2967 = vld [vmem:[#allocation8 + $0x78] sm:$0xff]
    %v2968 = vld [vmem:[#allocation8 + $0x80] sm:$0xff]
    %v2969 = vld [vmem:[#allocation8 + $0x88] sm:$0xff]
    %v2970 = vld [vmem:[#allocation8 + $0x90] sm:$0xff]
    %v2971 = vld [vmem:[#allocation8 + $0x98] sm:$0xff]
    %v2972 = vld [vmem:[#allocation8 + $0xa0] sm:$0xff]
    %v2973 = vld [vmem:[#allocation8 + $0xa8] sm:$0xff]
    %v2974 = vld [vmem:[#allocation8 + $0xb0] sm:$0xff]
    %v2975 = vld [vmem:[#allocation8 + $0xb8] sm:$0xff]
    %v2976 = vld [vmem:[#allocation8 + $0xc0] sm:$0xff]
    %v2977 = vld [vmem:[#allocation8 + $0xc8] sm:$0xff]
    %v2978 = vld [vmem:[#allocation8 + $0xd0] sm:$0xff]
    %v2979 = vld [vmem:[#allocation8 + $0xd8] sm:$0xff]
    %v2980 = vld [vmem:[#allocation8 + $0xe0] sm:$0xff]
    %v2981 = vld [vmem:[#allocation8 + $0xe8] sm:$0xff]
    %v2982 = vld [vmem:[#allocation8 + $0xf0] sm:$0xff]
    %v2983 = vld [vmem:[#allocation8 + $0xf8] sm:$0xff]
    %v2984 = vld [vmem:[#allocation8 + $0x100] sm:$0xff]
    %v2985 = vld [vmem:[#allocation8 + $0x108] sm:$0xff]
    %v2986 = vld [vmem:[#allocation8 + $0x110] sm:$0xff]
    %v2987 = vld [vmem:[#allocation8 + $0x118] sm:$0xff]
    %v2988 = vld [vmem:[#allocation8 + $0x120] sm:$0xff]
    %v2989 = vld [vmem:[#allocation8 + $0x128] sm:$0xff]
    %v2990 = vld [vmem:[#allocation8 + $0x130] sm:$0xff]
    %v2991 = vld [vmem:[#allocation8 + $0x138] sm:$0xff]
    %v2992 = vld [vmem:[#allocation8 + $0x140] sm:$0xff]
    %v2993 = vld [vmem:[#allocation8 + $0x148] sm:$0xff]
    %v2994 = vld [vmem:[#allocation8 + $0x150] sm:$0xff]
    %v2995 = vld [vmem:[#allocation8 + $0x158] sm:$0xff]
    %v2996 = vld [vmem:[#allocation8 + $0x160] sm:$0xff]
    %v2997 = vld [vmem:[#allocation8 + $0x168] sm:$0xff]
    %v2998 = vld [vmem:[#allocation8 + $0x170] sm:$0xff]
    %v2999 = vld [vmem:[#allocation8 + $0x178] sm:$0xff]
    %v3000 = vld [vmem:[#allocation8 + $0x180] sm:$0xff]
    %v3001 = vld [vmem:[#allocation8 + $0x188] sm:$0xff]
    %v3002 = vld [vmem:[#allocation8 + $0x190] sm:$0xff]
    %v3003 = vld [vmem:[#allocation8 + $0x198] sm:$0xff]
    %v3004 = vld [vmem:[#allocation8 + $0x1a0] sm:$0xff]
    %v3005 = vld [vmem:[#allocation8 + $0x1a8] sm:$0xff]
    %v3006 = vld [vmem:[#allocation8 + $0x1b0] sm:$0xff]
    %v3007 = vld [vmem:[#allocation8 + $0x1b8] sm:$0xff]
    %v3008 = vld [vmem:[#allocation11 + $0x7] sm:$0xff]
    %v3009 = vld [vmem:[#allocation11 + $0xf] sm:$0x3f]
    %v3012 = vlaneseq
    %v3013 = vshrl.u32 %v3012, 7
    %v3014 = vsub.s32 0, %v3013
    %v3015 = vrot.slane %v3008, %v3014
    %v3016 = vlaneseq
    %v3017 = vshrl.u32 %v3016, 7
    %v3018 = vsub.s32 1, %v3017
    %v3019 = vrot.slane %v3008, %v3018
    %v3020 = vlaneseq
    %v3021 = vshrl.u32 %v3020, 7
    %v3022 = vsub.s32 2, %v3021
    %v3023 = vrot.slane %v3008, %v3022
    %v3024 = vlaneseq
    %v3025 = vshrl.u32 %v3024, 7
    %v3026 = vsub.s32 3, %v3025
    %v3027 = vrot.slane %v3008, %v3026
    %v3028 = vlaneseq
    %v3029 = vshrl.u32 %v3028, 7
    %v3030 = vsub.s32 4, %v3029
    %v3031 = vrot.slane %v3008, %v3030
    %v3032 = vlaneseq
    %v3033 = vshrl.u32 %v3032, 7
    %v3034 = vsub.s32 5, %v3033
    %v3035 = vrot.slane %v3008, %v3034
    %v3036 = vlaneseq
    %v3037 = vshrl.u32 %v3036, 7
    %v3038 = vsub.s32 6, %v3037
    %v3039 = vrot.slane %v3008, %v3038
    %v3040 = vlaneseq
    %v3041 = vshrl.u32 %v3040, 7
    %v3042 = vsub.s32 7, %v3041
    %v3043 = vrot.slane %v3008, %v3042
    %v3044 = vlaneseq
    %v3045 = vshrl.u32 %v3044, 7
    %v3046 = vsub.s32 0, %v3045
    %v3047 = vrot.slane %v3009, %v3046
    %v3048 = vlaneseq
    %v3049 = vshrl.u32 %v3048, 7
    %v3050 = vsub.s32 1, %v3049
    %v3051 = vrot.slane %v3009, %v3050
    %v3052 = vlaneseq
    %v3053 = vshrl.u32 %v3052, 7
    %v3054 = vsub.s32 2, %v3053
    %v3055 = vrot.slane %v3009, %v3054
    %v3056 = vlaneseq
    %v3057 = vshrl.u32 %v3056, 7
    %v3058 = vsub.s32 3, %v3057
    %v3059 = vrot.slane %v3009, %v3058
    %v3060 = vlaneseq
    %v3061 = vshrl.u32 %v3060, 7
    %v3062 = vsub.s32 4, %v3061
    %v3063 = vrot.slane %v3009, %v3062
    %v3064 = vlaneseq
    %v3065 = vshrl.u32 %v3064, 7
    %v3066 = vsub.s32 5, %v3065
    %v3067 = vrot.slane %v3009, %v3066
    %v3138 = vunpack.c.l.b16 %v2952
    %v3139 = vunpack.c.h.b16 %v2952
    %v3140 = vunpack.c.l.b16 %v2953
    %v3141 = vunpack.c.h.b16 %v2953
    %v3142 = vunpack.c.l.b16 %v2954
    %v3143 = vunpack.c.h.b16 %v2954
    %v3144 = vunpack.c.l.b16 %v2955
    %v3145 = vunpack.c.h.b16 %v2955
    %v3146 = vunpack.c.l.b16 %v2956
    %v3147 = vunpack.c.h.b16 %v2956
    %v3148 = vunpack.c.l.b16 %v2957
    %v3149 = vunpack.c.h.b16 %v2957
    %v3150 = vunpack.c.l.b16 %v2958
    %v3151 = vunpack.c.h.b16 %v2958
    %v3152 = vunpack.c.l.b16 %v2959
    %v3153 = vunpack.c.h.b16 %v2959
    %v3154 = vunpack.c.l.b16 %v2960
    %v3155 = vunpack.c.h.b16 %v2960
    %v3156 = vunpack.c.l.b16 %v2961
    %v3157 = vunpack.c.h.b16 %v2961
    %v3158 = vunpack.c.l.b16 %v2962
    %v3159 = vunpack.c.h.b16 %v2962
    %v3160 = vunpack.c.l.b16 %v2963
    %v3161 = vunpack.c.h.b16 %v2963
    %v3162 = vunpack.c.l.b16 %v2964
    %v3163 = vunpack.c.h.b16 %v2964
    %v3164 = vunpack.c.l.b16 %v2965
    %v3165 = vunpack.c.h.b16 %v2965
    %v3166 = vunpack.c.l.b16 %v2966
    %v3167 = vunpack.c.h.b16 %v2966
    %v3168 = vunpack.c.l.b16 %v2967
    %v3169 = vunpack.c.h.b16 %v2967
    %v3170 = vunpack.c.l.b16 %v2968
    %v3171 = vunpack.c.h.b16 %v2968
    %v3172 = vunpack.c.l.b16 %v2969
    %v3173 = vunpack.c.h.b16 %v2969
    %v3174 = vunpack.c.l.b16 %v2970
    %v3175 = vunpack.c.h.b16 %v2970
    %v3176 = vunpack.c.l.b16 %v2971
    %v3177 = vunpack.c.h.b16 %v2971
    %v3178 = vunpack.c.l.b16 %v2972
    %v3179 = vunpack.c.h.b16 %v2972
    %v3180 = vunpack.c.l.b16 %v2973
    %v3181 = vunpack.c.h.b16 %v2973
    %v3182 = vunpack.c.l.b16 %v2974
    %v3183 = vunpack.c.h.b16 %v2974
    %v3184 = vunpack.c.l.b16 %v2975
    %v3185 = vunpack.c.h.b16 %v2975
    %v3186 = vunpack.c.l.b16 %v2976
    %v3187 = vunpack.c.h.b16 %v2976
    %v3188 = vunpack.c.l.b16 %v2977
    %v3189 = vunpack.c.h.b16 %v2977
    %v3190 = vunpack.c.l.b16 %v2978
    %v3191 = vunpack.c.h.b16 %v2978
    %v3192 = vunpack.c.l.b16 %v2979
    %v3193 = vunpack.c.h.b16 %v2979
    %v3194 = vunpack.c.l.b16 %v2980
    %v3195 = vunpack.c.h.b16 %v2980
    %v3196 = vunpack.c.l.b16 %v2981
    %v3197 = vunpack.c.h.b16 %v2981
    %v3198 = vunpack.c.l.b16 %v2982
    %v3199 = vunpack.c.h.b16 %v2982
    %v3200 = vunpack.c.l.b16 %v2983
    %v3201 = vunpack.c.h.b16 %v2983
    %v3202 = vunpack.c.l.b16 %v2984
    %v3203 = vunpack.c.h.b16 %v2984
    %v3204 = vunpack.c.l.b16 %v2985
    %v3205 = vunpack.c.h.b16 %v2985
    %v3206 = vunpack.c.l.b16 %v2986
    %v3207 = vunpack.c.h.b16 %v2986
    %v3208 = vunpack.c.l.b16 %v2987
    %v3209 = vunpack.c.h.b16 %v2987
    %v3210 = vunpack.c.l.b16 %v2988
    %v3211 = vunpack.c.h.b16 %v2988
    %v3212 = vunpack.c.l.b16 %v2989
    %v3213 = vunpack.c.h.b16 %v2989
    %v3214 = vunpack.c.l.b16 %v2990
    %v3215 = vunpack.c.h.b16 %v2990
    %v3216 = vunpack.c.l.b16 %v2991
    %v3217 = vunpack.c.h.b16 %v2991
    %v3218 = vunpack.c.l.b16 %v2992
    %v3219 = vunpack.c.h.b16 %v2992
    %v3220 = vunpack.c.l.b16 %v2993
    %v3221 = vunpack.c.h.b16 %v2993
    %v3222 = vunpack.c.l.b16 %v2994
    %v3223 = vunpack.c.h.b16 %v2994
    %v3224 = vunpack.c.l.b16 %v2995
    %v3225 = vunpack.c.h.b16 %v2995
    %v3226 = vunpack.c.l.b16 %v2996
    %v3227 = vunpack.c.h.b16 %v2996
    %v3228 = vunpack.c.l.b16 %v2997
    %v3229 = vunpack.c.h.b16 %v2997
    %v3230 = vunpack.c.l.b16 %v2998
    %v3231 = vunpack.c.h.b16 %v2998
    %v3232 = vunpack.c.l.b16 %v2999
    %v3233 = vunpack.c.h.b16 %v2999
    %v3234 = vunpack.c.l.b16 %v3000
    %v3235 = vunpack.c.h.b16 %v3000
    %v3236 = vunpack.c.l.b16 %v3001
    %v3237 = vunpack.c.h.b16 %v3001
    %v3238 = vunpack.c.l.b16 %v3002
    %v3239 = vunpack.c.h.b16 %v3002
    %v3240 = vunpack.c.l.b16 %v3003
    %v3241 = vunpack.c.h.b16 %v3003
    %v3242 = vunpack.c.l.b16 %v3004
    %v3243 = vunpack.c.h.b16 %v3004
    %v3244 = vunpack.c.l.b16 %v3005
    %v3245 = vunpack.c.h.b16 %v3005
    %v3246 = vunpack.c.l.b16 %v3006
    %v3247 = vunpack.c.h.b16 %v3006
    %v3248 = vunpack.c.l.b16 %v3007
    %v3249 = vunpack.c.h.b16 %v3007
    %v3250 = vpack.c.b16 %v3152, %v3138
    %v3251 = vpack.c.b16 %v3153, %v3139
    %v3252 = vpack.c.b16 %v3154, %v3140
    %v3253 = vpack.c.b16 %v3155, %v3141
    %v3254 = vpack.c.b16 %v3156, %v3142
    %v3255 = vpack.c.b16 %v3157, %v3143
    %v3256 = vpack.c.b16 %v3158, %v3144
    %v3257 = vpack.c.b16 %v3159, %v3145
    %v3258 = vpack.c.b16 %v3160, %v3146
    %v3259 = vpack.c.b16 %v3161, %v3147
    %v3260 = vpack.c.b16 %v3162, %v3148
    %v3261 = vpack.c.b16 %v3163, %v3149
    %v3262 = vpack.c.b16 %v3164, %v3150
    %v3263 = vpack.c.b16 %v3165, %v3151
    %v3264 = vpack.c.b16 %v3180, %v3166
    %v3265 = vpack.c.b16 %v3181, %v3167
    %v3266 = vpack.c.b16 %v3182, %v3168
    %v3267 = vpack.c.b16 %v3183, %v3169
    %v3268 = vpack.c.b16 %v3184, %v3170
    %v3269 = vpack.c.b16 %v3185, %v3171
    %v3270 = vpack.c.b16 %v3186, %v3172
    %v3271 = vpack.c.b16 %v3187, %v3173
    %v3272 = vpack.c.b16 %v3188, %v3174
    %v3273 = vpack.c.b16 %v3189, %v3175
    %v3274 = vpack.c.b16 %v3190, %v3176
    %v3275 = vpack.c.b16 %v3191, %v3177
    %v3276 = vpack.c.b16 %v3192, %v3178
    %v3277 = vpack.c.b16 %v3193, %v3179
    %v3278 = vpack.c.b16 %v3208, %v3194
    %v3279 = vpack.c.b16 %v3209, %v3195
    %v3280 = vpack.c.b16 %v3210, %v3196
    %v3281 = vpack.c.b16 %v3211, %v3197
    %v3282 = vpack.c.b16 %v3212, %v3198
    %v3283 = vpack.c.b16 %v3213, %v3199
    %v3284 = vpack.c.b16 %v3214, %v3200
    %v3285 = vpack.c.b16 %v3215, %v3201
    %v3286 = vpack.c.b16 %v3216, %v3202
    %v3287 = vpack.c.b16 %v3217, %v3203
    %v3288 = vpack.c.b16 %v3218, %v3204
    %v3289 = vpack.c.b16 %v3219, %v3205
    %v3290 = vpack.c.b16 %v3220, %v3206
    %v3291 = vpack.c.b16 %v3221, %v3207
    %v3292 = vpack.c.b16 %v3236, %v3222
    %v3293 = vpack.c.b16 %v3237, %v3223
    %v3294 = vpack.c.b16 %v3238, %v3224
    %v3295 = vpack.c.b16 %v3239, %v3225
    %v3296 = vpack.c.b16 %v3240, %v3226
    %v3297 = vpack.c.b16 %v3241, %v3227
    %v3298 = vpack.c.b16 %v3242, %v3228
    %v3299 = vpack.c.b16 %v3243, %v3229
    %v3300 = vpack.c.b16 %v3244, %v3230
    %v3301 = vpack.c.b16 %v3245, %v3231
    %v3302 = vpack.c.b16 %v3246, %v3232
    %v3303 = vpack.c.b16 %v3247, %v3233
    %v3304 = vpack.c.b16 %v3248, %v3234
    %v3305 = vpack.c.b16 %v3249, %v3235
    %vm3362 = vcmask 523264
    %v3364 = vsel %vm3362, %v2951, 0
    %3366 = vmatprep.subr.bf16.mxu0 %v3251
    %3367 = vmatpush1.bf16.msra.mxu0 %v3250
    %3368 = vmatprep.subr.bf16.mxu0 %v3265
    %3369 = vmatpush1.bf16.msra.mxu0 %v3264
    %3370 = vmatprep.subr.bf16.mxu0 %v3279
    %3371 = vmatpush1.bf16.msra.mxu0 %v3278
    %3372 = vmatprep.subr.bf16.mxu0 %v3293
    %3373 = vmatpush1.bf16.msra.mxu0 %v3292
    %3374 = vmatprep.subr.bf16.mxu0 0
    %3375 = vmatpush1.bf16.msra.mxu0 0
    %3376 = vmatprep.subr.bf16.mxu0 0
    %3377 = vmatpush1.bf16.msra.mxu0 0
    %3378 = vmatprep.subr.bf16.mxu0 0
    %3379 = vmatpush1.bf16.msra.mxu0 0
    %3380 = vmatprep.subr.bf16.mxu0 0
    %3381 = vmatpush1.bf16.msra.mxu0 0
    %3382 = vmatprep.subr.bf16.mxu0 0
    %3383 = vmatpush1.bf16.msra.mxu0 0
    %3384 = vmatprep.subr.bf16.mxu0 0
    %3385 = vmatpush1.bf16.msra.mxu0 0
    %3386 = vmatprep.subr.bf16.mxu0 0
    %3387 = vmatpush1.bf16.msra.mxu0 0
    %3388 = vmatprep.subr.bf16.mxu0 0
    %3389 = vmatpush1.bf16.msra.mxu0 0
    %3390 = vmatprep.subr.bf16.mxu0 0
    %3391 = vmatpush1.bf16.msra.mxu0 0
    %3392 = vmatprep.subr.bf16.mxu0 0
    %3393 = vmatpush1.bf16.msra.mxu0 0
    %3394 = vmatprep.subr.bf16.mxu0 0
    %3395 = vmatpush1.bf16.msra.mxu0 0
    %3396 = vmatprep.subr.bf16.mxu0 0
    %3397 = vmatpush1.bf16.msra.mxu0 0
    %3398 = vmatprep.mubr.bf16.mxu0 0
    %3399 = vmatmul.mubr.bf16.gmra.mrb[0].mxu0 %v3364
    %v3400 = vpop.f32.mrb[0].mxu0
    %v3401 = vadd.f32 %v3015, %v3400
    %v3402 = vpop.f32.mrb[0].mxu0
    %v3403 = vadd.f32 %v3019, %v3402
    %v3404 = vpop.f32.mrb[0].mxu0
    %v3405 = vpop.f32.mrb[0].mxu0
    %3406 = vdwg.mxu0
    %3407 = vmatprep.subr.bf16.mxu0 %v3253
    %3408 = vmatpush1.bf16.msra.mxu0 %v3252
    %3409 = vmatprep.subr.bf16.mxu0 %v3267
    %3410 = vmatpush1.bf16.msra.mxu0 %v3266
    %3411 = vmatprep.subr.bf16.mxu0 %v3281
    %3412 = vmatpush1.bf16.msra.mxu0 %v3280
    %3413 = vmatprep.subr.bf16.mxu0 %v3295
    %3414 = vmatpush1.bf16.msra.mxu0 %v3294
    %3415 = vmatprep.subr.bf16.mxu0 0
    %3416 = vmatpush1.bf16.msra.mxu0 0
    %3417 = vmatprep.subr.bf16.mxu0 0
    %3418 = vmatpush1.bf16.msra.mxu0 0
    %3419 = vmatprep.subr.bf16.mxu0 0
    %3420 = vmatpush1.bf16.msra.mxu0 0
    %3421 = vmatprep.subr.bf16.mxu0 0
    %3422 = vmatpush1.bf16.msra.mxu0 0
    %3423 = vmatprep.subr.bf16.mxu0 0
    %3424 = vmatpush1.bf16.msra.mxu0 0
    %3425 = vmatprep.subr.bf16.mxu0 0
    %3426 = vmatpush1.bf16.msra.mxu0 0
    %3427 = vmatprep.subr.bf16.mxu0 0
    %3428 = vmatpush1.bf16.msra.mxu0 0
    %3429 = vmatprep.subr.bf16.mxu0 0
    %3430 = vmatpush1.bf16.msra.mxu0 0
    %3431 = vmatprep.subr.bf16.mxu0 0
    %3432 = vmatpush1.bf16.msra.mxu0 0
    %3433 = vmatprep.subr.bf16.mxu0 0
    %3434 = vmatpush1.bf16.msra.mxu0 0
    %3435 = vmatprep.subr.bf16.mxu0 0
    %3436 = vmatpush1.bf16.msra.mxu0 0
    %3437 = vmatprep.subr.bf16.mxu0 0
    %3438 = vmatpush1.bf16.msra.mxu0 0
    %3439 = vmatprep.mubr.bf16.mxu0 0
    %3440 = vmatmul.mubr.bf16.gmra.mrb[0].mxu0 %v3364
    %v3441 = vpop.f32.mrb[0].mxu0
    %v3442 = vadd.f32 %v3023, %v3441
    %v3443 = vpop.f32.mrb[0].mxu0
    %v3444 = vadd.f32 %v3027, %v3443
    %v3445 = vpop.f32.mrb[0].mxu0
    %v3446 = vpop.f32.mrb[0].mxu0
    %3447 = vdwg.mxu0
    %3448 = vmatprep.subr.bf16.mxu0 %v3255
    %3449 = vmatpush1.bf16.msra.mxu0 %v3254
    %3450 = vmatprep.subr.bf16.mxu0 %v3269
    %3451 = vmatpush1.bf16.msra.mxu0 %v3268
    %3452 = vmatprep.subr.bf16.mxu0 %v3283
    %3453 = vmatpush1.bf16.msra.mxu0 %v3282
    %3454 = vmatprep.subr.bf16.mxu0 %v3297
    %3455 = vmatpush1.bf16.msra.mxu0 %v3296
    %3456 = vmatprep.subr.bf16.mxu0 0
    %3457 = vmatpush1.bf16.msra.mxu0 0
    %3458 = vmatprep.subr.bf16.mxu0 0
    %3459 = vmatpush1.bf16.msra.mxu0 0
    %3460 = vmatprep.subr.bf16.mxu0 0
    %3461 = vmatpush1.bf16.msra.mxu0 0
    %3462 = vmatprep.subr.bf16.mxu0 0
    %3463 = vmatpush1.bf16.msra.mxu0 0
    %3464 = vmatprep.subr.bf16.mxu0 0
    %3465 = vmatpush1.bf16.msra.mxu0 0
    %3466 = vmatprep.subr.bf16.mxu0 0
    %3467 = vmatpush1.bf16.msra.mxu0 0
    %3468 = vmatprep.subr.bf16.mxu0 0
    %3469 = vmatpush1.bf16.msra.mxu0 0
    %3470 = vmatprep.subr.bf16.mxu0 0
    %3471 = vmatpush1.bf16.msra.mxu0 0
    %3472 = vmatprep.subr.bf16.mxu0 0
    %3473 = vmatpush1.bf16.msra.mxu0 0
    %3474 = vmatprep.subr.bf16.mxu0 0
    %3475 = vmatpush1.bf16.msra.mxu0 0
    %3476 = vmatprep.subr.bf16.mxu0 0
    %3477 = vmatpush1.bf16.msra.mxu0 0
    %3478 = vmatprep.subr.bf16.mxu0 0
    %3479 = vmatpush1.bf16.msra.mxu0 0
    %3480 = vmatprep.mubr.bf16.mxu0 0
    %3481 = vmatmul.mubr.bf16.gmra.mrb[0].mxu0 %v3364
    %v3482 = vpop.f32.mrb[0].mxu0
    %v3483 = vadd.f32 %v3031, %v3482
    %v3484 = vpop.f32.mrb[0].mxu0
    %v3485 = vadd.f32 %v3035, %v3484
    %v3486 = vpop.f32.mrb[0].mxu0
    %v3487 = vpop.f32.mrb[0].mxu0
    %3488 = vdwg.mxu0
    %3489 = vmatprep.subr.bf16.mxu0 %v3257
    %3490 = vmatpush1.bf16.msra.mxu0 %v3256
    %3491 = vmatprep.subr.bf16.mxu0 %v3271
    %3492 = vmatpush1.bf16.msra.mxu0 %v3270
    %3493 = vmatprep.subr.bf16.mxu0 %v3285
    %3494 = vmatpush1.bf16.msra.mxu0 %v3284
    %3495 = vmatprep.subr.bf16.mxu0 %v3299
    %3496 = vmatpush1.bf16.msra.mxu0 %v3298
    %3497 = vmatprep.subr.bf16.mxu0 0
    %3498 = vmatpush1.bf16.msra.mxu0 0
    %3499 = vmatprep.subr.bf16.mxu0 0
    %3500 = vmatpush1.bf16.msra.mxu0 0
    %3501 = vmatprep.subr.bf16.mxu0 0
    %3502 = vmatpush1.bf16.msra.mxu0 0
    %3503 = vmatprep.subr.bf16.mxu0 0
    %3504 = vmatpush1.bf16.msra.mxu0 0
    %3505 = vmatprep.subr.bf16.mxu0 0
    %3506 = vmatpush1.bf16.msra.mxu0 0
    %3507 = vmatprep.subr.bf16.mxu0 0
    %3508 = vmatpush1.bf16.msra.mxu0 0
    %3509 = vmatprep.subr.bf16.mxu0 0
    %3510 = vmatpush1.bf16.msra.mxu0 0
    %3511 = vmatprep.subr.bf16.mxu0 0
    %3512 = vmatpush1.bf16.msra.mxu0 0
    %3513 = vmatprep.subr.bf16.mxu0 0
    %3514 = vmatpush1.bf16.msra.mxu0 0
    %3515 = vmatprep.subr.bf16.mxu0 0
    %3516 = vmatpush1.bf16.msra.mxu0 0
    %3517 = vmatprep.subr.bf16.mxu0 0
    %3518 = vmatpush1.bf16.msra.mxu0 0
    %3519 = vmatprep.subr.bf16.mxu0 0
    %3520 = vmatpush1.bf16.msra.mxu0 0
    %3521 = vmatprep.mubr.bf16.mxu0 0
    %3522 = vmatmul.mubr.bf16.gmra.mrb[0].mxu0 %v3364
    %v3523 = vpop.f32.mrb[0].mxu0
    %v3524 = vadd.f32 %v3039, %v3523
    %v3525 = vpop.f32.mrb[0].mxu0
    %v3526 = vadd.f32 %v3043, %v3525
    %v3527 = vpop.f32.mrb[0].mxu0
    %v3528 = vpop.f32.mrb[0].mxu0
    %3529 = vdwg.mxu0
    %3530 = vmatprep.subr.bf16.mxu0 %v3259
    %3531 = vmatpush1.bf16.msra.mxu0 %v3258
    %3532 = vmatprep.subr.bf16.mxu0 %v3273
    %3533 = vmatpush1.bf16.msra.mxu0 %v3272
    %3534 = vmatprep.subr.bf16.mxu0 %v3287
    %3535 = vmatpush1.bf16.msra.mxu0 %v3286
    %3536 = vmatprep.subr.bf16.mxu0 %v3301
    %3537 = vmatpush1.bf16.msra.mxu0 %v3300
    %3538 = vmatprep.subr.bf16.mxu0 0
    %3539 = vmatpush1.bf16.msra.mxu0 0
    %3540 = vmatprep.subr.bf16.mxu0 0
    %3541 = vmatpush1.bf16.msra.mxu0 0
    %3542 = vmatprep.subr.bf16.mxu0 0
    %3543 = vmatpush1.bf16.msra.mxu0 0
    %3544 = vmatprep.subr.bf16.mxu0 0
    %3545 = vmatpush1.bf16.msra.mxu0 0
    %3546 = vmatprep.subr.bf16.mxu0 0
    %3547 = vmatpush1.bf16.msra.mxu0 0
    %3548 = vmatprep.subr.bf16.mxu0 0
    %3549 = vmatpush1.bf16.msra.mxu0 0
    %3550 = vmatprep.subr.bf16.mxu0 0
    %3551 = vmatpush1.bf16.msra.mxu0 0
    %3552 = vmatprep.subr.bf16.mxu0 0
    %3553 = vmatpush1.bf16.msra.mxu0 0
    %3554 = vmatprep.subr.bf16.mxu0 0
    %3555 = vmatpush1.bf16.msra.mxu0 0
    %3556 = vmatprep.subr.bf16.mxu0 0
    %3557 = vmatpush1.bf16.msra.mxu0 0
    %3558 = vmatprep.subr.bf16.mxu0 0
    %3559 = vmatpush1.bf16.msra.mxu0 0
    %3560 = vmatprep.subr.bf16.mxu0 0
    %3561 = vmatpush1.bf16.msra.mxu0 0
    %3562 = vmatprep.mubr.bf16.mxu0 0
    %3563 = vmatmul.mubr.bf16.gmra.mrb[0].mxu0 %v3364
    %v3564 = vpop.f32.mrb[0].mxu0
    %v3565 = vadd.f32 %v3047, %v3564
    %v3566 = vpop.f32.mrb[0].mxu0
    %v3567 = vadd.f32 %v3051, %v3566
    %v3568 = vpop.f32.mrb[0].mxu0
    %v3569 = vpop.f32.mrb[0].mxu0
    %3570 = vdwg.mxu0
    %3571 = vmatprep.subr.bf16.mxu0 %v3261
    %3572 = vmatpush1.bf16.msra.mxu0 %v3260
    %3573 = vmatprep.subr.bf16.mxu0 %v3275
    %3574 = vmatpush1.bf16.msra.mxu0 %v3274
    %3575 = vmatprep.subr.bf16.mxu0 %v3289
    %3576 = vmatpush1.bf16.msra.mxu0 %v3288
    %3577 = vmatprep.subr.bf16.mxu0 %v3303
    %3578 = vmatpush1.bf16.msra.mxu0 %v3302
    %3579 = vmatprep.subr.bf16.mxu0 0
    %3580 = vmatpush1.bf16.msra.mxu0 0
    %3581 = vmatprep.subr.bf16.mxu0 0
    %3582 = vmatpush1.bf16.msra.mxu0 0
    %3583 = vmatprep.subr.bf16.mxu0 0
    %3584 = vmatpush1.bf16.msra.mxu0 0
    %3585 = vmatprep.subr.bf16.mxu0 0
    %3586 = vmatpush1.bf16.msra.mxu0 0
    %3587 = vmatprep.subr.bf16.mxu0 0
    %3588 = vmatpush1.bf16.msra.mxu0 0
    %3589 = vmatprep.subr.bf16.mxu0 0
    %3590 = vmatpush1.bf16.msra.mxu0 0
    %3591 = vmatprep.subr.bf16.mxu0 0
    %3592 = vmatpush1.bf16.msra.mxu0 0
    %3593 = vmatprep.subr.bf16.mxu0 0
    %3594 = vmatpush1.bf16.msra.mxu0 0
    %3595 = vmatprep.subr.bf16.mxu0 0
    %3596 = vmatpush1.bf16.msra.mxu0 0
    %3597 = vmatprep.subr.bf16.mxu0 0
    %3598 = vmatpush1.bf16.msra.mxu0 0
    %3599 = vmatprep.subr.bf16.mxu0 0
    %3600 = vmatpush1.bf16.msra.mxu0 0
    %3601 = vmatprep.subr.bf16.mxu0 0
    %3602 = vmatpush1.bf16.msra.mxu0 0
    %3603 = vmatprep.mubr.bf16.mxu0 0
    %3604 = vmatmul.mubr.bf16.gmra.mrb[0].mxu0 %v3364
    %v3605 = vpop.f32.mrb[0].mxu0
    %v3606 = vadd.f32 %v3055, %v3605
    %v3607 = vpop.f32.mrb[0].mxu0
    %v3608 = vadd.f32 %v3059, %v3607
    %v3609 = vpop.f32.mrb[0].mxu0
    %v3610 = vpop.f32.mrb[0].mxu0
    %3611 = vdwg.mxu0
    %3612 = vmatprep.subr.bf16.mxu0 %v3263
    %3613 = vmatpush1.bf16.msra.mxu0 %v3262
    %3614 = vmatprep.subr.bf16.mxu0 %v3277
    %3615 = vmatpush1.bf16.msra.mxu0 %v3276
    %3616 = vmatprep.subr.bf16.mxu0 %v3291
    %3617 = vmatpush1.bf16.msra.mxu0 %v3290
    %3618 = vmatprep.subr.bf16.mxu0 %v3305
    %3619 = vmatpush1.bf16.msra.mxu0 %v3304
    %3620 = vmatprep.subr.bf16.mxu0 0
    %3621 = vmatpush1.bf16.msra.mxu0 0
    %3622 = vmatprep.subr.bf16.mxu0 0
    %3623 = vmatpush1.bf16.msra.mxu0 0
    %3624 = vmatprep.subr.bf16.mxu0 0
    %3625 = vmatpush1.bf16.msra.mxu0 0
    %3626 = vmatprep.subr.bf16.mxu0 0
    %3627 = vmatpush1.bf16.msra.mxu0 0
    %3628 = vmatprep.subr.bf16.mxu0 0
    %3629 = vmatpush1.bf16.msra.mxu0 0
    %3630 = vmatprep.subr.bf16.mxu0 0
    %3631 = vmatpush1.bf16.msra.mxu0 0
    %3632 = vmatprep.subr.bf16.mxu0 0
    %3633 = vmatpush1.bf16.msra.mxu0 0
    %3634 = vmatprep.subr.bf16.mxu0 0
    %3635 = vmatpush1.bf16.msra.mxu0 0
    %3636 = vmatprep.subr.bf16.mxu0 0
    %3637 = vmatpush1.bf16.msra.mxu0 0
    %3638 = vmatprep.subr.bf16.mxu0 0
    %3639 = vmatpush1.bf16.msra.mxu0 0
    %3640 = vmatprep.subr.bf16.mxu0 0
    %3641 = vmatpush1.bf16.msra.mxu0 0
    %3642 = vmatprep.subr.bf16.mxu0 0
    %3643 = vmatpush1.bf16.msra.mxu0 0
    %3644 = vmatprep.mubr.bf16.mxu0 0
    %3645 = vmatmul.mubr.bf16.gmra.mrb[0].mxu0 %v3364
    %v3646 = vpop.f32.mrb[0].mxu0
    %v3647 = vadd.f32 %v3063, %v3646
    %v3648 = vpop.f32.mrb[0].mxu0
    %v3649 = vadd.f32 %v3067, %v3648
    %v3650 = vpop.f32.mrb[0].mxu0
    %v3651 = vpop.f32.mrb[0].mxu0
    %3652 = vdwg.mxu0
    %v3653 = vmax.f32 %v3401, 0.0
    %v3654 = vmax.f32 %v3403, 0.0
    %v3655 = vmax.f32 %v3442, 0.0
    %v3656 = vmax.f32 %v3444, 0.0
    %v3657 = vmax.f32 %v3483, 0.0
    %v3658 = vmax.f32 %v3485, 0.0
    %v3659 = vmax.f32 %v3524, 0.0
    %v3660 = vmax.f32 %v3526, 0.0
    %v3661 = vmax.f32 %v3565, 0.0
    %v3662 = vmax.f32 %v3567, 0.0
    %v3663 = vmax.f32 %v3606, 0.0
    %v3664 = vmax.f32 %v3608, 0.0
    %v3665 = vmax.f32 %v3647, 0.0
    %v3666 = vmax.f32 %v3649, 0.0
    %v3667 = vpack.c.bf16 %v3653, %v3653
    %v3668 = vpack.c.bf16 %v3654, %v3654
    %v3671 = vrot.slane %v3667, 4
    %v3672 = vrot.slane %v3668, 4
    %3675 = vst [vmem:[#allocation4] sm:$0x10] %v3671
    %3676 = vst [vmem:[#allocation4 + $0x8] sm:$0x10] %v3672
    %v3677 = vpack.c.bf16 %v3655, %v3655
    %v3678 = vpack.c.bf16 %v3656, %v3656
    %v3681 = vrot.slane %v3677, 3
    %v3682 = vrot.slane %v3678, 3
    %3685 = vst [vmem:[#allocation4] sm:$0x20] %v3681
    %3686 = vst [vmem:[#allocation4 + $0x8] sm:$0x20] %v3682
    %v3687 = vpack.c.bf16 %v3657, %v3657
    %v3688 = vpack.c.bf16 %v3658, %v3658
    %v3691 = vrot.slane %v3687, 2
    %v3692 = vrot.slane %v3688, 2
    %3695 = vst [vmem:[#allocation4] sm:$0x40] %v3691
    %3696 = vst [vmem:[#allocation4 + $0x8] sm:$0x40] %v3692
    %v3697 = vpack.c.bf16 %v3659, %v3659
    %v3698 = vpack.c.bf16 %v3660, %v3660
    %v3701 = vrot.slane %v3697, 1
    %v3702 = vrot.slane %v3698, 1
    %3705 = vst [vmem:[#allocation4] sm:$0x80] %v3701
    %3706 = vst [vmem:[#allocation4 + $0x8] sm:$0x80] %v3702
    %v3707 = vpack.c.bf16 %v3661, %v3661
    %v3708 = vpack.c.bf16 %v3662, %v3662
    %3709 = vst [vmem:[#allocation4 + $0x10] sm:$0x1] %v3707
    %3710 = vst [vmem:[#allocation4 + $0x18] sm:$0x1] %v3708
    %v3711 = vpack.c.bf16 %v3663, %v3663
    %v3712 = vpack.c.bf16 %v3664, %v3664
    %v3715 = vrot.slane %v3711, 7
    %v3716 = vrot.slane %v3712, 7
    %3719 = vst [vmem:[#allocation4 + $0x10] sm:$0x2] %v3715
    %3720 = vst [vmem:[#allocation4 + $0x18] sm:$0x2] %v3716
    %v3721 = vpack.c.bf16 %v3665, %v3665
    %v3722 = vpack.c.bf16 %v3666, %v3666
    %v3725 = vrot.slane %v3721, 6
    %v3726 = vrot.slane %v3722, 6
    %3729 = vst [vmem:[#allocation4 + $0x10] sm:$0x4] %v3725
    %3730 = vst [vmem:[#allocation4 + $0x18] sm:$0x4] %v3726
    %v3731 = vld [vmem:[#allocation11 + $0x15] sm:$0xf]
    %v3732 = vld [vmem:[#allocation4] sm:$0xf0]
    %v3733 = vld [vmem:[#allocation4 + $0x8] sm:$0xf0]
    %v3734 = vld [vmem:[#allocation4 + $0x10] sm:$0x7]
    %v3735 = vld [vmem:[#allocation4 + $0x18] sm:$0x7]
    %v3736 = vld [vmem:[#allocation4] sm:$0xe0]
    %v3737 = vld [vmem:[#allocation4 + $0x8] sm:$0xe0]
    %v3738 = vld [vmem:[#allocation4 + $0x10] sm:$0xf]
    %v3739 = vld [vmem:[#allocation4 + $0x18] sm:$0xf]
    %v3744 = vrot.slane %v3736, 1
    %v3745 = vrot.slane %v3738, 1
    %v3746 = vsel %vm680, %v3744, %v3745
    %v3747 = vrot.slane %v3737, 1
    %v3748 = vrot.slane %v3739, 1
    %v3749 = vsel %vm680, %v3747, %v3748
    %v3750 = vld [vmem:[%s5] sm:$0xff]
    %v3751 = vld [vmem:[%s5 + $0x8] sm:$0xff]
    %v3752 = vld [vmem:[%s5 + $0x10] sm:$0xff]
    %v3753 = vld [vmem:[%s5 + $0x18] sm:$0xff]
    %v3754 = vld [vmem:[%s5 + $0x20] sm:$0xff]
    %v3755 = vld [vmem:[%s5 + $0x28] sm:$0xff]
    %v3756 = vld [vmem:[%s5 + $0x30] sm:$0xff]
    %v3757 = vld [vmem:[%s5 + $0x38] sm:$0xff]
    %v3758 = vld [vmem:[%s5 + $0x40] sm:$0xff]
    %v3759 = vld [vmem:[%s5 + $0x48] sm:$0xff]
    %v3760 = vld [vmem:[%s5 + $0x50] sm:$0xff]
    %v3761 = vld [vmem:[%s5 + $0x58] sm:$0xff]
    %v3762 = vld [vmem:[%s5 + $0x60] sm:$0xff]
    %v3763 = vld [vmem:[%s5 + $0x68] sm:$0xff]
    %v3764 = vld [vmem:[%s5 + $0x70] sm:$0xff]
    %v3765 = vld [vmem:[%s5 + $0x78] sm:$0xff]
    %v3766 = vld [vmem:[%s5 + $0x80] sm:$0xff]
    %v3767 = vld [vmem:[%s5 + $0x88] sm:$0xff]
    %v3768 = vld [vmem:[%s5 + $0x90] sm:$0xff]
    %v3769 = vld [vmem:[%s5 + $0x98] sm:$0xff]
    %v3770 = vld [vmem:[%s5 + $0xa0] sm:$0xff]
    %v3771 = vld [vmem:[%s5 + $0xa8] sm:$0xff]
    %v3772 = vld [vmem:[%s5 + $0xb0] sm:$0xff]
    %v3773 = vld [vmem:[%s5 + $0xb8] sm:$0xff]
    %v3774 = vld [vmem:[%s5 + $0xc0] sm:$0xff]
    %v3775 = vld [vmem:[%s5 + $0xc8] sm:$0xff]
    %v3776 = vld [vmem:[%s5 + $0xd0] sm:$0xff]
    %v3777 = vld [vmem:[%s5 + $0xd8] sm:$0xff]
    %v3778 = vld [vmem:[%s5 + $0xe0] sm:$0xff]
    %v3779 = vld [vmem:[%s5 + $0xe8] sm:$0xff]
    %v3780 = vld [vmem:[%s5 + $0xf0] sm:$0xff]
    %v3781 = vld [vmem:[%s5 + $0xf8] sm:$0xff]
    %v3782 = vld [vmem:[%s5 + $0x100] sm:$0xff]
    %v3783 = vld [vmem:[%s5 + $0x108] sm:$0xff]
    %v3784 = vld [vmem:[%s5 + $0x110] sm:$0xff]
    %v3785 = vld [vmem:[%s5 + $0x118] sm:$0xff]
    %v3786 = vld [vmem:[%s5 + $0x120] sm:$0xff]
    %v3787 = vld [vmem:[%s5 + $0x128] sm:$0xff]
    %v3788 = vld [vmem:[%s5 + $0x130] sm:$0xff]
    %v3789 = vld [vmem:[%s5 + $0x138] sm:$0xff]
    %v3790 = vld [vmem:[%s5 + $0x140] sm:$0xff]
    %v3791 = vld [vmem:[%s5 + $0x148] sm:$0xff]
    %v3792 = vld [vmem:[%s5 + $0x150] sm:$0xff]
    %v3793 = vld [vmem:[%s5 + $0x158] sm:$0xff]
    %v3794 = vld [vmem:[%s5 + $0x160] sm:$0xff]
    %v3795 = vld [vmem:[%s5 + $0x168] sm:$0xff]
    %v3796 = vld [vmem:[%s5 + $0x170] sm:$0xff]
    %v3797 = vld [vmem:[%s5 + $0x178] sm:$0xff]
    %v3798 = vld [vmem:[%s5 + $0x180] sm:$0xff]
    %v3799 = vld [vmem:[%s5 + $0x188] sm:$0xff]
    %v3800 = vld [vmem:[%s5 + $0x190] sm:$0xff]
    %v3801 = vld [vmem:[%s5 + $0x198] sm:$0xff]
    %v3802 = vld [vmem:[%s5 + $0x1a0] sm:$0xff]
    %v3803 = vld [vmem:[%s5 + $0x1a8] sm:$0xff]
    %v3804 = vld [vmem:[%s5 + $0x1b0] sm:$0xff]
    %v3805 = vld [vmem:[%s5 + $0x1b8] sm:$0xff]
    %v3806 = vld [vmem:[%s5 + $0x1c0] sm:$0xff]
    %v3807 = vld [vmem:[%s5 + $0x1c8] sm:$0xff]
    %v3808 = vld [vmem:[%s5 + $0x1d0] sm:$0xff]
    %v3809 = vld [vmem:[%s5 + $0x1d8] sm:$0xff]
    %v3810 = vld [vmem:[%s5 + $0x1e0] sm:$0xff]
    %v3811 = vld [vmem:[%s5 + $0x1e8] sm:$0xff]
    %v3812 = vld [vmem:[%s5 + $0x1f0] sm:$0xff]
    %v3813 = vld [vmem:[%s5 + $0x1f8] sm:$0xff]
    %v3814 = vld [vmem:[%s5 + $0x200] sm:$0xff]
    %v3815 = vld [vmem:[%s5 + $0x208] sm:$0xff]
    %v3816 = vld [vmem:[%s5 + $0x210] sm:$0xff]
    %v3817 = vld [vmem:[%s5 + $0x218] sm:$0xff]
    %v3818 = vld [vmem:[%s5 + $0x220] sm:$0xff]
    %v3819 = vld [vmem:[%s5 + $0x228] sm:$0xff]
    %v3820 = vld [vmem:[%s5 + $0x230] sm:$0xff]
    %v3821 = vld [vmem:[%s5 + $0x238] sm:$0xff]
    %v3822 = vld [vmem:[%s5 + $0x240] sm:$0xff]
    %v3823 = vld [vmem:[%s5 + $0x248] sm:$0xff]
    %v3824 = vld [vmem:[%s5 + $0x250] sm:$0xff]
    %v3825 = vld [vmem:[%s5 + $0x258] sm:$0xff]
    %v3826 = vld [vmem:[%s5 + $0x260] sm:$0xff]
    %v3827 = vld [vmem:[%s5 + $0x268] sm:$0xff]
    %v3828 = vld [vmem:[%s5 + $0x270] sm:$0xff]
    %v3829 = vld [vmem:[%s5 + $0x278] sm:$0xff]
    %v3830 = vld [vmem:[%s5 + $0x280] sm:$0xff]
    %v3831 = vld [vmem:[%s5 + $0x288] sm:$0xff]
    %v3832 = vld [vmem:[%s5 + $0x290] sm:$0xff]
    %v3833 = vld [vmem:[%s5 + $0x298] sm:$0xff]
    %v3834 = vld [vmem:[%s5 + $0x2a0] sm:$0xff]
    %v3835 = vld [vmem:[%s5 + $0x2a8] sm:$0xff]
    %v3836 = vld [vmem:[%s5 + $0x2b0] sm:$0xff]
    %v3837 = vld [vmem:[%s5 + $0x2b8] sm:$0xff]
    %v3838 = vld [vmem:[%s5 + $0x2c0] sm:$0xff]
    %v3839 = vld [vmem:[%s5 + $0x2c8] sm:$0xff]
    %v3840 = vld [vmem:[%s5 + $0x2d0] sm:$0xff]
    %v3841 = vld [vmem:[%s5 + $0x2d8] sm:$0xff]
    %v3842 = vld [vmem:[%s5 + $0x2e0] sm:$0xff]
    %v3843 = vld [vmem:[%s5 + $0x2e8] sm:$0xff]
    %v3844 = vld [vmem:[%s5 + $0x2f0] sm:$0xff]
    %v3845 = vld [vmem:[%s5 + $0x2f8] sm:$0xff]
    %v3846 = vld [vmem:[%s5 + $0x300] sm:$0xff]
    %v3847 = vld [vmem:[%s5 + $0x308] sm:$0xff]
    %v3848 = vld [vmem:[%s5 + $0x310] sm:$0xff]
    %v3849 = vld [vmem:[%s5 + $0x318] sm:$0xff]
    %v3850 = vld [vmem:[%s5 + $0x320] sm:$0xff]
    %v3851 = vld [vmem:[%s5 + $0x328] sm:$0xff]
    %v3852 = vld [vmem:[%s5 + $0x330] sm:$0xff]
    %v3853 = vld [vmem:[%s5 + $0x338] sm:$0xff]
    %v3854 = vld [vmem:[%s5 + $0x340] sm:$0xff]
    %v3855 = vld [vmem:[%s5 + $0x348] sm:$0xff]
    %v3856 = vld [vmem:[%s5 + $0x350] sm:$0xff]
    %v3857 = vld [vmem:[%s5 + $0x358] sm:$0xff]
    %v3858 = vld [vmem:[%s5 + $0x360] sm:$0xff]
    %v3859 = vld [vmem:[%s5 + $0x368] sm:$0xff]
    %v3860 = vld [vmem:[%s5 + $0x370] sm:$0xff]
    %v3861 = vld [vmem:[%s5 + $0x378] sm:$0xff]
    %v3862 = vld [vmem:[%s5 + $0x380] sm:$0xff]
    %v3863 = vld [vmem:[%s5 + $0x388] sm:$0xff]
    %v3864 = vld [vmem:[%s5 + $0x390] sm:$0xff]
    %v3865 = vld [vmem:[%s5 + $0x398] sm:$0xff]
    %v3866 = vld [vmem:[%s5 + $0x3a0] sm:$0xff]
    %v3867 = vld [vmem:[%s5 + $0x3a8] sm:$0xff]
    %v3868 = vld [vmem:[%s5 + $0x3b0] sm:$0xff]
    %v3869 = vld [vmem:[%s5 + $0x3b8] sm:$0xff]
    %v3870 = vld [vmem:[%s5 + $0x3c0] sm:$0xff]
    %v3871 = vld [vmem:[%s5 + $0x3c8] sm:$0xff]
    %v3872 = vld [vmem:[%s5 + $0x3d0] sm:$0xff]
    %v3873 = vld [vmem:[%s5 + $0x3d8] sm:$0xff]
    %v3874 = vld [vmem:[%s5 + $0x3e0] sm:$0xff]
    %v3875 = vld [vmem:[%s5 + $0x3e8] sm:$0xff]
    %v3876 = vld [vmem:[%s5 + $0x3f0] sm:$0xff]
    %v3877 = vld [vmem:[%s5 + $0x3f8] sm:$0xff]
    %v3879 = vlaneseq
    %v3880 = vshrl.u32 %v3879, 7
    %v3881 = vsub.s32 0, %v3880
    %v3882 = vrot.slane %v3731, %v3881
    %v3883 = vlaneseq
    %v3884 = vshrl.u32 %v3883, 7
    %v3885 = vsub.s32 1, %v3884
    %v3886 = vrot.slane %v3731, %v3885
    %v3887 = vlaneseq
    %v3888 = vshrl.u32 %v3887, 7
    %v3889 = vsub.s32 2, %v3888
    %v3890 = vrot.slane %v3731, %v3889
    %v3891 = vlaneseq
    %v3892 = vshrl.u32 %v3891, 7
    %v3893 = vsub.s32 3, %v3892
    %v3894 = vrot.slane %v3731, %v3893
    %vm3903 = vcmask 1043456
    %v3904 = vrot.slane %v3732, 4
    %v3905 = vrot.slane %v3734, 4
    %v3906 = vsel %vm3903, %v3904, %v3905
    %v3907 = vrot.slane %v3733, 4
    %v3908 = vrot.slane %v3735, 4
    %v3909 = vsel %vm3903, %v3907, %v3908
    %v3910 = vrot.slane %v3746, 4
    %v3911 = vrot.slane %v3745, 4
    %v3912 = vsel %vm3903, %v3910, %v3911
    %v3913 = vrot.slane %v3749, 4
    %v3914 = vrot.slane %v3748, 4
    %v3915 = vsel %vm3903, %v3913, %v3914
    %v4048 = vunpack.c.l.b16 %v3750
    %v4049 = vunpack.c.h.b16 %v3750
    %v4050 = vunpack.c.l.b16 %v3751
    %v4051 = vunpack.c.h.b16 %v3751
    %v4052 = vunpack.c.l.b16 %v3752
    %v4053 = vunpack.c.h.b16 %v3752
    %v4054 = vunpack.c.l.b16 %v3753
    %v4055 = vunpack.c.h.b16 %v3753
    %v4056 = vunpack.c.l.b16 %v3754
    %v4057 = vunpack.c.h.b16 %v3754
    %v4058 = vunpack.c.l.b16 %v3755
    %v4059 = vunpack.c.h.b16 %v3755
    %v4060 = vunpack.c.l.b16 %v3756
    %v4061 = vunpack.c.h.b16 %v3756
    %v4062 = vunpack.c.l.b16 %v3757
    %v4063 = vunpack.c.h.b16 %v3757
    %v4064 = vunpack.c.l.b16 %v3758
    %v4065 = vunpack.c.h.b16 %v3758
    %v4066 = vunpack.c.l.b16 %v3759
    %v4067 = vunpack.c.h.b16 %v3759
    %v4068 = vunpack.c.l.b16 %v3760
    %v4069 = vunpack.c.h.b16 %v3760
    %v4070 = vunpack.c.l.b16 %v3761
    %v4071 = vunpack.c.h.b16 %v3761
    %v4072 = vunpack.c.l.b16 %v3762
    %v4073 = vunpack.c.h.b16 %v3762
    %v4074 = vunpack.c.l.b16 %v3763
    %v4075 = vunpack.c.h.b16 %v3763
    %v4076 = vunpack.c.l.b16 %v3764
    %v4077 = vunpack.c.h.b16 %v3764
    %v4078 = vunpack.c.l.b16 %v3765
    %v4079 = vunpack.c.h.b16 %v3765
    %v4080 = vunpack.c.l.b16 %v3766
    %v4081 = vunpack.c.h.b16 %v3766
    %v4082 = vunpack.c.l.b16 %v3767
    %v4083 = vunpack.c.h.b16 %v3767
    %v4084 = vunpack.c.l.b16 %v3768
    %v4085 = vunpack.c.h.b16 %v3768
    %v4086 = vunpack.c.l.b16 %v3769
    %v4087 = vunpack.c.h.b16 %v3769
    %v4088 = vunpack.c.l.b16 %v3770
    %v4089 = vunpack.c.h.b16 %v3770
    %v4090 = vunpack.c.l.b16 %v3771
    %v4091 = vunpack.c.h.b16 %v3771
    %v4092 = vunpack.c.l.b16 %v3772
    %v4093 = vunpack.c.h.b16 %v3772
    %v4094 = vunpack.c.l.b16 %v3773
    %v4095 = vunpack.c.h.b16 %v3773
    %v4096 = vunpack.c.l.b16 %v3774
    %v4097 = vunpack.c.h.b16 %v3774
    %v4098 = vunpack.c.l.b16 %v3775
    %v4099 = vunpack.c.h.b16 %v3775
    %v4100 = vunpack.c.l.b16 %v3776
    %v4101 = vunpack.c.h.b16 %v3776
    %v4102 = vunpack.c.l.b16 %v3777
    %v4103 = vunpack.c.h.b16 %v3777
    %v4104 = vunpack.c.l.b16 %v3778
    %v4105 = vunpack.c.h.b16 %v3778
    %v4106 = vunpack.c.l.b16 %v3779
    %v4107 = vunpack.c.h.b16 %v3779
    %v4108 = vunpack.c.l.b16 %v3780
    %v4109 = vunpack.c.h.b16 %v3780
    %v4110 = vunpack.c.l.b16 %v3781
    %v4111 = vunpack.c.h.b16 %v3781
    %v4112 = vunpack.c.l.b16 %v3782
    %v4113 = vunpack.c.h.b16 %v3782
    %v4114 = vunpack.c.l.b16 %v3783
    %v4115 = vunpack.c.h.b16 %v3783
    %v4116 = vunpack.c.l.b16 %v3784
    %v4117 = vunpack.c.h.b16 %v3784
    %v4118 = vunpack.c.l.b16 %v3785
    %v4119 = vunpack.c.h.b16 %v3785
    %v4120 = vunpack.c.l.b16 %v3786
    %v4121 = vunpack.c.h.b16 %v3786
    %v4122 = vunpack.c.l.b16 %v3787
    %v4123 = vunpack.c.h.b16 %v3787
    %v4124 = vunpack.c.l.b16 %v3788
    %v4125 = vunpack.c.h.b16 %v3788
    %v4126 = vunpack.c.l.b16 %v3789
    %v4127 = vunpack.c.h.b16 %v3789
    %v4128 = vunpack.c.l.b16 %v3790
    %v4129 = vunpack.c.h.b16 %v3790
    %v4130 = vunpack.c.l.b16 %v3791
    %v4131 = vunpack.c.h.b16 %v3791
    %v4132 = vunpack.c.l.b16 %v3792
    %v4133 = vunpack.c.h.b16 %v3792
    %v4134 = vunpack.c.l.b16 %v3793
    %v4135 = vunpack.c.h.b16 %v3793
    %v4136 = vunpack.c.l.b16 %v3794
    %v4137 = vunpack.c.h.b16 %v3794
    %v4138 = vunpack.c.l.b16 %v3795
    %v4139 = vunpack.c.h.b16 %v3795
    %v4140 = vunpack.c.l.b16 %v3796
    %v4141 = vunpack.c.h.b16 %v3796
    %v4142 = vunpack.c.l.b16 %v3797
    %v4143 = vunpack.c.h.b16 %v3797
    %v4144 = vunpack.c.l.b16 %v3798
    %v4145 = vunpack.c.h.b16 %v3798
    %v4146 = vunpack.c.l.b16 %v3799
    %v4147 = vunpack.c.h.b16 %v3799
    %v4148 = vunpack.c.l.b16 %v3800
    %v4149 = vunpack.c.h.b16 %v3800
    %v4150 = vunpack.c.l.b16 %v3801
    %v4151 = vunpack.c.h.b16 %v3801
    %v4152 = vunpack.c.l.b16 %v3802
    %v4153 = vunpack.c.h.b16 %v3802
    %v4154 = vunpack.c.l.b16 %v3803
    %v4155 = vunpack.c.h.b16 %v3803
    %v4156 = vunpack.c.l.b16 %v3804
    %v4157 = vunpack.c.h.b16 %v3804
    %v4158 = vunpack.c.l.b16 %v3805
    %v4159 = vunpack.c.h.b16 %v3805
    %v4160 = vunpack.c.l.b16 %v3806
    %v4161 = vunpack.c.h.b16 %v3806
    %v4162 = vunpack.c.l.b16 %v3807
    %v4163 = vunpack.c.h.b16 %v3807
    %v4164 = vunpack.c.l.b16 %v3808
    %v4165 = vunpack.c.h.b16 %v3808
    %v4166 = vunpack.c.l.b16 %v3809
    %v4167 = vunpack.c.h.b16 %v3809
    %v4168 = vunpack.c.l.b16 %v3810
    %v4169 = vunpack.c.h.b16 %v3810
    %v4170 = vunpack.c.l.b16 %v3811
    %v4171 = vunpack.c.h.b16 %v3811
    %v4172 = vunpack.c.l.b16 %v3812
    %v4173 = vunpack.c.h.b16 %v3812
    %v4174 = vunpack.c.l.b16 %v3813
    %v4175 = vunpack.c.h.b16 %v3813
    %v4176 = vunpack.c.l.b16 %v3814
    %v4177 = vunpack.c.h.b16 %v3814
    %v4178 = vunpack.c.l.b16 %v3815
    %v4179 = vunpack.c.h.b16 %v3815
    %v4180 = vunpack.c.l.b16 %v3816
    %v4181 = vunpack.c.h.b16 %v3816
    %v4182 = vunpack.c.l.b16 %v3817
    %v4183 = vunpack.c.h.b16 %v3817
    %v4184 = vunpack.c.l.b16 %v3818
    %v4185 = vunpack.c.h.b16 %v3818
    %v4186 = vunpack.c.l.b16 %v3819
    %v4187 = vunpack.c.h.b16 %v3819
    %v4188 = vunpack.c.l.b16 %v3820
    %v4189 = vunpack.c.h.b16 %v3820
    %v4190 = vunpack.c.l.b16 %v3821
    %v4191 = vunpack.c.h.b16 %v3821
    %v4192 = vunpack.c.l.b16 %v3822
    %v4193 = vunpack.c.h.b16 %v3822
    %v4194 = vunpack.c.l.b16 %v3823
    %v4195 = vunpack.c.h.b16 %v3823
    %v4196 = vunpack.c.l.b16 %v3824
    %v4197 = vunpack.c.h.b16 %v3824
    %v4198 = vunpack.c.l.b16 %v3825
    %v4199 = vunpack.c.h.b16 %v3825
    %v4200 = vunpack.c.l.b16 %v3826
    %v4201 = vunpack.c.h.b16 %v3826
    %v4202 = vunpack.c.l.b16 %v3827
    %v4203 = vunpack.c.h.b16 %v3827
    %v4204 = vunpack.c.l.b16 %v3828
    %v4205 = vunpack.c.h.b16 %v3828
    %v4206 = vunpack.c.l.b16 %v3829
    %v4207 = vunpack.c.h.b16 %v3829
    %v4208 = vunpack.c.l.b16 %v3830
    %v4209 = vunpack.c.h.b16 %v3830
    %v4210 = vunpack.c.l.b16 %v3831
    %v4211 = vunpack.c.h.b16 %v3831
    %v4212 = vunpack.c.l.b16 %v3832
    %v4213 = vunpack.c.h.b16 %v3832
    %v4214 = vunpack.c.l.b16 %v3833
    %v4215 = vunpack.c.h.b16 %v3833
    %v4216 = vunpack.c.l.b16 %v3834
    %v4217 = vunpack.c.h.b16 %v3834
    %v4218 = vunpack.c.l.b16 %v3835
    %v4219 = vunpack.c.h.b16 %v3835
    %v4220 = vunpack.c.l.b16 %v3836
    %v4221 = vunpack.c.h.b16 %v3836
    %v4222 = vunpack.c.l.b16 %v3837
    %v4223 = vunpack.c.h.b16 %v3837
    %v4224 = vunpack.c.l.b16 %v3838
    %v4225 = vunpack.c.h.b16 %v3838
    %v4226 = vunpack.c.l.b16 %v3839
    %v4227 = vunpack.c.h.b16 %v3839
    %v4228 = vunpack.c.l.b16 %v3840
    %v4229 = vunpack.c.h.b16 %v3840
    %v4230 = vunpack.c.l.b16 %v3841
    %v4231 = vunpack.c.h.b16 %v3841
    %v4232 = vunpack.c.l.b16 %v3842
    %v4233 = vunpack.c.h.b16 %v3842
    %v4234 = vunpack.c.l.b16 %v3843
    %v4235 = vunpack.c.h.b16 %v3843
    %v4236 = vunpack.c.l.b16 %v3844
    %v4237 = vunpack.c.h.b16 %v3844
    %v4238 = vunpack.c.l.b16 %v3845
    %v4239 = vunpack.c.h.b16 %v3845
    %v4240 = vunpack.c.l.b16 %v3846
    %v4241 = vunpack.c.h.b16 %v3846
    %v4242 = vunpack.c.l.b16 %v3847
    %v4243 = vunpack.c.h.b16 %v3847
    %v4244 = vunpack.c.l.b16 %v3848
    %v4245 = vunpack.c.h.b16 %v3848
    %v4246 = vunpack.c.l.b16 %v3849
    %v4247 = vunpack.c.h.b16 %v3849
    %v4248 = vunpack.c.l.b16 %v3850
    %v4249 = vunpack.c.h.b16 %v3850
    %v4250 = vunpack.c.l.b16 %v3851
    %v4251 = vunpack.c.h.b16 %v3851
    %v4252 = vunpack.c.l.b16 %v3852
    %v4253 = vunpack.c.h.b16 %v3852
    %v4254 = vunpack.c.l.b16 %v3853
    %v4255 = vunpack.c.h.b16 %v3853
    %v4256 = vunpack.c.l.b16 %v3854
    %v4257 = vunpack.c.h.b16 %v3854
    %v4258 = vunpack.c.l.b16 %v3855
    %v4259 = vunpack.c.h.b16 %v3855
    %v4260 = vunpack.c.l.b16 %v3856
    %v4261 = vunpack.c.h.b16 %v3856
    %v4262 = vunpack.c.l.b16 %v3857
    %v4263 = vunpack.c.h.b16 %v3857
    %v4264 = vunpack.c.l.b16 %v3858
    %v4265 = vunpack.c.h.b16 %v3858
    %v4266 = vunpack.c.l.b16 %v3859
    %v4267 = vunpack.c.h.b16 %v3859
    %v4268 = vunpack.c.l.b16 %v3860
    %v4269 = vunpack.c.h.b16 %v3860
    %v4270 = vunpack.c.l.b16 %v3861
    %v4271 = vunpack.c.h.b16 %v3861
    %v4272 = vunpack.c.l.b16 %v3862
    %v4273 = vunpack.c.h.b16 %v3862
    %v4274 = vunpack.c.l.b16 %v3863
    %v4275 = vunpack.c.h.b16 %v3863
    %v4276 = vunpack.c.l.b16 %v3864
    %v4277 = vunpack.c.h.b16 %v3864
    %v4278 = vunpack.c.l.b16 %v3865
    %v4279 = vunpack.c.h.b16 %v3865
    %v4280 = vunpack.c.l.b16 %v3866
    %v4281 = vunpack.c.h.b16 %v3866
    %v4282 = vunpack.c.l.b16 %v3867
    %v4283 = vunpack.c.h.b16 %v3867
    %v4284 = vunpack.c.l.b16 %v3868
    %v4285 = vunpack.c.h.b16 %v3868
    %v4286 = vunpack.c.l.b16 %v3869
    %v4287 = vunpack.c.h.b16 %v3869
    %v4288 = vunpack.c.l.b16 %v3870
    %v4289 = vunpack.c.h.b16 %v3870
    %v4290 = vunpack.c.l.b16 %v3871
    %v4291 = vunpack.c.h.b16 %v3871
    %v4292 = vunpack.c.l.b16 %v3872
    %v4293 = vunpack.c.h.b16 %v3872
    %v4294 = vunpack.c.l.b16 %v3873
    %v4295 = vunpack.c.h.b16 %v3873
    %v4296 = vunpack.c.l.b16 %v3874
    %v4297 = vunpack.c.h.b16 %v3874
    %v4298 = vunpack.c.l.b16 %v3875
    %v4299 = vunpack.c.h.b16 %v3875
    %v4300 = vunpack.c.l.b16 %v3876
    %v4301 = vunpack.c.h.b16 %v3876
    %v4302 = vunpack.c.l.b16 %v3877
    %v4303 = vunpack.c.h.b16 %v3877
    %v4304 = vpack.c.b16 %v4052, %v4048
    %v4305 = vpack.c.b16 %v4053, %v4049
    %v4306 = vpack.c.b16 %v4054, %v4050
    %v4307 = vpack.c.b16 %v4055, %v4051
    %v4308 = vpack.c.b16 %v4060, %v4056
    %v4309 = vpack.c.b16 %v4061, %v4057
    %v4310 = vpack.c.b16 %v4062, %v4058
    %v4311 = vpack.c.b16 %v4063, %v4059
    %v4312 = vpack.c.b16 %v4068, %v4064
    %v4313 = vpack.c.b16 %v4069, %v4065
    %v4314 = vpack.c.b16 %v4070, %v4066
    %v4315 = vpack.c.b16 %v4071, %v4067
    %v4316 = vpack.c.b16 %v4076, %v4072
    %v4317 = vpack.c.b16 %v4077, %v4073
    %v4318 = vpack.c.b16 %v4078, %v4074
    %v4319 = vpack.c.b16 %v4079, %v4075
    %v4320 = vpack.c.b16 %v4084, %v4080
    %v4321 = vpack.c.b16 %v4085, %v4081
    %v4322 = vpack.c.b16 %v4086, %v4082
    %v4323 = vpack.c.b16 %v4087, %v4083
    %v4324 = vpack.c.b16 %v4092, %v4088
    %v4325 = vpack.c.b16 %v4093, %v4089
    %v4326 = vpack.c.b16 %v4094, %v4090
    %v4327 = vpack.c.b16 %v4095, %v4091
    %v4328 = vpack.c.b16 %v4100, %v4096
    %v4329 = vpack.c.b16 %v4101, %v4097
    %v4330 = vpack.c.b16 %v4102, %v4098
    %v4331 = vpack.c.b16 %v4103, %v4099
    %v4332 = vpack.c.b16 %v4108, %v4104
    %v4333 = vpack.c.b16 %v4109, %v4105
    %v4334 = vpack.c.b16 %v4110, %v4106
    %v4335 = vpack.c.b16 %v4111, %v4107
    %v4336 = vpack.c.b16 %v4116, %v4112
    %v4337 = vpack.c.b16 %v4117, %v4113
    %v4338 = vpack.c.b16 %v4118, %v4114
    %v4339 = vpack.c.b16 %v4119, %v4115
    %v4340 = vpack.c.b16 %v4124, %v4120
    %v4341 = vpack.c.b16 %v4125, %v4121
    %v4342 = vpack.c.b16 %v4126, %v4122
    %v4343 = vpack.c.b16 %v4127, %v4123
    %v4344 = vpack.c.b16 %v4132, %v4128
    %v4345 = vpack.c.b16 %v4133, %v4129
    %v4346 = vpack.c.b16 %v4134, %v4130
    %v4347 = vpack.c.b16 %v4135, %v4131
    %v4348 = vpack.c.b16 %v4140, %v4136
    %v4349 = vpack.c.b16 %v4141, %v4137
    %v4350 = vpack.c.b16 %v4142, %v4138
    %v4351 = vpack.c.b16 %v4143, %v4139
    %v4352 = vpack.c.b16 %v4148, %v4144
    %v4353 = vpack.c.b16 %v4149, %v4145
    %v4354 = vpack.c.b16 %v4150, %v4146
    %v4355 = vpack.c.b16 %v4151, %v4147
    %v4356 = vpack.c.b16 %v4156, %v4152
    %v4357 = vpack.c.b16 %v4157, %v4153
    %v4358 = vpack.c.b16 %v4158, %v4154
    %v4359 = vpack.c.b16 %v4159, %v4155
    %v4360 = vpack.c.b16 %v4164, %v4160
    %v4361 = vpack.c.b16 %v4165, %v4161
    %v4362 = vpack.c.b16 %v4166, %v4162
    %v4363 = vpack.c.b16 %v4167, %v4163
    %v4364 = vpack.c.b16 %v4172, %v4168
    %v4365 = vpack.c.b16 %v4173, %v4169
    %v4366 = vpack.c.b16 %v4174, %v4170
    %v4367 = vpack.c.b16 %v4175, %v4171
    %v4368 = vpack.c.b16 %v4180, %v4176
    %v4369 = vpack.c.b16 %v4181, %v4177
    %v4370 = vpack.c.b16 %v4182, %v4178
    %v4371 = vpack.c.b16 %v4183, %v4179
    %v4372 = vpack.c.b16 %v4188, %v4184
    %v4373 = vpack.c.b16 %v4189, %v4185
    %v4374 = vpack.c.b16 %v4190, %v4186
    %v4375 = vpack.c.b16 %v4191, %v4187
    %v4376 = vpack.c.b16 %v4196, %v4192
    %v4377 = vpack.c.b16 %v4197, %v4193
    %v4378 = vpack.c.b16 %v4198, %v4194
    %v4379 = vpack.c.b16 %v4199, %v4195
    %v4380 = vpack.c.b16 %v4204, %v4200
    %v4381 = vpack.c.b16 %v4205, %v4201
    %v4382 = vpack.c.b16 %v4206, %v4202
    %v4383 = vpack.c.b16 %v4207, %v4203
    %v4384 = vpack.c.b16 %v4212, %v4208
    %v4385 = vpack.c.b16 %v4213, %v4209
    %v4386 = vpack.c.b16 %v4214, %v4210
    %v4387 = vpack.c.b16 %v4215, %v4211
    %v4388 = vpack.c.b16 %v4220, %v4216
    %v4389 = vpack.c.b16 %v4221, %v4217
    %v4390 = vpack.c.b16 %v4222, %v4218
    %v4391 = vpack.c.b16 %v4223, %v4219
    %v4392 = vpack.c.b16 %v4228, %v4224
    %v4393 = vpack.c.b16 %v4229, %v4225
    %v4394 = vpack.c.b16 %v4230, %v4226
    %v4395 = vpack.c.b16 %v4231, %v4227
    %v4396 = vpack.c.b16 %v4236, %v4232
    %v4397 = vpack.c.b16 %v4237, %v4233
    %v4398 = vpack.c.b16 %v4238, %v4234
    %v4399 = vpack.c.b16 %v4239, %v4235
    %v4400 = vpack.c.b16 %v4244, %v4240
    %v4401 = vpack.c.b16 %v4245, %v4241
    %v4402 = vpack.c.b16 %v4246, %v4242
    %v4403 = vpack.c.b16 %v4247, %v4243
    %v4404 = vpack.c.b16 %v4252, %v4248
    %v4405 = vpack.c.b16 %v4253, %v4249
    %v4406 = vpack.c.b16 %v4254, %v4250
    %v4407 = vpack.c.b16 %v4255, %v4251
    %v4408 = vpack.c.b16 %v4260, %v4256
    %v4409 = vpack.c.b16 %v4261, %v4257
    %v4410 = vpack.c.b16 %v4262, %v4258
    %v4411 = vpack.c.b16 %v4263, %v4259
    %v4412 = vpack.c.b16 %v4268, %v4264
    %v4413 = vpack.c.b16 %v4269, %v4265
    %v4414 = vpack.c.b16 %v4270, %v4266
    %v4415 = vpack.c.b16 %v4271, %v4267
    %v4416 = vpack.c.b16 %v4276, %v4272
    %v4417 = vpack.c.b16 %v4277, %v4273
    %v4418 = vpack.c.b16 %v4278, %v4274
    %v4419 = vpack.c.b16 %v4279, %v4275
    %v4420 = vpack.c.b16 %v4284, %v4280
    %v4421 = vpack.c.b16 %v4285, %v4281
    %v4422 = vpack.c.b16 %v4286, %v4282
    %v4423 = vpack.c.b16 %v4287, %v4283
    %v4424 = vpack.c.b16 %v4292, %v4288
    %v4425 = vpack.c.b16 %v4293, %v4289
    %v4426 = vpack.c.b16 %v4294, %v4290
    %v4427 = vpack.c.b16 %v4295, %v4291
    %v4428 = vpack.c.b16 %v4300, %v4296
    %v4429 = vpack.c.b16 %v4301, %v4297
    %v4430 = vpack.c.b16 %v4302, %v4298
    %v4431 = vpack.c.b16 %v4303, %v4299
    %4560 = vmatprep.subr.bf16.mxu0 %v4305
    %4561 = vmatpush1.bf16.msra.mxu0 %v4304
    %4562 = vmatprep.subr.bf16.mxu0 %v4309
    %4563 = vmatpush1.bf16.msra.mxu0 %v4308
    %4564 = vmatprep.subr.bf16.mxu0 %v4313
    %4565 = vmatpush1.bf16.msra.mxu0 %v4312
    %4566 = vmatprep.subr.bf16.mxu0 %v4317
    %4567 = vmatpush1.bf16.msra.mxu0 %v4316
    %4568 = vmatprep.subr.bf16.mxu0 %v4321
    %4569 = vmatpush1.bf16.msra.mxu0 %v4320
    %4570 = vmatprep.subr.bf16.mxu0 %v4325
    %4571 = vmatpush1.bf16.msra.mxu0 %v4324
    %4572 = vmatprep.subr.bf16.mxu0 %v4329
    %4573 = vmatpush1.bf16.msra.mxu0 %v4328
    %4574 = vmatprep.subr.bf16.mxu0 %v4333
    %4575 = vmatpush1.bf16.msra.mxu0 %v4332
    %4576 = vmatprep.subr.bf16.mxu0 %v4337
    %4577 = vmatpush1.bf16.msra.mxu0 %v4336
    %4578 = vmatprep.subr.bf16.mxu0 %v4341
    %4579 = vmatpush1.bf16.msra.mxu0 %v4340
    %4580 = vmatprep.subr.bf16.mxu0 %v4345
    %4581 = vmatpush1.bf16.msra.mxu0 %v4344
    %4582 = vmatprep.subr.bf16.mxu0 %v4349
    %4583 = vmatpush1.bf16.msra.mxu0 %v4348
    %4584 = vmatprep.subr.bf16.mxu0 %v4353
    %4585 = vmatpush1.bf16.msra.mxu0 %v4352
    %4586 = vmatprep.subr.bf16.mxu0 %v4357
    %4587 = vmatpush1.bf16.msra.mxu0 %v4356
    %4588 = vmatprep.subr.bf16.mxu0 %v4361
    %4589 = vmatpush1.bf16.msra.mxu0 %v4360
    %4590 = vmatprep.subr.bf16.mxu0 %v4365
    %4591 = vmatpush1.bf16.msra.mxu0 %v4364
    %4592 = vmatprep.mubr.bf16.mxu0 %v3909
    %4593 = vmatmul.mubr.bf16.gmra.mrb[0].mxu0 %v3906
    %v4594 = vpop.f32.mrb[0].mxu0
    %v4595 = vadd.f32 %v3882, %v4594
    %v4596 = vpop.f32.mrb[0].mxu0
    %v4597 = vadd.f32 %v3886, %v4596
    %v4598 = vpop.f32.mrb[0].mxu0
    %v4599 = vadd.f32 %v3882, %v4598
    %v4600 = vpop.f32.mrb[0].mxu0
    %v4601 = vadd.f32 %v3886, %v4600
    %4602 = vdwg.mxu0
    %4603 = vmatprep.subr.bf16.mxu0 %v4369
    %4604 = vmatpush1.bf16.msra.mxu0 %v4368
    %4605 = vmatprep.subr.bf16.mxu0 %v4373
    %4606 = vmatpush1.bf16.msra.mxu0 %v4372
    %4607 = vmatprep.subr.bf16.mxu0 %v4377
    %4608 = vmatpush1.bf16.msra.mxu0 %v4376
    %4609 = vmatprep.subr.bf16.mxu0 %v4381
    %4610 = vmatpush1.bf16.msra.mxu0 %v4380
    %4611 = vmatprep.subr.bf16.mxu0 %v4385
    %4612 = vmatpush1.bf16.msra.mxu0 %v4384
    %4613 = vmatprep.subr.bf16.mxu0 %v4389
    %4614 = vmatpush1.bf16.msra.mxu0 %v4388
    %4615 = vmatprep.subr.bf16.mxu0 %v4393
    %4616 = vmatpush1.bf16.msra.mxu0 %v4392
    %4617 = vmatprep.subr.bf16.mxu0 %v4397
    %4618 = vmatpush1.bf16.msra.mxu0 %v4396
    %4619 = vmatprep.subr.bf16.mxu0 %v4401
    %4620 = vmatpush1.bf16.msra.mxu0 %v4400
    %4621 = vmatprep.subr.bf16.mxu0 %v4405
    %4622 = vmatpush1.bf16.msra.mxu0 %v4404
    %4623 = vmatprep.subr.bf16.mxu0 %v4409
    %4624 = vmatpush1.bf16.msra.mxu0 %v4408
    %4625 = vmatprep.subr.bf16.mxu0 %v4413
    %4626 = vmatpush1.bf16.msra.mxu0 %v4412
    %4627 = vmatprep.subr.bf16.mxu0 %v4417
    %4628 = vmatpush1.bf16.msra.mxu0 %v4416
    %4629 = vmatprep.subr.bf16.mxu0 %v4421
    %4630 = vmatpush1.bf16.msra.mxu0 %v4420
    %4631 = vmatprep.subr.bf16.mxu0 %v4425
    %4632 = vmatpush1.bf16.msra.mxu0 %v4424
    %4633 = vmatprep.subr.bf16.mxu0 %v4429
    %4634 = vmatpush1.bf16.msra.mxu0 %v4428
    %4635 = vmatprep.mubr.bf16.mxu0 %v3915
    %4636 = vmatmul.mubr.bf16.gmra.mrb[0].mxu0 %v3912
    %v4637 = vpop.f32.mrb[0].mxu0
    %v4638 = vadd.f32 %v4595, %v4637
    %v4639 = vpop.f32.mrb[0].mxu0
    %v4640 = vadd.f32 %v4597, %v4639
    %v4641 = vpop.f32.mrb[0].mxu0
    %v4642 = vadd.f32 %v4599, %v4641
    %v4643 = vpop.f32.mrb[0].mxu0
    %v4644 = vadd.f32 %v4601, %v4643
    %4645 = vdwg.mxu0
    %4646 = vmatprep.subr.bf16.mxu0 %v4307
    %4647 = vmatpush1.bf16.msra.mxu0 %v4306
    %4648 = vmatprep.subr.bf16.mxu0 %v4311
    %4649 = vmatpush1.bf16.msra.mxu0 %v4310
    %4650 = vmatprep.subr.bf16.mxu0 %v4315
    %4651 = vmatpush1.bf16.msra.mxu0 %v4314
    %4652 = vmatprep.subr.bf16.mxu0 %v4319
    %4653 = vmatpush1.bf16.msra.mxu0 %v4318
    %4654 = vmatprep.subr.bf16.mxu0 %v4323
    %4655 = vmatpush1.bf16.msra.mxu0 %v4322
    %4656 = vmatprep.subr.bf16.mxu0 %v4327
    %4657 = vmatpush1.bf16.msra.mxu0 %v4326
    %4658 = vmatprep.subr.bf16.mxu0 %v4331
    %4659 = vmatpush1.bf16.msra.mxu0 %v4330
    %4660 = vmatprep.subr.bf16.mxu0 %v4335
    %4661 = vmatpush1.bf16.msra.mxu0 %v4334
    %4662 = vmatprep.subr.bf16.mxu0 %v4339
    %4663 = vmatpush1.bf16.msra.mxu0 %v4338
    %4664 = vmatprep.subr.bf16.mxu0 %v4343
    %4665 = vmatpush1.bf16.msra.mxu0 %v4342
    %4666 = vmatprep.subr.bf16.mxu0 %v4347
    %4667 = vmatpush1.bf16.msra.mxu0 %v4346
    %4668 = vmatprep.subr.bf16.mxu0 %v4351
    %4669 = vmatpush1.bf16.msra.mxu0 %v4350
    %4670 = vmatprep.subr.bf16.mxu0 %v4355
    %4671 = vmatpush1.bf16.msra.mxu0 %v4354
    %4672 = vmatprep.subr.bf16.mxu0 %v4359
    %4673 = vmatpush1.bf16.msra.mxu0 %v4358
    %4674 = vmatprep.subr.bf16.mxu0 %v4363
    %4675 = vmatpush1.bf16.msra.mxu0 %v4362
    %4676 = vmatprep.subr.bf16.mxu0 %v4367
    %4677 = vmatpush1.bf16.msra.mxu0 %v4366
    %4678 = vmatprep.mubr.bf16.mxu0 %v3909
    %4679 = vmatmul.mubr.bf16.gmra.mrb[0].mxu0 %v3906
    %v4680 = vpop.f32.mrb[0].mxu0
    %v4681 = vadd.f32 %v3890, %v4680
    %v4682 = vpop.f32.mrb[0].mxu0
    %v4683 = vadd.f32 %v3894, %v4682
    %v4684 = vpop.f32.mrb[0].mxu0
    %v4685 = vadd.f32 %v3890, %v4684
    %v4686 = vpop.f32.mrb[0].mxu0
    %v4687 = vadd.f32 %v3894, %v4686
    %4688 = vdwg.mxu0
    %4689 = vmatprep.subr.bf16.mxu0 %v4371
    %4690 = vmatpush1.bf16.msra.mxu0 %v4370
    %4691 = vmatprep.subr.bf16.mxu0 %v4375
    %4692 = vmatpush1.bf16.msra.mxu0 %v4374
    %4693 = vmatprep.subr.bf16.mxu0 %v4379
    %4694 = vmatpush1.bf16.msra.mxu0 %v4378
    %4695 = vmatprep.subr.bf16.mxu0 %v4383
    %4696 = vmatpush1.bf16.msra.mxu0 %v4382
    %4697 = vmatprep.subr.bf16.mxu0 %v4387
    %4698 = vmatpush1.bf16.msra.mxu0 %v4386
    %4699 = vmatprep.subr.bf16.mxu0 %v4391
    %4700 = vmatpush1.bf16.msra.mxu0 %v4390
    %4701 = vmatprep.subr.bf16.mxu0 %v4395
    %4702 = vmatpush1.bf16.msra.mxu0 %v4394
    %4703 = vmatprep.subr.bf16.mxu0 %v4399
    %4704 = vmatpush1.bf16.msra.mxu0 %v4398
    %4705 = vmatprep.subr.bf16.mxu0 %v4403
    %4706 = vmatpush1.bf16.msra.mxu0 %v4402
    %4707 = vmatprep.subr.bf16.mxu0 %v4407
    %4708 = vmatpush1.bf16.msra.mxu0 %v4406
    %4709 = vmatprep.subr.bf16.mxu0 %v4411
    %4710 = vmatpush1.bf16.msra.mxu0 %v4410
    %4711 = vmatprep.subr.bf16.mxu0 %v4415
    %4712 = vmatpush1.bf16.msra.mxu0 %v4414
    %4713 = vmatprep.subr.bf16.mxu0 %v4419
    %4714 = vmatpush1.bf16.msra.mxu0 %v4418
    %4715 = vmatprep.subr.bf16.mxu0 %v4423
    %4716 = vmatpush1.bf16.msra.mxu0 %v4422
    %4717 = vmatprep.subr.bf16.mxu0 %v4427
    %4718 = vmatpush1.bf16.msra.mxu0 %v4426
    %4719 = vmatprep.subr.bf16.mxu0 %v4431
    %4720 = vmatpush1.bf16.msra.mxu0 %v4430
    %4721 = vmatprep.mubr.bf16.mxu0 %v3915
    %4722 = vmatmul.mubr.bf16.gmra.mrb[0].mxu0 %v3912
    %v4723 = vpop.f32.mrb[0].mxu0
    %v4724 = vadd.f32 %v4681, %v4723
    %v4725 = vpop.f32.mrb[0].mxu0
    %v4726 = vadd.f32 %v4683, %v4725
    %v4727 = vpop.f32.mrb[0].mxu0
    %v4728 = vadd.f32 %v4685, %v4727
    %v4729 = vpop.f32.mrb[0].mxu0
    %v4730 = vadd.f32 %v4687, %v4729
    %4731 = vdwg.mxu0
    %v4732 = vmax.f32 %v4638, 0.0
    %v4733 = vmax.f32 %v4640, 0.0
    %v4734 = vmax.f32 %v4724, 0.0
    %v4735 = vmax.f32 %v4726, 0.0
    %v4736 = vmax.f32 %v4642, 0.0
    %v4737 = vmax.f32 %v4644, 0.0
    %v4738 = vmax.f32 %v4728, 0.0
    %v4739 = vmax.f32 %v4730, 0.0
    %v4740 = vpack.c.bf16 %v4736, %v4732
    %v4741 = vpack.c.bf16 %v4737, %v4733
    %v4742 = vpack.c.bf16 %v4738, %v4734
    %v4743 = vpack.c.bf16 %v4739, %v4735
    %v4748 = vrot.slane %v4740, 4
    %v4749 = vrot.slane %v4741, 4
    %v4750 = vrot.slane %v4742, 4
    %v4751 = vrot.slane %v4743, 4
    %4756 = vst [vmem:[#allocation5] sm:$0xf0] %v4748
    %4757 = vst [vmem:[#allocation5 + $0x8] sm:$0xf0] %v4749
    %4758 = vst [vmem:[#allocation5 + $0x10] sm:$0xf0] %v4750
    %4759 = vst [vmem:[#allocation5 + $0x18] sm:$0xf0] %v4751
    %4760 = vst [vmem:[#allocation5 + $0x20] sm:$0x7] %v4748
    %4761 = vst [vmem:[#allocation5 + $0x28] sm:$0x7] %v4749
    %4762 = vst [vmem:[#allocation5 + $0x30] sm:$0x7] %v4750
    %4763 = vst [vmem:[#allocation5 + $0x38] sm:$0x7] %v4751
    %v4764 = vld [vmem:[#allocation11 + $0x19] sm:$0x1]
    %v4765 = vld [vmem:[#allocation5] sm:$0xf0]
    %v4766 = vld [vmem:[#allocation5 + $0x8] sm:$0xf0]
    %v4767 = vld [vmem:[#allocation5 + $0x10] sm:$0xf0]
    %v4768 = vld [vmem:[#allocation5 + $0x18] sm:$0xf0]
    %v4769 = vld [vmem:[#allocation5 + $0x20] sm:$0x7]
    %v4770 = vld [vmem:[#allocation5 + $0x28] sm:$0x7]
    %v4771 = vld [vmem:[#allocation5 + $0x30] sm:$0x7]
    %v4772 = vld [vmem:[#allocation5 + $0x38] sm:$0x7]
    %v4773 = vld [vmem:[#allocation5] sm:$0xe0]
    %v4774 = vld [vmem:[#allocation5 + $0x8] sm:$0xe0]
    %v4775 = vld [vmem:[#allocation5 + $0x10] sm:$0xe0]
    %v4776 = vld [vmem:[#allocation5 + $0x18] sm:$0xe0]
    %v4777 = vld [vmem:[#allocation5 + $0x20] sm:$0xf]
    %v4778 = vld [vmem:[#allocation5 + $0x28] sm:$0xf]
    %v4779 = vld [vmem:[#allocation5 + $0x30] sm:$0xf]
    %v4780 = vld [vmem:[#allocation5 + $0x38] sm:$0xf]
    %v4789 = vrot.slane %v4773, 1
    %v4790 = vrot.slane %v4777, 1
    %v4791 = vsel %vm680, %v4789, %v4790
    %v4792 = vrot.slane %v4774, 1
    %v4793 = vrot.slane %v4778, 1
    %v4794 = vsel %vm680, %v4792, %v4793
    %v4795 = vrot.slane %v4775, 1
    %v4796 = vrot.slane %v4779, 1
    %v4797 = vsel %vm680, %v4795, %v4796
    %v4798 = vrot.slane %v4776, 1
    %v4799 = vrot.slane %v4780, 1
    %v4800 = vsel %vm680, %v4798, %v4799
    %v4801 = vld [vmem:[#allocation10] sm:$0xf]
    %v4802 = vld [vmem:[#allocation10 + $0x4] sm:$0xf]
    %v4803 = vld [vmem:[#allocation10 + $0x8] sm:$0xf]
    %v4804 = vld [vmem:[#allocation10 + $0xc] sm:$0xf]
    %v4805 = vld [vmem:[#allocation10 + $0x10] sm:$0xf]
    %v4806 = vld [vmem:[#allocation10 + $0x14] sm:$0xf]
    %v4807 = vld [vmem:[#allocation10 + $0x18] sm:$0xf]
    %v4808 = vld [vmem:[#allocation10 + $0x1c] sm:$0xf]
    %v4809 = vld [vmem:[#allocation10 + $0x20] sm:$0xf]
    %v4810 = vld [vmem:[#allocation10 + $0x24] sm:$0xf]
    %v4811 = vld [vmem:[#allocation10 + $0x28] sm:$0xf]
    %v4812 = vld [vmem:[#allocation10 + $0x2c] sm:$0xf]
    %v4813 = vld [vmem:[#allocation10 + $0x30] sm:$0xf]
    %v4814 = vld [vmem:[#allocation10 + $0x34] sm:$0xf]
    %v4815 = vld [vmem:[#allocation10 + $0x38] sm:$0xf]
    %v4816 = vld [vmem:[#allocation10 + $0x3c] sm:$0xf]
    %v4817 = vld [vmem:[#allocation10 + $0x40] sm:$0xf]
    %v4818 = vld [vmem:[#allocation10 + $0x44] sm:$0xf]
    %v4819 = vld [vmem:[#allocation10 + $0x48] sm:$0xf]
    %v4820 = vld [vmem:[#allocation10 + $0x4c] sm:$0xf]
    %v4821 = vld [vmem:[#allocation10 + $0x50] sm:$0xf]
    %v4822 = vld [vmem:[#allocation10 + $0x54] sm:$0xf]
    %v4823 = vld [vmem:[#allocation10 + $0x58] sm:$0xf]
    %v4824 = vld [vmem:[#allocation10 + $0x5c] sm:$0xf]
    %v4825 = vld [vmem:[#allocation10 + $0x60] sm:$0xf]
    %v4826 = vld [vmem:[#allocation10 + $0x64] sm:$0xf]
    %v4827 = vld [vmem:[#allocation10 + $0x68] sm:$0xf]
    %v4828 = vld [vmem:[#allocation10 + $0x6c] sm:$0xf]
    %v4829 = vld [vmem:[#allocation10 + $0x70] sm:$0xf]
    %v4830 = vld [vmem:[#allocation10 + $0x74] sm:$0xf]
    %v4831 = vld [vmem:[#allocation10 + $0x78] sm:$0xf]
    %v4832 = vld [vmem:[#allocation10 + $0x7c] sm:$0xf]
    %v4833 = vld [vmem:[#allocation10 + $0x80] sm:$0xf]
    %v4834 = vld [vmem:[#allocation10 + $0x84] sm:$0xf]
    %v4835 = vld [vmem:[#allocation10 + $0x88] sm:$0xf]
    %v4836 = vld [vmem:[#allocation10 + $0x8c] sm:$0xf]
    %v4837 = vld [vmem:[#allocation10 + $0x90] sm:$0xf]
    %v4838 = vld [vmem:[#allocation10 + $0x94] sm:$0xf]
    %v4839 = vld [vmem:[#allocation10 + $0x98] sm:$0xf]
    %v4840 = vld [vmem:[#allocation10 + $0x9c] sm:$0xf]
    %v4841 = vld [vmem:[#allocation10 + $0xa0] sm:$0xf]
    %v4842 = vld [vmem:[#allocation10 + $0xa4] sm:$0xf]
    %v4843 = vld [vmem:[#allocation10 + $0xa8] sm:$0xf]
    %v4844 = vld [vmem:[#allocation10 + $0xac] sm:$0xf]
    %v4845 = vld [vmem:[#allocation10 + $0xb0] sm:$0xf]
    %v4846 = vld [vmem:[#allocation10 + $0xb4] sm:$0xf]
    %v4847 = vld [vmem:[#allocation10 + $0xb8] sm:$0xf]
    %v4848 = vld [vmem:[#allocation10 + $0xbc] sm:$0xf]
    %v4849 = vld [vmem:[#allocation10 + $0xc0] sm:$0xf]
    %v4850 = vld [vmem:[#allocation10 + $0xc4] sm:$0xf]
    %v4851 = vld [vmem:[#allocation10 + $0xc8] sm:$0xf]
    %v4852 = vld [vmem:[#allocation10 + $0xcc] sm:$0xf]
    %v4853 = vld [vmem:[#allocation10 + $0xd0] sm:$0xf]
    %v4854 = vld [vmem:[#allocation10 + $0xd4] sm:$0xf]
    %v4855 = vld [vmem:[#allocation10 + $0xd8] sm:$0xf]
    %v4856 = vld [vmem:[#allocation10 + $0xdc] sm:$0xf]
    %v4857 = vld [vmem:[#allocation10 + $0xe0] sm:$0xf]
    %v4858 = vld [vmem:[#allocation10 + $0xe4] sm:$0xf]
    %v4859 = vld [vmem:[#allocation10 + $0xe8] sm:$0xf]
    %v4860 = vld [vmem:[#allocation10 + $0xec] sm:$0xf]
    %v4861 = vld [vmem:[#allocation10 + $0xf0] sm:$0xf]
    %v4862 = vld [vmem:[#allocation10 + $0xf4] sm:$0xf]
    %v4863 = vld [vmem:[#allocation10 + $0xf8] sm:$0xf]
    %v4864 = vld [vmem:[#allocation10 + $0xfc] sm:$0xf]
    %v4865 = vld [vmem:[#allocation10 + $0x100] sm:$0xf]
    %v4866 = vld [vmem:[#allocation10 + $0x104] sm:$0xf]
    %v4867 = vld [vmem:[#allocation10 + $0x108] sm:$0xf]
    %v4868 = vld [vmem:[#allocation10 + $0x10c] sm:$0xf]
    %v4869 = vld [vmem:[#allocation10 + $0x110] sm:$0xf]
    %v4870 = vld [vmem:[#allocation10 + $0x114] sm:$0xf]
    %v4871 = vld [vmem:[#allocation10 + $0x118] sm:$0xf]
    %v4872 = vld [vmem:[#allocation10 + $0x11c] sm:$0xf]
    %v4873 = vld [vmem:[#allocation10 + $0x120] sm:$0xf]
    %v4874 = vld [vmem:[#allocation10 + $0x124] sm:$0xf]
    %v4875 = vld [vmem:[#allocation10 + $0x128] sm:$0xf]
    %v4876 = vld [vmem:[#allocation10 + $0x12c] sm:$0xf]
    %v4877 = vld [vmem:[#allocation10 + $0x130] sm:$0xf]
    %v4878 = vld [vmem:[#allocation10 + $0x134] sm:$0xf]
    %v4879 = vld [vmem:[#allocation10 + $0x138] sm:$0xf]
    %v4880 = vld [vmem:[#allocation10 + $0x13c] sm:$0xf]
    %v4881 = vld [vmem:[#allocation10 + $0x140] sm:$0xf]
    %v4882 = vld [vmem:[#allocation10 + $0x144] sm:$0xf]
    %v4883 = vld [vmem:[#allocation10 + $0x148] sm:$0xf]
    %v4884 = vld [vmem:[#allocation10 + $0x14c] sm:$0xf]
    %v4885 = vld [vmem:[#allocation10 + $0x150] sm:$0xf]
    %v4886 = vld [vmem:[#allocation10 + $0x154] sm:$0xf]
    %v4887 = vld [vmem:[#allocation10 + $0x158] sm:$0xf]
    %v4888 = vld [vmem:[#allocation10 + $0x15c] sm:$0xf]
    %v4889 = vld [vmem:[#allocation10 + $0x160] sm:$0xf]
    %v4890 = vld [vmem:[#allocation10 + $0x164] sm:$0xf]
    %v4891 = vld [vmem:[#allocation10 + $0x168] sm:$0xf]
    %v4892 = vld [vmem:[#allocation10 + $0x16c] sm:$0xf]
    %v4893 = vld [vmem:[#allocation10 + $0x170] sm:$0xf]
    %v4894 = vld [vmem:[#allocation10 + $0x174] sm:$0xf]
    %v4895 = vld [vmem:[#allocation10 + $0x178] sm:$0xf]
    %v4896 = vld [vmem:[#allocation10 + $0x17c] sm:$0xf]
    %v4897 = vld [vmem:[#allocation10 + $0x180] sm:$0xf]
    %v4898 = vld [vmem:[#allocation10 + $0x184] sm:$0xf]
    %v4899 = vld [vmem:[#allocation10 + $0x188] sm:$0xf]
    %v4900 = vld [vmem:[#allocation10 + $0x18c] sm:$0xf]
    %v4901 = vld [vmem:[#allocation10 + $0x190] sm:$0xf]
    %v4902 = vld [vmem:[#allocation10 + $0x194] sm:$0xf]
    %v4903 = vld [vmem:[#allocation10 + $0x198] sm:$0xf]
    %v4904 = vld [vmem:[#allocation10 + $0x19c] sm:$0xf]
    %v4905 = vld [vmem:[#allocation10 + $0x1a0] sm:$0xf]
    %v4906 = vld [vmem:[#allocation10 + $0x1a4] sm:$0xf]
    %v4907 = vld [vmem:[#allocation10 + $0x1a8] sm:$0xf]
    %v4908 = vld [vmem:[#allocation10 + $0x1ac] sm:$0xf]
    %v4909 = vld [vmem:[#allocation10 + $0x1b0] sm:$0xf]
    %v4910 = vld [vmem:[#allocation10 + $0x1b4] sm:$0xf]
    %v4911 = vld [vmem:[#allocation10 + $0x1b8] sm:$0xf]
    %v4912 = vld [vmem:[#allocation10 + $0x1bc] sm:$0xf]
    %v4913 = vld [vmem:[#allocation10 + $0x1c0] sm:$0xf]
    %v4914 = vld [vmem:[#allocation10 + $0x1c4] sm:$0xf]
    %v4915 = vld [vmem:[#allocation10 + $0x1c8] sm:$0xf]
    %v4916 = vld [vmem:[#allocation10 + $0x1cc] sm:$0xf]
    %v4917 = vld [vmem:[#allocation10 + $0x1d0] sm:$0xf]
    %v4918 = vld [vmem:[#allocation10 + $0x1d4] sm:$0xf]
    %v4919 = vld [vmem:[#allocation10 + $0x1d8] sm:$0xf]
    %v4920 = vld [vmem:[#allocation10 + $0x1dc] sm:$0xf]
    %v4921 = vld [vmem:[#allocation10 + $0x1e0] sm:$0xf]
    %v4922 = vld [vmem:[#allocation10 + $0x1e4] sm:$0xf]
    %v4923 = vld [vmem:[#allocation10 + $0x1e8] sm:$0xf]
    %v4924 = vld [vmem:[#allocation10 + $0x1ec] sm:$0xf]
    %v4925 = vld [vmem:[#allocation10 + $0x1f0] sm:$0xf]
    %v4926 = vld [vmem:[#allocation10 + $0x1f4] sm:$0xf]
    %v4927 = vld [vmem:[#allocation10 + $0x1f8] sm:$0xf]
    %v4928 = vld [vmem:[#allocation10 + $0x1fc] sm:$0xf]
    %v4930 = vlaneseq
    %v4931 = vshrl.u32 %v4930, 7
    %v4932 = vsub.s32 0, %v4931
    %v4933 = vrot.slane %v4764, %v4932
    %v4943 = vrot.slane %v4765, 4
    %v4944 = vrot.slane %v4769, 4
    %v4945 = vsel %vm3903, %v4943, %v4944
    %v4946 = vrot.slane %v4766, 4
    %v4947 = vrot.slane %v4770, 4
    %v4948 = vsel %vm3903, %v4946, %v4947
    %v4949 = vrot.slane %v4767, 4
    %v4950 = vrot.slane %v4771, 4
    %v4951 = vsel %vm3903, %v4949, %v4950
    %v4952 = vrot.slane %v4768, 4
    %v4953 = vrot.slane %v4772, 4
    %v4954 = vsel %vm3903, %v4952, %v4953
    %v4955 = vrot.slane %v4791, 4
    %v4956 = vrot.slane %v4790, 4
    %v4957 = vsel %vm3903, %v4955, %v4956
    %v4958 = vrot.slane %v4794, 4
    %v4959 = vrot.slane %v4793, 4
    %v4960 = vsel %vm3903, %v4958, %v4959
    %v4961 = vrot.slane %v4797, 4
    %v4962 = vrot.slane %v4796, 4
    %v4963 = vsel %vm3903, %v4961, %v4962
    %v4964 = vrot.slane %v4800, 4
    %v4965 = vrot.slane %v4799, 4
    %v4966 = vsel %vm3903, %v4964, %v4965
    %v5103 = vunpack.c.l.b16 %v4801
    %v5104 = vunpack.c.l.b16 %v4802
    %v5105 = vunpack.c.l.b16 %v4803
    %v5106 = vunpack.c.l.b16 %v4804
    %v5107 = vunpack.c.l.b16 %v4805
    %v5108 = vunpack.c.l.b16 %v4806
    %v5109 = vunpack.c.l.b16 %v4807
    %v5110 = vunpack.c.l.b16 %v4808
    %v5111 = vunpack.c.l.b16 %v4809
    %v5112 = vunpack.c.l.b16 %v4810
    %v5113 = vunpack.c.l.b16 %v4811
    %v5114 = vunpack.c.l.b16 %v4812
    %v5115 = vunpack.c.l.b16 %v4813
    %v5116 = vunpack.c.l.b16 %v4814
    %v5117 = vunpack.c.l.b16 %v4815
    %v5118 = vunpack.c.l.b16 %v4816
    %v5119 = vunpack.c.l.b16 %v4817
    %v5120 = vunpack.c.l.b16 %v4818
    %v5121 = vunpack.c.l.b16 %v4819
    %v5122 = vunpack.c.l.b16 %v4820
    %v5123 = vunpack.c.l.b16 %v4821
    %v5124 = vunpack.c.l.b16 %v4822
    %v5125 = vunpack.c.l.b16 %v4823
    %v5126 = vunpack.c.l.b16 %v4824
    %v5127 = vunpack.c.l.b16 %v4825
    %v5128 = vunpack.c.l.b16 %v4826
    %v5129 = vunpack.c.l.b16 %v4827
    %v5130 = vunpack.c.l.b16 %v4828
    %v5131 = vunpack.c.l.b16 %v4829
    %v5132 = vunpack.c.l.b16 %v4830
    %v5133 = vunpack.c.l.b16 %v4831
    %v5134 = vunpack.c.l.b16 %v4832
    %v5135 = vunpack.c.l.b16 %v4833
    %v5136 = vunpack.c.l.b16 %v4834
    %v5137 = vunpack.c.l.b16 %v4835
    %v5138 = vunpack.c.l.b16 %v4836
    %v5139 = vunpack.c.l.b16 %v4837
    %v5140 = vunpack.c.l.b16 %v4838
    %v5141 = vunpack.c.l.b16 %v4839
    %v5142 = vunpack.c.l.b16 %v4840
    %v5143 = vunpack.c.l.b16 %v4841
    %v5144 = vunpack.c.l.b16 %v4842
    %v5145 = vunpack.c.l.b16 %v4843
    %v5146 = vunpack.c.l.b16 %v4844
    %v5147 = vunpack.c.l.b16 %v4845
    %v5148 = vunpack.c.l.b16 %v4846
    %v5149 = vunpack.c.l.b16 %v4847
    %v5150 = vunpack.c.l.b16 %v4848
    %v5151 = vunpack.c.l.b16 %v4849
    %v5152 = vunpack.c.l.b16 %v4850
    %v5153 = vunpack.c.l.b16 %v4851
    %v5154 = vunpack.c.l.b16 %v4852
    %v5155 = vunpack.c.l.b16 %v4853
    %v5156 = vunpack.c.l.b16 %v4854
    %v5157 = vunpack.c.l.b16 %v4855
    %v5158 = vunpack.c.l.b16 %v4856
    %v5159 = vunpack.c.l.b16 %v4857
    %v5160 = vunpack.c.l.b16 %v4858
    %v5161 = vunpack.c.l.b16 %v4859
    %v5162 = vunpack.c.l.b16 %v4860
    %v5163 = vunpack.c.l.b16 %v4861
    %v5164 = vunpack.c.l.b16 %v4862
    %v5165 = vunpack.c.l.b16 %v4863
    %v5166 = vunpack.c.l.b16 %v4864
    %v5167 = vunpack.c.l.b16 %v4865
    %v5168 = vunpack.c.l.b16 %v4866
    %v5169 = vunpack.c.l.b16 %v4867
    %v5170 = vunpack.c.l.b16 %v4868
    %v5171 = vunpack.c.l.b16 %v4869
    %v5172 = vunpack.c.l.b16 %v4870
    %v5173 = vunpack.c.l.b16 %v4871
    %v5174 = vunpack.c.l.b16 %v4872
    %v5175 = vunpack.c.l.b16 %v4873
    %v5176 = vunpack.c.l.b16 %v4874
    %v5177 = vunpack.c.l.b16 %v4875
    %v5178 = vunpack.c.l.b16 %v4876
    %v5179 = vunpack.c.l.b16 %v4877
    %v5180 = vunpack.c.l.b16 %v4878
    %v5181 = vunpack.c.l.b16 %v4879
    %v5182 = vunpack.c.l.b16 %v4880
    %v5183 = vunpack.c.l.b16 %v4881
    %v5184 = vunpack.c.l.b16 %v4882
    %v5185 = vunpack.c.l.b16 %v4883
    %v5186 = vunpack.c.l.b16 %v4884
    %v5187 = vunpack.c.l.b16 %v4885
    %v5188 = vunpack.c.l.b16 %v4886
    %v5189 = vunpack.c.l.b16 %v4887
    %v5190 = vunpack.c.l.b16 %v4888
    %v5191 = vunpack.c.l.b16 %v4889
    %v5192 = vunpack.c.l.b16 %v4890
    %v5193 = vunpack.c.l.b16 %v4891
    %v5194 = vunpack.c.l.b16 %v4892
    %v5195 = vunpack.c.l.b16 %v4893
    %v5196 = vunpack.c.l.b16 %v4894
    %v5197 = vunpack.c.l.b16 %v4895
    %v5198 = vunpack.c.l.b16 %v4896
    %v5199 = vunpack.c.l.b16 %v4897
    %v5200 = vunpack.c.l.b16 %v4898
    %v5201 = vunpack.c.l.b16 %v4899
    %v5202 = vunpack.c.l.b16 %v4900
    %v5203 = vunpack.c.l.b16 %v4901
    %v5204 = vunpack.c.l.b16 %v4902
    %v5205 = vunpack.c.l.b16 %v4903
    %v5206 = vunpack.c.l.b16 %v4904
    %v5207 = vunpack.c.l.b16 %v4905
    %v5208 = vunpack.c.l.b16 %v4906
    %v5209 = vunpack.c.l.b16 %v4907
    %v5210 = vunpack.c.l.b16 %v4908
    %v5211 = vunpack.c.l.b16 %v4909
    %v5212 = vunpack.c.l.b16 %v4910
    %v5213 = vunpack.c.l.b16 %v4911
    %v5214 = vunpack.c.l.b16 %v4912
    %v5215 = vunpack.c.l.b16 %v4913
    %v5216 = vunpack.c.l.b16 %v4914
    %v5217 = vunpack.c.l.b16 %v4915
    %v5218 = vunpack.c.l.b16 %v4916
    %v5219 = vunpack.c.l.b16 %v4917
    %v5220 = vunpack.c.l.b16 %v4918
    %v5221 = vunpack.c.l.b16 %v4919
    %v5222 = vunpack.c.l.b16 %v4920
    %v5223 = vunpack.c.l.b16 %v4921
    %v5224 = vunpack.c.l.b16 %v4922
    %v5225 = vunpack.c.l.b16 %v4923
    %v5226 = vunpack.c.l.b16 %v4924
    %v5227 = vunpack.c.l.b16 %v4925
    %v5228 = vunpack.c.l.b16 %v4926
    %v5229 = vunpack.c.l.b16 %v4927
    %v5230 = vunpack.c.l.b16 %v4928
    %v5231 = vpack.c.b16 %v5104, %v5103
    %v5232 = vpack.c.b16 %v5106, %v5105
    %v5233 = vpack.c.b16 %v5108, %v5107
    %v5234 = vpack.c.b16 %v5110, %v5109
    %v5235 = vpack.c.b16 %v5112, %v5111
    %v5236 = vpack.c.b16 %v5114, %v5113
    %v5237 = vpack.c.b16 %v5116, %v5115
    %v5238 = vpack.c.b16 %v5118, %v5117
    %v5239 = vpack.c.b16 %v5120, %v5119
    %v5240 = vpack.c.b16 %v5122, %v5121
    %v5241 = vpack.c.b16 %v5124, %v5123
    %v5242 = vpack.c.b16 %v5126, %v5125
    %v5243 = vpack.c.b16 %v5128, %v5127
    %v5244 = vpack.c.b16 %v5130, %v5129
    %v5245 = vpack.c.b16 %v5132, %v5131
    %v5246 = vpack.c.b16 %v5134, %v5133
    %v5247 = vpack.c.b16 %v5136, %v5135
    %v5248 = vpack.c.b16 %v5138, %v5137
    %v5249 = vpack.c.b16 %v5140, %v5139
    %v5250 = vpack.c.b16 %v5142, %v5141
    %v5251 = vpack.c.b16 %v5144, %v5143
    %v5252 = vpack.c.b16 %v5146, %v5145
    %v5253 = vpack.c.b16 %v5148, %v5147
    %v5254 = vpack.c.b16 %v5150, %v5149
    %v5255 = vpack.c.b16 %v5152, %v5151
    %v5256 = vpack.c.b16 %v5154, %v5153
    %v5257 = vpack.c.b16 %v5156, %v5155
    %v5258 = vpack.c.b16 %v5158, %v5157
    %v5259 = vpack.c.b16 %v5160, %v5159
    %v5260 = vpack.c.b16 %v5162, %v5161
    %v5261 = vpack.c.b16 %v5164, %v5163
    %v5262 = vpack.c.b16 %v5166, %v5165
    %v5263 = vpack.c.b16 %v5168, %v5167
    %v5264 = vpack.c.b16 %v5170, %v5169
    %v5265 = vpack.c.b16 %v5172, %v5171
    %v5266 = vpack.c.b16 %v5174, %v5173
    %v5267 = vpack.c.b16 %v5176, %v5175
    %v5268 = vpack.c.b16 %v5178, %v5177
    %v5269 = vpack.c.b16 %v5180, %v5179
    %v5270 = vpack.c.b16 %v5182, %v5181
    %v5271 = vpack.c.b16 %v5184, %v5183
    %v5272 = vpack.c.b16 %v5186, %v5185
    %v5273 = vpack.c.b16 %v5188, %v5187
    %v5274 = vpack.c.b16 %v5190, %v5189
    %v5275 = vpack.c.b16 %v5192, %v5191
    %v5276 = vpack.c.b16 %v5194, %v5193
    %v5277 = vpack.c.b16 %v5196, %v5195
    %v5278 = vpack.c.b16 %v5198, %v5197
    %v5279 = vpack.c.b16 %v5200, %v5199
    %v5280 = vpack.c.b16 %v5202, %v5201
    %v5281 = vpack.c.b16 %v5204, %v5203
    %v5282 = vpack.c.b16 %v5206, %v5205
    %v5283 = vpack.c.b16 %v5208, %v5207
    %v5284 = vpack.c.b16 %v5210, %v5209
    %v5285 = vpack.c.b16 %v5212, %v5211
    %v5286 = vpack.c.b16 %v5214, %v5213
    %v5287 = vpack.c.b16 %v5216, %v5215
    %v5288 = vpack.c.b16 %v5218, %v5217
    %v5289 = vpack.c.b16 %v5220, %v5219
    %v5290 = vpack.c.b16 %v5222, %v5221
    %v5291 = vpack.c.b16 %v5224, %v5223
    %v5292 = vpack.c.b16 %v5226, %v5225
    %v5293 = vpack.c.b16 %v5228, %v5227
    %v5294 = vpack.c.b16 %v5230, %v5229
    %5359 = vmatprep.subr.bf16.mxu0 0
    %5360 = vmatpush1.bf16.msra.mxu0 %v5231
    %5361 = vmatprep.subr.bf16.mxu0 0
    %5362 = vmatpush1.bf16.msra.mxu0 %v5232
    %5363 = vmatprep.subr.bf16.mxu0 0
    %5364 = vmatpush1.bf16.msra.mxu0 %v5233
    %5365 = vmatprep.subr.bf16.mxu0 0
    %5366 = vmatpush1.bf16.msra.mxu0 %v5234
    %5367 = vmatprep.subr.bf16.mxu0 0
    %5368 = vmatpush1.bf16.msra.mxu0 %v5235
    %5369 = vmatprep.subr.bf16.mxu0 0
    %5370 = vmatpush1.bf16.msra.mxu0 %v5236
    %5371 = vmatprep.subr.bf16.mxu0 0
    %5372 = vmatpush1.bf16.msra.mxu0 %v5237
    %5373 = vmatprep.subr.bf16.mxu0 0
    %5374 = vmatpush1.bf16.msra.mxu0 %v5238
    %5375 = vmatprep.subr.bf16.mxu0 0
    %5376 = vmatpush1.bf16.msra.mxu0 %v5239
    %5377 = vmatprep.subr.bf16.mxu0 0
    %5378 = vmatpush1.bf16.msra.mxu0 %v5240
    %5379 = vmatprep.subr.bf16.mxu0 0
    %5380 = vmatpush1.bf16.msra.mxu0 %v5241
    %5381 = vmatprep.subr.bf16.mxu0 0
    %5382 = vmatpush1.bf16.msra.mxu0 %v5242
    %5383 = vmatprep.subr.bf16.mxu0 0
    %5384 = vmatpush1.bf16.msra.mxu0 %v5243
    %5385 = vmatprep.subr.bf16.mxu0 0
    %5386 = vmatpush1.bf16.msra.mxu0 %v5244
    %5387 = vmatprep.subr.bf16.mxu0 0
    %5388 = vmatpush1.bf16.msra.mxu0 %v5245
    %5389 = vmatprep.subr.bf16.mxu0 0
    %5390 = vmatpush1.bf16.msra.mxu0 %v5246
    %5391 = vmatprep.mubr.bf16.mxu0 %v4948
    %5392 = vmatmul.mubr.bf16.gmra.mrb[0].mxu0 %v4945
    %v5393 = vpop.f32.mrb[0].mxu0
    %v5394 = vadd.f32 %v4933, %v5393
    %v5395 = vpop.f32.mrb[0].mxu0
    %v5396 = vpop.f32.mrb[0].mxu0
    %v5397 = vadd.f32 %v4933, %v5396
    %v5398 = vpop.f32.mrb[0].mxu0
    %5399 = vdwg.mxu0
    %5400 = vmatprep.subr.bf16.mxu0 0
    %5401 = vmatpush1.bf16.msra.mxu0 %v5247
    %5402 = vmatprep.subr.bf16.mxu0 0
    %5403 = vmatpush1.bf16.msra.mxu0 %v5248
    %5404 = vmatprep.subr.bf16.mxu0 0
    %5405 = vmatpush1.bf16.msra.mxu0 %v5249
    %5406 = vmatprep.subr.bf16.mxu0 0
    %5407 = vmatpush1.bf16.msra.mxu0 %v5250
    %5408 = vmatprep.subr.bf16.mxu0 0
    %5409 = vmatpush1.bf16.msra.mxu0 %v5251
    %5410 = vmatprep.subr.bf16.mxu0 0
    %5411 = vmatpush1.bf16.msra.mxu0 %v5252
    %5412 = vmatprep.subr.bf16.mxu0 0
    %5413 = vmatpush1.bf16.msra.mxu0 %v5253
    %5414 = vmatprep.subr.bf16.mxu0 0
    %5415 = vmatpush1.bf16.msra.mxu0 %v5254
    %5416 = vmatprep.subr.bf16.mxu0 0
    %5417 = vmatpush1.bf16.msra.mxu0 %v5255
    %5418 = vmatprep.subr.bf16.mxu0 0
    %5419 = vmatpush1.bf16.msra.mxu0 %v5256
    %5420 = vmatprep.subr.bf16.mxu0 0
    %5421 = vmatpush1.bf16.msra.mxu0 %v5257
    %5422 = vmatprep.subr.bf16.mxu0 0
    %5423 = vmatpush1.bf16.msra.mxu0 %v5258
    %5424 = vmatprep.subr.bf16.mxu0 0
    %5425 = vmatpush1.bf16.msra.mxu0 %v5259
    %5426 = vmatprep.subr.bf16.mxu0 0
    %5427 = vmatpush1.bf16.msra.mxu0 %v5260
    %5428 = vmatprep.subr.bf16.mxu0 0
    %5429 = vmatpush1.bf16.msra.mxu0 %v5261
    %5430 = vmatprep.subr.bf16.mxu0 0
    %5431 = vmatpush1.bf16.msra.mxu0 %v5262
    %5432 = vmatprep.mubr.bf16.mxu0 %v4954
    %5433 = vmatmul.mubr.bf16.gmra.mrb[0].mxu0 %v4951
    %v5434 = vpop.f32.mrb[0].mxu0
    %v5435 = vadd.f32 %v5394, %v5434
    %v5436 = vpop.f32.mrb[0].mxu0
    %v5437 = vpop.f32.mrb[0].mxu0
    %v5438 = vadd.f32 %v5397, %v5437
    %v5439 = vpop.f32.mrb[0].mxu0
    %5440 = vdwg.mxu0
    %5441 = vmatprep.subr.bf16.mxu0 0
    %5442 = vmatpush1.bf16.msra.mxu0 %v5263
    %5443 = vmatprep.subr.bf16.mxu0 0
    %5444 = vmatpush1.bf16.msra.mxu0 %v5264
    %5445 = vmatprep.subr.bf16.mxu0 0
    %5446 = vmatpush1.bf16.msra.mxu0 %v5265
    %5447 = vmatprep.subr.bf16.mxu0 0
    %5448 = vmatpush1.bf16.msra.mxu0 %v5266
    %5449 = vmatprep.subr.bf16.mxu0 0
    %5450 = vmatpush1.bf16.msra.mxu0 %v5267
    %5451 = vmatprep.subr.bf16.mxu0 0
    %5452 = vmatpush1.bf16.msra.mxu0 %v5268
    %5453 = vmatprep.subr.bf16.mxu0 0
    %5454 = vmatpush1.bf16.msra.mxu0 %v5269
    %5455 = vmatprep.subr.bf16.mxu0 0
    %5456 = vmatpush1.bf16.msra.mxu0 %v5270
    %5457 = vmatprep.subr.bf16.mxu0 0
    %5458 = vmatpush1.bf16.msra.mxu0 %v5271
    %5459 = vmatprep.subr.bf16.mxu0 0
    %5460 = vmatpush1.bf16.msra.mxu0 %v5272
    %5461 = vmatprep.subr.bf16.mxu0 0
    %5462 = vmatpush1.bf16.msra.mxu0 %v5273
    %5463 = vmatprep.subr.bf16.mxu0 0
    %5464 = vmatpush1.bf16.msra.mxu0 %v5274
    %5465 = vmatprep.subr.bf16.mxu0 0
    %5466 = vmatpush1.bf16.msra.mxu0 %v5275
    %5467 = vmatprep.subr.bf16.mxu0 0
    %5468 = vmatpush1.bf16.msra.mxu0 %v5276
    %5469 = vmatprep.subr.bf16.mxu0 0
    %5470 = vmatpush1.bf16.msra.mxu0 %v5277
    %5471 = vmatprep.subr.bf16.mxu0 0
    %5472 = vmatpush1.bf16.msra.mxu0 %v5278
    %5473 = vmatprep.mubr.bf16.mxu0 %v4960
    %5474 = vmatmul.mubr.bf16.gmra.mrb[0].mxu0 %v4957
    %v5475 = vpop.f32.mrb[0].mxu0
    %v5476 = vadd.f32 %v5435, %v5475
    %v5477 = vpop.f32.mrb[0].mxu0
    %v5478 = vpop.f32.mrb[0].mxu0
    %v5479 = vadd.f32 %v5438, %v5478
    %v5480 = vpop.f32.mrb[0].mxu0
    %5481 = vdwg.mxu0
    %5482 = vmatprep.subr.bf16.mxu0 0
    %5483 = vmatpush1.bf16.msra.mxu0 %v5279
    %5484 = vmatprep.subr.bf16.mxu0 0
    %5485 = vmatpush1.bf16.msra.mxu0 %v5280
    %5486 = vmatprep.subr.bf16.mxu0 0
    %5487 = vmatpush1.bf16.msra.mxu0 %v5281
    %5488 = vmatprep.subr.bf16.mxu0 0
    %5489 = vmatpush1.bf16.msra.mxu0 %v5282
    %5490 = vmatprep.subr.bf16.mxu0 0
    %5491 = vmatpush1.bf16.msra.mxu0 %v5283
    %5492 = vmatprep.subr.bf16.mxu0 0
    %5493 = vmatpush1.bf16.msra.mxu0 %v5284
    %5494 = vmatprep.subr.bf16.mxu0 0
    %5495 = vmatpush1.bf16.msra.mxu0 %v5285
    %5496 = vmatprep.subr.bf16.mxu0 0
    %5497 = vmatpush1.bf16.msra.mxu0 %v5286
    %5498 = vmatprep.subr.bf16.mxu0 0
    %5499 = vmatpush1.bf16.msra.mxu0 %v5287
    %5500 = vmatprep.subr.bf16.mxu0 0
    %5501 = vmatpush1.bf16.msra.mxu0 %v5288
    %5502 = vmatprep.subr.bf16.mxu0 0
    %5503 = vmatpush1.bf16.msra.mxu0 %v5289
    %5504 = vmatprep.subr.bf16.mxu0 0
    %5505 = vmatpush1.bf16.msra.mxu0 %v5290
    %5506 = vmatprep.subr.bf16.mxu0 0
    %5507 = vmatpush1.bf16.msra.mxu0 %v5291
    %5508 = vmatprep.subr.bf16.mxu0 0
    %5509 = vmatpush1.bf16.msra.mxu0 %v5292
    %5510 = vmatprep.subr.bf16.mxu0 0
    %5511 = vmatpush1.bf16.msra.mxu0 %v5293
    %5512 = vmatprep.subr.bf16.mxu0 0
    %5513 = vmatpush1.bf16.msra.mxu0 %v5294
    %5514 = vmatprep.mubr.bf16.mxu0 %v4966
    %5515 = vmatmul.mubr.bf16.gmra.mrb[0].mxu0 %v4963
    %v5516 = vpop.f32.mrb[0].mxu0
    %v5517 = vadd.f32 %v5476, %v5516
    %v5518 = vpop.f32.mrb[0].mxu0
    %v5519 = vpop.f32.mrb[0].mxu0
    %v5520 = vadd.f32 %v5479, %v5519
    %v5521 = vpop.f32.mrb[0].mxu0
    %5522 = vdwg.mxu0
    %v5523 = vxor.u32 %v5517, 2147483648
    %v5524 = vxor.u32 %v5520, 2147483648
    %v5525 = vmul.f32 %v5523, 1.442695
    %v5526 = vpow.pop %v5525
    %v5527 = vmul.f32 %v5524, 1.442695
    %v5528 = vpow.pop %v5527
    %v5529 = vadd.f32 %v5526, 1.0
    %v5530 = vadd.f32 %v5528, 1.0
    %v5531 = vrcp.pop %v5529
    %v5532 = vmul.f32 1.0, %v5531
    %v5533 = vrcp.pop %v5530
    %v5534 = vmul.f32 1.0, %v5533
    %5535 = vst [vmem:[%s8] sm:$0xff] %v5532
    %5536 = vst [vmem:[%s8 + $0x8] sm:$0x3f] %v5534
    // Predicated region
    $region50: #{autoencoder_forward.1} parent=1 // pred_check
      _
    $region51: #{autoencoder_forward.1} parent=1 // pred_check_branch
      %5538 = sbr.rel (0) target = $region53
    $region52: #{autoencoder_forward.1} parent=1 // pred_region
      _
    $region53: #{autoencoder_forward.1} parent=1 // pred_fallthru
      _
    // Predicated region
    $region54: #{autoencoder_forward.1} parent=1 // pred_check
      _
    $region55: #{autoencoder_forward.1} parent=1 // pred_check_branch
      %5540 = sbr.rel (0) target = $region57
    $region56: #{autoencoder_forward.1} parent=1 // pred_region
      _
    $region57: #{autoencoder_forward.1} parent=1 // pred_fallthru
      _
    %5541 = vsyncpa [#allocation7], 1
    %5542 = vsyncpa [#allocation9], 1
    %5543 = vsyncpa [#allocation12], 1

</llo_original>
